<compile_context>
chip_gen: v7x
topology: tpu7x:2x2x1
jax: 0.10.0
libtpu: 0.0.40
codegen_flags: <defaults>
</compile_context>

<pallas_src>
import functools

import jax
import jax.numpy as jnp
from jax.experimental import pallas as pl
from jax.experimental.pallas import tpu as pltpu


_LANE = 128
_VMEM_LIMIT = 48 * 1024 * 1024   # safe on v5e/v6e (128 MiB) and v7x (64 MiB)


def _round_up(x, m):
    return (x + m - 1) // m * m


def _pick_tm(m):
    # Largest row tile that keeps double-buffered tiles comfortably in VMEM.
    if m <= 512:
        return _round_up(max(m, 8), 8)
    return 512


# ------------------------------------------------------------------ kernels --

def _mm_kernel(a_ref, b_ref, o_ref, *, alpha, apply_act):
    # bf16 x bf16 -> f32 accumulate on the MXU; optional LeakyReLU epilogue.
    y = jnp.dot(a_ref[...], b_ref[...], preferred_element_type=jnp.float32)
    if apply_act:
        y = jnp.where(y >= 0.0, y, alpha * y)
    o_ref[...] = y.astype(o_ref.dtype)


def _mm_bias_kernel(a_ref, b_ref, bias_ref, o_ref, *, alpha, apply_act):
    y = jnp.dot(a_ref[...], b_ref[...], preferred_element_type=jnp.float32)
    y = y + bias_ref[...]
    if apply_act:
        y = jnp.where(y >= 0.0, y, alpha * y)
    o_ref[...] = y.astype(o_ref.dtype)


def _mm_stats_kernel(a_ref, b_ref, y_ref, stats_ref):
    # Conv matmul tile + per-channel sum / sum-of-squares accumulation.
    # stats_ref block index is constant across the grid -> resident accumulator
    # (grid axis must be "arbitrary").  Padded rows of `a` are zero so they
    # contribute nothing to the statistics.
    y = jnp.dot(a_ref[...], b_ref[...], preferred_element_type=jnp.float32)
    y_ref[...] = y.astype(y_ref.dtype)

    @pl.when(pl.program_id(0) == 0)
    def _():
        stats_ref[...] = jnp.zeros_like(stats_ref)

    stats_ref[0:1, :] += jnp.sum(y, axis=0, keepdims=True)
    stats_ref[1:2, :] += jnp.sum(y * y, axis=0, keepdims=True)


def _bn_lrelu_kernel(y_ref, stats_ref, gamma_ref, beta_ref, o_ref,
                     *, count, alpha, eps):
    # BatchNorm2d (training-mode batch statistics, biased variance — PyTorch
    # default for a freshly constructed module) fused with LeakyReLU(0.2).
    y = y_ref[...].astype(jnp.float32)
    inv_n = 1.0 / count
    mean = stats_ref[0:1, :] * inv_n
    var = jnp.maximum(stats_ref[1:2, :] * inv_n - mean * mean, 0.0)
    scale = jax.lax.rsqrt(var + eps) * gamma_ref[...]
    z = (y - mean) * scale + beta_ref[...]
    o_ref[...] = jnp.where(z >= 0.0, z, alpha * z).astype(o_ref.dtype)


def _final_mean_kernel(a_ref, w_ref, o_ref, *, batch):
    # Final 4x4 valid conv (Cout=1) + mean over batch as a VPU multiply-reduce;
    # padded rows/channels are zero so they do not perturb the sum.
    prod = a_ref[...].astype(jnp.float32) * w_ref[...].astype(jnp.float32)
    col = jnp.sum(prod, axis=0, keepdims=True)      # (1, K)
    tot = jnp.sum(col, axis=1, keepdims=True)       # (1, 1)
    o_ref[...] = jnp.broadcast_to(tot * (1.0 / batch), o_ref.shape)


# ----------------------------------------------------------------- wrappers --

def matmul_act(a, b, bias=None, *, alpha=0.2, apply_act=False,
               out_dtype=jnp.float32):
    """(M,K)@(K,N) [+bias] [+LeakyReLU], gridded over M; bf16 MXU operands."""
    m, k = a.shape
    n = b.shape[1]
    a = a.astype(jnp.bfloat16)
    b = b.astype(jnp.bfloat16)
    tm = _pick_tm(m)
    mp = _round_up(m, tm)
    if mp != m:
        a = jnp.pad(a, ((0, mp - m), (0, 0)))

    in_specs = [pl.BlockSpec((tm, k), lambda i: (i, 0)),
                pl.BlockSpec((k, n), lambda i: (0, 0))]
    args = [a, b]
    if bias is not None:
        in_specs.append(pl.BlockSpec((1, n), lambda i: (0, 0)))
        args.append(bias.reshape(1, n).astype(jnp.float32))
        kern = functools.partial(_mm_bias_kernel, alpha=alpha, apply_act=apply_act)
    else:
        kern = functools.partial(_mm_kernel, alpha=alpha, apply_act=apply_act)

    out = pl.pallas_call(
        kern,
        grid=(mp // tm,),
        in_specs=in_specs,
        out_specs=pl.BlockSpec((tm, n), lambda i: (i, 0)),
        out_shape=jax.ShapeDtypeStruct((mp, n), out_dtype),
        compiler_params=pltpu.CompilerParams(
            dimension_semantics=("parallel",),
            vmem_limit_bytes=_VMEM_LIMIT),
    )(*args)
    return out[:m] if mp != m else out


def conv_bn_lrelu(cols, w, gamma, beta, *, count, alpha=0.2, eps=1e-5,
                  out_dtype=jnp.bfloat16):
    """Fused conv-as-matmul + BatchNorm(batch stats) + LeakyReLU, gridded over M.

    cols: (M, K) im2col patches (padded rows must be zero).
    w:    (K, N) weight matrix (N = channels padded to a multiple of 128).
    gamma/beta: length-N (already channel-padded).
    count: true number of rows (B*Ho*Wo) for the batch-norm divisor.
    """
    m, k = cols.shape
    n = w.shape[1]
    cols = cols.astype(jnp.bfloat16)
    w = w.astype(jnp.bfloat16)
    tm = _pick_tm(m)
    mp = _round_up(m, tm)
    if mp != m:
        cols = jnp.pad(cols, ((0, mp - m), (0, 0)))
    grid = (mp // tm,)

    # Pass 1: conv output tiles (bf16) + per-channel sum / sumsq accumulator.
    y, stats = pl.pallas_call(
        _mm_stats_kernel,
        grid=grid,
        in_specs=[pl.BlockSpec((tm, k), lambda i: (i, 0)),
                  pl.BlockSpec((k, n), lambda i: (0, 0))],
        out_specs=(pl.BlockSpec((tm, n), lambda i: (i, 0)),
                   pl.BlockSpec((8, n), lambda i: (0, 0))),
        out_shape=(jax.ShapeDtypeStruct((mp, n), jnp.bfloat16),
                   jax.ShapeDtypeStruct((8, n), jnp.float32)),
        compiler_params=pltpu.CompilerParams(
            dimension_semantics=("arbitrary",),      # resident stats accumulator
            vmem_limit_bytes=_VMEM_LIMIT),
    )(cols, w)

    # Pass 2: normalize + LeakyReLU per tile.
    gamma2 = gamma.reshape(1, n).astype(jnp.float32)
    beta2 = beta.reshape(1, n).astype(jnp.float32)
    kern = functools.partial(_bn_lrelu_kernel, count=count, alpha=alpha, eps=eps)
    out = pl.pallas_call(
        kern,
        grid=grid,
        in_specs=[pl.BlockSpec((tm, n), lambda i: (i, 0)),
                  pl.BlockSpec((8, n), lambda i: (0, 0)),
                  pl.BlockSpec((1, n), lambda i: (0, 0)),
                  pl.BlockSpec((1, n), lambda i: (0, 0))],
        out_specs=pl.BlockSpec((tm, n), lambda i: (i, 0)),
        out_shape=jax.ShapeDtypeStruct((mp, n), out_dtype),
        compiler_params=pltpu.CompilerParams(
            dimension_semantics=("parallel",),
            vmem_limit_bytes=_VMEM_LIMIT),
    )(y, stats, gamma2, beta2)
    return out[:m] if mp != m else out


def final_conv_mean(cols, w_col, *, batch):
    """Final 1x1-output conv (as dot) + mean over batch -> scalar, via VPU."""
    m, k = cols.shape
    mp = _round_up(max(m, 8), 8)
    cols = cols.astype(jnp.bfloat16)
    if mp != m:
        cols = jnp.pad(cols, ((0, mp - m), (0, 0)))
    w_row = w_col.reshape(1, k).astype(jnp.bfloat16)
    kern = functools.partial(_final_mean_kernel, batch=batch)
    out = pl.pallas_call(
        kern,
        out_shape=jax.ShapeDtypeStruct((1, _LANE), jnp.float32),
        in_specs=[pl.BlockSpec(memory_space=pltpu.MemorySpace.VMEM),
                  pl.BlockSpec(memory_space=pltpu.MemorySpace.VMEM)],
        out_specs=pl.BlockSpec(memory_space=pltpu.MemorySpace.VMEM),
    )(cols, w_row)
    return out[0, :1]


# --------------------------------------------------------------- conv glue --

def _im2col_nhwc(x, kh, kw, stride, pad, circular=False):
    """x: (B,H,W,C) -> (B*Ho*Wo, kh*kw*C) tap-major / channel-minor patches."""
    b, h, w, c = x.shape
    if pad:
        mode = "wrap" if circular else "constant"   # 'wrap' == torch 'circular'
        x = jnp.pad(x, ((0, 0), (pad, pad), (pad, pad), (0, 0)), mode=mode)
    hp, wp = x.shape[1], x.shape[2]
    ho = (hp - kh) // stride + 1
    wo = (wp - kw) // stride + 1
    taps = [x[:, i:i + stride * ho:stride, j:j + stride * wo:stride, :]
            for i in range(kh) for j in range(kw)]
    cols = jnp.concatenate(taps, axis=-1)           # (B, Ho, Wo, kh*kw*C)
    return cols.reshape(b * ho * wo, kh * kw * c), ho, wo


def _w_to_mat(w, cin_pad=None, cout_pad=None):
    # torch conv weight (Cout, Cin, kh, kw) -> (kh*kw*Cin_pad, Cout_pad),
    # matching the im2col (i, j, c) flattening order (cross-correlation).
    cout, cin, kh, kw = w.shape
    cin_pad = cin if cin_pad is None else cin_pad
    cout_pad = cout if cout_pad is None else cout_pad
    wm = jnp.transpose(w, (2, 3, 1, 0))                       # (kh, kw, cin, cout)
    wm = jnp.pad(wm, ((0, 0), (0, 0), (0, cin_pad - cin), (0, cout_pad - cout)))
    return wm.reshape(kh * kw * cin_pad, cout_pad)


# ------------------------------------------------------------------- model --

def init_dcgan_d_params(key, isize, nc, ndf, nfeatures, n_extra_layers=0):
    assert isize % 16 == 0, "isize has to be a multiple of 16"
    keys = iter(jax.random.split(key, 64))

    def nrm(shape, scale=0.02):
        return (scale * jax.random.normal(next(keys), shape)).astype(jnp.float32)

    params = {
        "fc_w": nrm((isize * isize, nfeatures)),   # nn.Linear(nfeatures, isize*isize)
        "fc_b": nrm((isize * isize,)),
        "initial_w": nrm((ndf, nc + 1, 4, 4)),     # circular 4x4 s2 p1, no bias
    }
    cndf, csize = ndf, isize // 2
    params["extra"] = [
        {"w": nrm((cndf, cndf, 3, 3)),
         "gamma": jnp.ones((cndf,), jnp.float32),
         "beta": jnp.zeros((cndf,), jnp.float32)}
        for _ in range(n_extra_layers)
    ]
    pyramid = []
    while csize > 4:
        pyramid.append({"w": nrm((cndf * 2, cndf, 4, 4)),
                        "gamma": jnp.ones((cndf * 2,), jnp.float32),
                        "beta": jnp.zeros((cndf * 2,), jnp.float32)})
        cndf *= 2
        csize //= 2
    params["pyramid"] = pyramid
    params["final_w"] = nrm((1, cndf, 4, 4))
    return params


def dcgan_d_forward(params, x_nchw, attr, *, isize):
    b = x_nchw.shape[0]

    # feature_input: Linear(nfeatures, isize*isize) -> view(-1, 1, isize, isize)
    attr_map = matmul_act(attr, params["fc_w"].T, params["fc_b"],
                          apply_act=False, out_dtype=jnp.bfloat16)   # (B, isize*isize)
    attr_nhwc = attr_map.reshape(b, isize, isize, 1)

    x = jnp.transpose(x_nchw, (0, 2, 3, 1)).astype(jnp.bfloat16)     # NCHW -> NHWC
    x = jnp.concatenate([x, attr_nhwc], axis=-1)     # channel order [nc..., attr]

    # initial: Conv2d(nc+1, ndf, 4, 2, 1, circular, bias=False) + LeakyReLU(0.2)
    ndf = params["initial_w"].shape[0]
    cin_pad = _round_up(ndf, _LANE)
    cols, ho, wo = _im2col_nhwc(x, 4, 4, 2, 1, circular=True)
    y = matmul_act(cols, _w_to_mat(params["initial_w"], cout_pad=cin_pad),
                   alpha=0.2, apply_act=True, out_dtype=jnp.bfloat16)
    x = y.reshape(b, ho, wo, cin_pad)                # channels 128-padded from here on

    # extra layers: Conv2d(c, c, 3, 1, 1) + BatchNorm2d + LeakyReLU(0.2)  (fused)
    for lay in params["extra"]:
        cout_true = lay["w"].shape[0]
        cout_pad = _round_up(cout_true, _LANE)
        cols, ho, wo = _im2col_nhwc(x, 3, 3, 1, 1)
        y = conv_bn_lrelu(
            cols, _w_to_mat(lay["w"], cin_pad=cin_pad, cout_pad=cout_pad),
            jnp.pad(lay["gamma"], (0, cout_pad - cout_true)),
            jnp.pad(lay["beta"], (0, cout_pad - cout_true)),
            count=b * ho * wo, alpha=0.2)
        x = y.reshape(b, ho, wo, cout_pad)
        cin_pad = cout_pad

    # pyramid: Conv2d(c, 2c, 4, 2, 1) + BatchNorm2d + LeakyReLU(0.2)  (fused)
    for lay in params["pyramid"]:
        cout_true = lay["w"].shape[0]
        cout_pad = _round_up(cout_true, _LANE)
        cols, ho, wo = _im2col_nhwc(x, 4, 4, 2, 1)
        y = conv_bn_lrelu(
            cols, _w_to_mat(lay["w"], cin_pad=cin_pad, cout_pad=cout_pad),
            jnp.pad(lay["gamma"], (0, cout_pad - cout_true)),
            jnp.pad(lay["beta"], (0, cout_pad - cout_true)),
            count=b * ho * wo, alpha=0.2)
        x = y.reshape(b, ho, wo, cout_pad)
        cin_pad = cout_pad

    # final: Conv2d(cndf, 1, 4, 1, 0) -> (B,1,1,1); mean over batch; view(1)
    cols, _, _ = _im2col_nhwc(x, 4, 4, 1, 0)
    w_final = _w_to_mat(params["final_w"], cin_pad=cin_pad)   # (16*cin_pad, 1)
    return final_conv_mean(cols, w_final, batch=b)            # shape (1,)


# -------------------------------------------------------------------- main --

if __name__ == "__main__":
    isize, nc, ndf, nfeatures = 16, 3, 8, 8
    batch, n_extra_layers = 2, 1

    key = jax.random.PRNGKey(0)
    k_params, k_x, k_attr = jax.random.split(key, 3)
    params = init_dcgan_d_params(k_params, isize, nc, ndf, nfeatures,
                                 n_extra_layers=n_extra_layers)
    x = jax.random.normal(k_x, (batch, nc, isize, isize), jnp.float32)   # NCHW
    attr = jax.random.normal(k_attr, (batch, nfeatures), jnp.float32)

    fwd = jax.jit(functools.partial(dcgan_d_forward, isize=isize))
    out = jax.block_until_ready(fwd(params, x, attr))
    assert out.shape == (1,) and out.dtype == jnp.float32
    assert bool(jnp.isfinite(out).all())
    print("KERNEL_OK")
</pallas_src>

<mosaic_0001>
module attributes {stable_mosaic.version = 11 : i64} {
  func.func @_mm_bias_kernel(%arg0: i32, %arg1: memref<8x8xbf16, #tpu.memory_space<vmem>>, %arg2: memref<8x256xbf16, #tpu.memory_space<vmem>>, %arg3: memref<1x256xf32, #tpu.memory_space<vmem>>, %arg4: memref<8x256xbf16, #tpu.memory_space<vmem>>) attributes {dimension_semantics = [#tpu.dimension_semantics<parallel>], iteration_bounds = array<i64: 1>, scalar_prefetch = 0 : i64, scratch_operands = 0 : i64, tpu.core_type = #tpu.core_type<tc>, window_params = [{transform_indices = @transform_0, window_bounds = array<i64: 8, 8>}, {pipeline_mode = #tpu.pipeline_mode<synchronous>, transform_indices = @transform_1, window_bounds = array<i64: 8, 256>}, {pipeline_mode = #tpu.pipeline_mode<synchronous>, transform_indices = @transform_2, window_bounds = array<i64: 1, 256>}, {transform_indices = @transform_3, window_bounds = array<i64: 8, 256>}]} {
    %c0 = arith.constant 0 : index
    %c0_0 = arith.constant 0 : index
    %0 = vector.load %arg1[%c0, %c0_0] : memref<8x8xbf16, #tpu.memory_space<vmem>>, vector<8x8xbf16>
    %c0_1 = arith.constant 0 : index
    %c0_2 = arith.constant 0 : index
    %1 = vector.load %arg2[%c0_1, %c0_2] : memref<8x256xbf16, #tpu.memory_space<vmem>>, vector<8x256xbf16>
    %cst = arith.constant dense<0.000000e+00> : vector<8x256xf32>
    %2 = tpu.matmul %0, %1, %cst {dimension_numbers = #tpu.dot_dimension_numbers<[1], [0], [0], [1], [0, 0, 1, 1], [], []>} : vector<8x8xbf16>, vector<8x256xbf16>, vector<8x256xf32> -> vector<8x256xf32>
    %c0_3 = arith.constant 0 : index
    %c0_4 = arith.constant 0 : index
    %3 = vector.load %arg3[%c0_3, %c0_4] : memref<1x256xf32, #tpu.memory_space<vmem>>, vector<1x256xf32>
    %4 = vector.broadcast %3 : vector<1x256xf32> to vector<8x256xf32>
    %5 = arith.addf %2, %4 : vector<8x256xf32>
    %6 = arith.truncf %5 : vector<8x256xf32> to vector<8x256xbf16>
    %c0_5 = arith.constant 0 : index
    %c0_6 = arith.constant 0 : index
    %7 = vector.load %arg4[%c0_5, %c0_6] : memref<8x256xbf16, #tpu.memory_space<vmem>>, vector<8x256xbf16>
    tpu.vector_store %arg4[%c0_5, %c0_6], %6 {strides = array<i32>} : memref<8x256xbf16, #tpu.memory_space<vmem>>, vector<8x256xbf16>,
    return
  }
  func.func @transform_0(%arg0: i32) -> (i32, i32) {
    %c0_i32 = arith.constant 0 : i32
    %c0_i32_0 = arith.constant 0 : i32
    return %arg0, %c0_i32 : i32, i32
  }
  func.func @transform_1(%arg0: i32) -> (i32, i32) {
    %c0_i32 = arith.constant 0 : i32
    %c0_i32_0 = arith.constant 0 : i32
    %c0_i32_1 = arith.constant 0 : i32
    return %c0_i32, %c0_i32_0 : i32, i32
  }
  func.func @transform_2(%arg0: i32) -> (i32, i32) {
    %c0_i32 = arith.constant 0 : i32
    %c0_i32_0 = arith.constant 0 : i32
    %c0_i32_1 = arith.constant 0 : i32
    return %c0_i32, %c0_i32_0 : i32, i32
  }
  func.func @transform_3(%arg0: i32) -> (i32, i32) {
    %c0_i32 = arith.constant 0 : i32
    %c0_i32_0 = arith.constant 0 : i32
    return %arg0, %c0_i32 : i32, i32
  }
}

module attributes {stable_mosaic.version = 11 : i64} {
  func.func @_mm_kernel(%arg0: i32, %arg1: memref<128x64xbf16, #tpu.memory_space<vmem>>, %arg2: memref<64x128xbf16, #tpu.memory_space<vmem>>, %arg3: memref<128x128xbf16, #tpu.memory_space<vmem>>) attributes {dimension_semantics = [#tpu.dimension_semantics<parallel>], iteration_bounds = array<i64: 1>, scalar_prefetch = 0 : i64, scratch_operands = 0 : i64, tpu.core_type = #tpu.core_type<tc>, window_params = [{transform_indices = @transform_0, window_bounds = array<i64: 128, 64>}, {pipeline_mode = #tpu.pipeline_mode<synchronous>, transform_indices = @transform_1, window_bounds = array<i64: 64, 128>}, {transform_indices = @transform_2, window_bounds = array<i64: 128, 128>}]} {
    %c0 = arith.constant 0 : index
    %c0_0 = arith.constant 0 : index
    %0 = vector.load %arg1[%c0, %c0_0] : memref<128x64xbf16, #tpu.memory_space<vmem>>, vector<128x64xbf16>
    %c0_1 = arith.constant 0 : index
    %c0_2 = arith.constant 0 : index
    %1 = vector.load %arg2[%c0_1, %c0_2] : memref<64x128xbf16, #tpu.memory_space<vmem>>, vector<64x128xbf16>
    %cst = arith.constant dense<0.000000e+00> : vector<128x128xf32>
    %2 = tpu.matmul %0, %1, %cst {dimension_numbers = #tpu.dot_dimension_numbers<[1], [0], [0], [1], [0, 0, 1, 1], [], []>} : vector<128x64xbf16>, vector<64x128xbf16>, vector<128x128xf32> -> vector<128x128xf32>
    %cst_3 = arith.constant 0.000000e+00 : f32
    %3 = vector.broadcast %cst_3 : f32 to vector<128x128xf32>
    %4 = arith.cmpf oge, %2, %3 : vector<128x128xf32>
    %cst_4 = arith.constant 2.000000e-01 : f32
    %5 = vector.broadcast %cst_4 : f32 to vector<128x128xf32>
    %6 = arith.mulf %5, %2 : vector<128x128xf32>
    %7 = arith.select %4, %2, %6 : vector<128x128xi1>, vector<128x128xf32>
    %8 = arith.truncf %7 : vector<128x128xf32> to vector<128x128xbf16>
    %c0_5 = arith.constant 0 : index
    %c0_6 = arith.constant 0 : index
    %9 = vector.load %arg3[%c0_5, %c0_6] : memref<128x128xbf16, #tpu.memory_space<vmem>>, vector<128x128xbf16>
    tpu.vector_store %arg3[%c0_5, %c0_6], %8 {strides = array<i32>} : memref<128x128xbf16, #tpu.memory_space<vmem>>, vector<128x128xbf16>,
    return
  }
  func.func @transform_0(%arg0: i32) -> (i32, i32) {
    %c0_i32 = arith.constant 0 : i32
    %c0_i32_0 = arith.constant 0 : i32
    return %arg0, %c0_i32 : i32, i32
  }
  func.func @transform_1(%arg0: i32) -> (i32, i32) {
    %c0_i32 = arith.constant 0 : i32
    %c0_i32_0 = arith.constant 0 : i32
    %c0_i32_1 = arith.constant 0 : i32
    return %c0_i32, %c0_i32_0 : i32, i32
  }
  func.func @transform_2(%arg0: i32) -> (i32, i32) {
    %c0_i32 = arith.constant 0 : i32
    %c0_i32_0 = arith.constant 0 : i32
    return %arg0, %c0_i32 : i32, i32
  }
}

module attributes {stable_mosaic.version = 11 : i64} {
  func.func @_mm_stats_kernel(%arg0: i32, %arg1: memref<128x1152xbf16, #tpu.memory_space<vmem>>, %arg2: memref<1152x128xbf16, #tpu.memory_space<vmem>>, %arg3: memref<128x128xbf16, #tpu.memory_space<vmem>>, %arg4: memref<8x128xf32, #tpu.memory_space<vmem>>) attributes {dimension_semantics = [#tpu.dimension_semantics<arbitrary>], iteration_bounds = array<i64: 1>, scalar_prefetch = 0 : i64, scratch_operands = 0 : i64, tpu.core_type = #tpu.core_type<tc>, window_params = [{transform_indices = @transform_0, window_bounds = array<i64: 128, 1152>}, {pipeline_mode = #tpu.pipeline_mode<synchronous>, transform_indices = @transform_1, window_bounds = array<i64: 1152, 128>}, {transform_indices = @transform_2, window_bounds = array<i64: 128, 128>}, {pipeline_mode = #tpu.pipeline_mode<synchronous>, transform_indices = @transform_3, window_bounds = array<i64: 8, 128>}]} {
    %c0 = arith.constant 0 : index
    %c0_0 = arith.constant 0 : index
    %0 = vector.load %arg1[%c0, %c0_0] : memref<128x1152xbf16, #tpu.memory_space<vmem>>, vector<128x1152xbf16>
    %c0_1 = arith.constant 0 : index
    %c0_2 = arith.constant 0 : index
    %1 = vector.load %arg2[%c0_1, %c0_2] : memref<1152x128xbf16, #tpu.memory_space<vmem>>, vector<1152x128xbf16>
    %cst = arith.constant dense<0.000000e+00> : vector<128x128xf32>
    %2 = tpu.matmul %0, %1, %cst {dimension_numbers = #tpu.dot_dimension_numbers<[1], [0], [0], [1], [0, 0, 1, 1], [], []>} : vector<128x1152xbf16>, vector<1152x128xbf16>, vector<128x128xf32> -> vector<128x128xf32>
    %3 = arith.truncf %2 : vector<128x128xf32> to vector<128x128xbf16>
    %c0_3 = arith.constant 0 : index
    %c0_4 = arith.constant 0 : index
    %4 = vector.load %arg3[%c0_3, %c0_4] : memref<128x128xbf16, #tpu.memory_space<vmem>>, vector<128x128xbf16>
    tpu.vector_store %arg3[%c0_3, %c0_4], %3 {strides = array<i32>} : memref<128x128xbf16, #tpu.memory_space<vmem>>, vector<128x128xbf16>,
    %c0_i32 = arith.constant 0 : i32
    %5 = arith.cmpi eq, %arg0, %c0_i32 : i32
    %6 = arith.extui %5 : i1 to i32
    %c0_i32_5 = arith.constant 0 : i32
    %7 = arith.cmpi ne, %6, %c0_i32_5 : i32
    scf.if %7 {
      %cst_15 = arith.constant 0.000000e+00 : f32
      %19 = vector.broadcast %cst_15 : f32 to vector<8x128xf32>
      %c0_16 = arith.constant 0 : index
      %c0_17 = arith.constant 0 : index
      %20 = vector.load %arg4[%c0_16, %c0_17] : memref<8x128xf32, #tpu.memory_space<vmem>>, vector<8x128xf32>
      tpu.vector_store %arg4[%c0_16, %c0_17], %19 {strides = array<i32>} : memref<8x128xf32, #tpu.memory_space<vmem>>, vector<8x128xf32>,
    } else {
    }
    %c0_6 = arith.constant 0 : index
    %c0_7 = arith.constant 0 : index
    %8 = vector.load %arg4[%c0_6, %c0_7] : memref<8x128xf32, #tpu.memory_space<vmem>>, vector<1x128xf32>
    %cst_8 = arith.constant dense<0.000000e+00> : vector<128xf32>
    %9 = vector.multi_reduction <add>, %2, %cst_8 [0] : vector<128x128xf32> to vector<128xf32>
    %10 = vector.shape_cast %9 : vector<128xf32> to vector<1x128xf32>
    %11 = arith.addf %8, %10 : vector<1x128xf32>
    %c0_9 = arith.constant 0 : index
    %c0_10 = arith.constant 0 : index
    %12 = vector.load %arg4[%c0_9, %c0_10] : memref<8x128xf32, #tpu.memory_space<vmem>>, vector<1x128xf32>
    tpu.vector_store %arg4[%c0_9, %c0_10], %11 {strides = array<i32>} : memref<8x128xf32, #tpu.memory_space<vmem>>, vector<1x128xf32>,
    %c1 = arith.constant 1 : index
    %c0_11 = arith.constant 0 : index
    %13 = vector.load %arg4[%c1, %c0_11] : memref<8x128xf32, #tpu.memory_space<vmem>>, vector<1x128xf32>
    %14 = arith.mulf %2, %2 : vector<128x128xf32>
    %cst_12 = arith.constant dense<0.000000e+00> : vector<128xf32>
    %15 = vector.multi_reduction <add>, %14, %cst_12 [0] : vector<128x128xf32> to vector<128xf32>
    %16 = vector.shape_cast %15 : vector<128xf32> to vector<1x128xf32>
    %17 = arith.addf %13, %16 : vector<1x128xf32>
    %c1_13 = arith.constant 1 : index
    %c0_14 = arith.constant 0 : index
    %18 = vector.load %arg4[%c1_13, %c0_14] : memref<8x128xf32, #tpu.memory_space<vmem>>, vector<1x128xf32>
    tpu.vector_store %arg4[%c1_13, %c0_14], %17 {strides = array<i32>} : memref<8x128xf32, #tpu.memory_space<vmem>>, vector<1x128xf32>,
    return
  }
  func.func @transform_0(%arg0: i32) -> (i32, i32) {
    %c0_i32 = arith.constant 0 : i32
    %c0_i32_0 = arith.constant 0 : i32
    return %arg0, %c0_i32 : i32, i32
  }
  func.func @transform_1(%arg0: i32) -> (i32, i32) {
    %c0_i32 = arith.constant 0 : i32
    %c0_i32_0 = arith.constant 0 : i32
    %c0_i32_1 = arith.constant 0 : i32
    return %c0_i32, %c0_i32_0 : i32, i32
  }
  func.func @transform_2(%arg0: i32) -> (i32, i32) {
    %c0_i32 = arith.constant 0 : i32
    %c0_i32_0 = arith.constant 0 : i32
    return %arg0, %c0_i32 : i32, i32
  }
  func.func @transform_3(%arg0: i32) -> (i32, i32) {
    %c0_i32 = arith.constant 0 : i32
    %c0_i32_0 = arith.constant 0 : i32
    %c0_i32_1 = arith.constant 0 : i32
    return %c0_i32, %c0_i32_0 : i32, i32
  }
}

module attributes {stable_mosaic.version = 11 : i64} {
  func.func @_bn_lrelu_kernel(%arg0: i32, %arg1: memref<128x128xbf16, #tpu.memory_space<vmem>>, %arg2: memref<8x128xf32, #tpu.memory_space<vmem>>, %arg3: memref<1x128xf32, #tpu.memory_space<vmem>>, %arg4: memref<1x128xf32, #tpu.memory_space<vmem>>, %arg5: memref<128x128xbf16, #tpu.memory_space<vmem>>) attributes {dimension_semantics = [#tpu.dimension_semantics<parallel>], iteration_bounds = array<i64: 1>, scalar_prefetch = 0 : i64, scratch_operands = 0 : i64, tpu.core_type = #tpu.core_type<tc>, window_params = [{transform_indices = @transform_0, window_bounds = array<i64: 128, 128>}, {pipeline_mode = #tpu.pipeline_mode<synchronous>, transform_indices = @transform_1, window_bounds = array<i64: 8, 128>}, {pipeline_mode = #tpu.pipeline_mode<synchronous>, transform_indices = @transform_2, window_bounds = array<i64: 1, 128>}, {pipeline_mode = #tpu.pipeline_mode<synchronous>, transform_indices = @transform_3, window_bounds = array<i64: 1, 128>}, {transform_indices = @transform_4, window_bounds = array<i64: 128, 128>}]} {
    %c0 = arith.constant 0 : index
    %c0_0 = arith.constant 0 : index
    %0 = vector.load %arg1[%c0, %c0_0] : memref<128x128xbf16, #tpu.memory_space<vmem>>, vector<128x128xbf16>
    %1 = arith.extf %0 : vector<128x128xbf16> to vector<128x128xf32>
    %c0_1 = arith.constant 0 : index
    %c0_2 = arith.constant 0 : index
    %2 = vector.load %arg2[%c0_1, %c0_2] : memref<8x128xf32, #tpu.memory_space<vmem>>, vector<1x128xf32>
    %cst = arith.constant 7.812500e-03 : f32
    %3 = vector.broadcast %cst : f32 to vector<1x128xf32>
    %4 = arith.mulf %2, %3 : vector<1x128xf32>
    %c1 = arith.constant 1 : index
    %c0_3 = arith.constant 0 : index
    %5 = vector.load %arg2[%c1, %c0_3] : memref<8x128xf32, #tpu.memory_space<vmem>>, vector<1x128xf32>
    %cst_4 = arith.constant 7.812500e-03 : f32
    %6 = vector.broadcast %cst_4 : f32 to vector<1x128xf32>
    %7 = arith.mulf %5, %6 : vector<1x128xf32>
    %8 = arith.mulf %4, %4 : vector<1x128xf32>
    %9 = arith.subf %7, %8 : vector<1x128xf32>
    %cst_5 = arith.constant 0.000000e+00 : f32
    %10 = vector.broadcast %cst_5 : f32 to vector<1x128xf32>
    %11 = arith.maximumf %9, %10 : vector<1x128xf32>
    %cst_6 = arith.constant 9.99999974E-6 : f32
    %12 = vector.broadcast %cst_6 : f32 to vector<1x128xf32>
    %13 = arith.addf %11, %12 : vector<1x128xf32>
    %14 = math.rsqrt %13 : vector<1x128xf32>
    %c0_7 = arith.constant 0 : index
    %c0_8 = arith.constant 0 : index
    %15 = vector.load %arg3[%c0_7, %c0_8] : memref<1x128xf32, #tpu.memory_space<vmem>>, vector<1x128xf32>
    %16 = arith.mulf %14, %15 : vector<1x128xf32>
    %17 = vector.broadcast %4 : vector<1x128xf32> to vector<128x128xf32>
    %18 = arith.subf %1, %17 : vector<128x128xf32>
    %19 = vector.broadcast %16 : vector<1x128xf32> to vector<128x128xf32>
    %20 = arith.mulf %18, %19 : vector<128x128xf32>
    %c0_9 = arith.constant 0 : index
    %c0_10 = arith.constant 0 : index
    %21 = vector.load %arg4[%c0_9, %c0_10] : memref<1x128xf32, #tpu.memory_space<vmem>>, vector<1x128xf32>
    %22 = vector.broadcast %21 : vector<1x128xf32> to vector<128x128xf32>
    %23 = arith.addf %20, %22 : vector<128x128xf32>
    %cst_11 = arith.constant 0.000000e+00 : f32
    %24 = vector.broadcast %cst_11 : f32 to vector<128x128xf32>
    %25 = arith.cmpf oge, %23, %24 : vector<128x128xf32>
    %cst_12 = arith.constant 2.000000e-01 : f32
    %26 = vector.broadcast %cst_12 : f32 to vector<128x128xf32>
    %27 = arith.mulf %26, %23 : vector<128x128xf32>
    %28 = arith.select %25, %23, %27 : vector<128x128xi1>, vector<128x128xf32>
    %29 = arith.truncf %28 : vector<128x128xf32> to vector<128x128xbf16>
    %c0_13 = arith.constant 0 : index
    %c0_14 = arith.constant 0 : index
    %30 = vector.load %arg5[%c0_13, %c0_14] : memref<128x128xbf16, #tpu.memory_space<vmem>>, vector<128x128xbf16>
    tpu.vector_store %arg5[%c0_13, %c0_14], %29 {strides = array<i32>} : memref<128x128xbf16, #tpu.memory_space<vmem>>, vector<128x128xbf16>,
    return
  }
  func.func @transform_0(%arg0: i32) -> (i32, i32) {
    %c0_i32 = arith.constant 0 : i32
    %c0_i32_0 = arith.constant 0 : i32
    return %arg0, %c0_i32 : i32, i32
  }
  func.func @transform_1(%arg0: i32) -> (i32, i32) {
    %c0_i32 = arith.constant 0 : i32
    %c0_i32_0 = arith.constant 0 : i32
    %c0_i32_1 = arith.constant 0 : i32
    return %c0_i32, %c0_i32_0 : i32, i32
  }
  func.func @transform_2(%arg0: i32) -> (i32, i32) {
    %c0_i32 = arith.constant 0 : i32
    %c0_i32_0 = arith.constant 0 : i32
    %c0_i32_1 = arith.constant 0 : i32
    return %c0_i32, %c0_i32_0 : i32, i32
  }
  func.func @transform_3(%arg0: i32) -> (i32, i32) {
    %c0_i32 = arith.constant 0 : i32
    %c0_i32_0 = arith.constant 0 : i32
    %c0_i32_1 = arith.constant 0 : i32
    return %c0_i32, %c0_i32_0 : i32, i32
  }
  func.func @transform_4(%arg0: i32) -> (i32, i32) {
    %c0_i32 = arith.constant 0 : i32
    %c0_i32_0 = arith.constant 0 : i32
    return %arg0, %c0_i32 : i32, i32
  }
}

module attributes {stable_mosaic.version = 11 : i64} {
  func.func @_mm_stats_kernel(%arg0: i32, %arg1: memref<32x2048xbf16, #tpu.memory_space<vmem>>, %arg2: memref<2048x128xbf16, #tpu.memory_space<vmem>>, %arg3: memref<32x128xbf16, #tpu.memory_space<vmem>>, %arg4: memref<8x128xf32, #tpu.memory_space<vmem>>) attributes {dimension_semantics = [#tpu.dimension_semantics<arbitrary>], iteration_bounds = array<i64: 1>, scalar_prefetch = 0 : i64, scratch_operands = 0 : i64, tpu.core_type = #tpu.core_type<tc>, window_params = [{transform_indices = @transform_0, window_bounds = array<i64: 32, 2048>}, {pipeline_mode = #tpu.pipeline_mode<synchronous>, transform_indices = @transform_1, window_bounds = array<i64: 2048, 128>}, {transform_indices = @transform_2, window_bounds = array<i64: 32, 128>}, {pipeline_mode = #tpu.pipeline_mode<synchronous>, transform_indices = @transform_3, window_bounds = array<i64: 8, 128>}]} {
    %c0 = arith.constant 0 : index
    %c0_0 = arith.constant 0 : index
    %0 = vector.load %arg1[%c0, %c0_0] : memref<32x2048xbf16, #tpu.memory_space<vmem>>, vector<32x2048xbf16>
    %c0_1 = arith.constant 0 : index
    %c0_2 = arith.constant 0 : index
    %1 = vector.load %arg2[%c0_1, %c0_2] : memref<2048x128xbf16, #tpu.memory_space<vmem>>, vector<2048x128xbf16>
    %cst = arith.constant dense<0.000000e+00> : vector<32x128xf32>
    %2 = tpu.matmul %0, %1, %cst {dimension_numbers = #tpu.dot_dimension_numbers<[1], [0], [0], [1], [0, 0, 1, 1], [], []>} : vector<32x2048xbf16>, vector<2048x128xbf16>, vector<32x128xf32> -> vector<32x128xf32>
    %3 = arith.truncf %2 : vector<32x128xf32> to vector<32x128xbf16>
    %c0_3 = arith.constant 0 : index
    %c0_4 = arith.constant 0 : index
    %4 = vector.load %arg3[%c0_3, %c0_4] : memref<32x128xbf16, #tpu.memory_space<vmem>>, vector<32x128xbf16>
    tpu.vector_store %arg3[%c0_3, %c0_4], %3 {strides = array<i32>} : memref<32x128xbf16, #tpu.memory_space<vmem>>, vector<32x128xbf16>,
    %c0_i32 = arith.constant 0 : i32
    %5 = arith.cmpi eq, %arg0, %c0_i32 : i32
    %6 = arith.extui %5 : i1 to i32
    %c0_i32_5 = arith.constant 0 : i32
    %7 = arith.cmpi ne, %6, %c0_i32_5 : i32
    scf.if %7 {
      %cst_15 = arith.constant 0.000000e+00 : f32
      %19 = vector.broadcast %cst_15 : f32 to vector<8x128xf32>
      %c0_16 = arith.constant 0 : index
      %c0_17 = arith.constant 0 : index
      %20 = vector.load %arg4[%c0_16, %c0_17] : memref<8x128xf32, #tpu.memory_space<vmem>>, vector<8x128xf32>
      tpu.vector_store %arg4[%c0_16, %c0_17], %19 {strides = array<i32>} : memref<8x128xf32, #tpu.memory_space<vmem>>, vector<8x128xf32>,
    } else {
    }
    %c0_6 = arith.constant 0 : index
    %c0_7 = arith.constant 0 : index
    %8 = vector.load %arg4[%c0_6, %c0_7] : memref<8x128xf32, #tpu.memory_space<vmem>>, vector<1x128xf32>
    %cst_8 = arith.constant dense<0.000000e+00> : vector<128xf32>
    %9 = vector.multi_reduction <add>, %2, %cst_8 [0] : vector<32x128xf32> to vector<128xf32>
    %10 = vector.shape_cast %9 : vector<128xf32> to vector<1x128xf32>
    %11 = arith.addf %8, %10 : vector<1x128xf32>
    %c0_9 = arith.constant 0 : index
    %c0_10 = arith.constant 0 : index
    %12 = vector.load %arg4[%c0_9, %c0_10] : memref<8x128xf32, #tpu.memory_space<vmem>>, vector<1x128xf32>
    tpu.vector_store %arg4[%c0_9, %c0_10], %11 {strides = array<i32>} : memref<8x128xf32, #tpu.memory_space<vmem>>, vector<1x128xf32>,
    %c1 = arith.constant 1 : index
    %c0_11 = arith.constant 0 : index
    %13 = vector.load %arg4[%c1, %c0_11] : memref<8x128xf32, #tpu.memory_space<vmem>>, vector<1x128xf32>
    %14 = arith.mulf %2, %2 : vector<32x128xf32>
    %cst_12 = arith.constant dense<0.000000e+00> : vector<128xf32>
    %15 = vector.multi_reduction <add>, %14, %cst_12 [0] : vector<32x128xf32> to vector<128xf32>
    %16 = vector.shape_cast %15 : vector<128xf32> to vector<1x128xf32>
    %17 = arith.addf %13, %16 : vector<1x128xf32>
    %c1_13 = arith.constant 1 : index
    %c0_14 = arith.constant 0 : index
    %18 = vector.load %arg4[%c1_13, %c0_14] : memref<8x128xf32, #tpu.memory_space<vmem>>, vector<1x128xf32>
    tpu.vector_store %arg4[%c1_13, %c0_14], %17 {strides = array<i32>} : memref<8x128xf32, #tpu.memory_space<vmem>>, vector<1x128xf32>,
    return
  }
  func.func @transform_0(%arg0: i32) -> (i32, i32) {
    %c0_i32 = arith.constant 0 : i32
    %c0_i32_0 = arith.constant 0 : i32
    return %arg0, %c0_i32 : i32, i32
  }
  func.func @transform_1(%arg0: i32) -> (i32, i32) {
    %c0_i32 = arith.constant 0 : i32
    %c0_i32_0 = arith.constant 0 : i32
    %c0_i32_1 = arith.constant 0 : i32
    return %c0_i32, %c0_i32_0 : i32, i32
  }
  func.func @transform_2(%arg0: i32) -> (i32, i32) {
    %c0_i32 = arith.constant 0 : i32
    %c0_i32_0 = arith.constant 0 : i32
    return %arg0, %c0_i32 : i32, i32
  }
  func.func @transform_3(%arg0: i32) -> (i32, i32) {
    %c0_i32 = arith.constant 0 : i32
    %c0_i32_0 = arith.constant 0 : i32
    %c0_i32_1 = arith.constant 0 : i32
    return %c0_i32, %c0_i32_0 : i32, i32
  }
}

module attributes {stable_mosaic.version = 11 : i64} {
  func.func @_bn_lrelu_kernel(%arg0: i32, %arg1: memref<32x128xbf16, #tpu.memory_space<vmem>>, %arg2: memref<8x128xf32, #tpu.memory_space<vmem>>, %arg3: memref<1x128xf32, #tpu.memory_space<vmem>>, %arg4: memref<1x128xf32, #tpu.memory_space<vmem>>, %arg5: memref<32x128xbf16, #tpu.memory_space<vmem>>) attributes {dimension_semantics = [#tpu.dimension_semantics<parallel>], iteration_bounds = array<i64: 1>, scalar_prefetch = 0 : i64, scratch_operands = 0 : i64, tpu.core_type = #tpu.core_type<tc>, window_params = [{transform_indices = @transform_0, window_bounds = array<i64: 32, 128>}, {pipeline_mode = #tpu.pipeline_mode<synchronous>, transform_indices = @transform_1, window_bounds = array<i64: 8, 128>}, {pipeline_mode = #tpu.pipeline_mode<synchronous>, transform_indices = @transform_2, window_bounds = array<i64: 1, 128>}, {pipeline_mode = #tpu.pipeline_mode<synchronous>, transform_indices = @transform_3, window_bounds = array<i64: 1, 128>}, {transform_indices = @transform_4, window_bounds = array<i64: 32, 128>}]} {
    %c0 = arith.constant 0 : index
    %c0_0 = arith.constant 0 : index
    %0 = vector.load %arg1[%c0, %c0_0] : memref<32x128xbf16, #tpu.memory_space<vmem>>, vector<32x128xbf16>
    %1 = arith.extf %0 : vector<32x128xbf16> to vector<32x128xf32>
    %c0_1 = arith.constant 0 : index
    %c0_2 = arith.constant 0 : index
    %2 = vector.load %arg2[%c0_1, %c0_2] : memref<8x128xf32, #tpu.memory_space<vmem>>, vector<1x128xf32>
    %cst = arith.constant 3.125000e-02 : f32
    %3 = vector.broadcast %cst : f32 to vector<1x128xf32>
    %4 = arith.mulf %2, %3 : vector<1x128xf32>
    %c1 = arith.constant 1 : index
    %c0_3 = arith.constant 0 : index
    %5 = vector.load %arg2[%c1, %c0_3] : memref<8x128xf32, #tpu.memory_space<vmem>>, vector<1x128xf32>
    %cst_4 = arith.constant 3.125000e-02 : f32
    %6 = vector.broadcast %cst_4 : f32 to vector<1x128xf32>
    %7 = arith.mulf %5, %6 : vector<1x128xf32>
    %8 = arith.mulf %4, %4 : vector<1x128xf32>
    %9 = arith.subf %7, %8 : vector<1x128xf32>
    %cst_5 = arith.constant 0.000000e+00 : f32
    %10 = vector.broadcast %cst_5 : f32 to vector<1x128xf32>
    %11 = arith.maximumf %9, %10 : vector<1x128xf32>
    %cst_6 = arith.constant 9.99999974E-6 : f32
    %12 = vector.broadcast %cst_6 : f32 to vector<1x128xf32>
    %13 = arith.addf %11, %12 : vector<1x128xf32>
    %14 = math.rsqrt %13 : vector<1x128xf32>
    %c0_7 = arith.constant 0 : index
    %c0_8 = arith.constant 0 : index
    %15 = vector.load %arg3[%c0_7, %c0_8] : memref<1x128xf32, #tpu.memory_space<vmem>>, vector<1x128xf32>
    %16 = arith.mulf %14, %15 : vector<1x128xf32>
    %17 = vector.broadcast %4 : vector<1x128xf32> to vector<32x128xf32>
    %18 = arith.subf %1, %17 : vector<32x128xf32>
    %19 = vector.broadcast %16 : vector<1x128xf32> to vector<32x128xf32>
    %20 = arith.mulf %18, %19 : vector<32x128xf32>
    %c0_9 = arith.constant 0 : index
    %c0_10 = arith.constant 0 : index
    %21 = vector.load %arg4[%c0_9, %c0_10] : memref<1x128xf32, #tpu.memory_space<vmem>>, vector<1x128xf32>
    %22 = vector.broadcast %21 : vector<1x128xf32> to vector<32x128xf32>
    %23 = arith.addf %20, %22 : vector<32x128xf32>
    %cst_11 = arith.constant 0.000000e+00 : f32
    %24 = vector.broadcast %cst_11 : f32 to vector<32x128xf32>
    %25 = arith.cmpf oge, %23, %24 : vector<32x128xf32>
    %cst_12 = arith.constant 2.000000e-01 : f32
    %26 = vector.broadcast %cst_12 : f32 to vector<32x128xf32>
    %27 = arith.mulf %26, %23 : vector<32x128xf32>
    %28 = arith.select %25, %23, %27 : vector<32x128xi1>, vector<32x128xf32>
    %29 = arith.truncf %28 : vector<32x128xf32> to vector<32x128xbf16>
    %c0_13 = arith.constant 0 : index
    %c0_14 = arith.constant 0 : index
    %30 = vector.load %arg5[%c0_13, %c0_14] : memref<32x128xbf16, #tpu.memory_space<vmem>>, vector<32x128xbf16>
    tpu.vector_store %arg5[%c0_13, %c0_14], %29 {strides = array<i32>} : memref<32x128xbf16, #tpu.memory_space<vmem>>, vector<32x128xbf16>,
    return
  }
  func.func @transform_0(%arg0: i32) -> (i32, i32) {
    %c0_i32 = arith.constant 0 : i32
    %c0_i32_0 = arith.constant 0 : i32
    return %arg0, %c0_i32 : i32, i32
  }
  func.func @transform_1(%arg0: i32) -> (i32, i32) {
    %c0_i32 = arith.constant 0 : i32
    %c0_i32_0 = arith.constant 0 : i32
    %c0_i32_1 = arith.constant 0 : i32
    return %c0_i32, %c0_i32_0 : i32, i32
  }
  func.func @transform_2(%arg0: i32) -> (i32, i32) {
    %c0_i32 = arith.constant 0 : i32
    %c0_i32_0 = arith.constant 0 : i32
    %c0_i32_1 = arith.constant 0 : i32
    return %c0_i32, %c0_i32_0 : i32, i32
  }
  func.func @transform_3(%arg0: i32) -> (i32, i32) {
    %c0_i32 = arith.constant 0 : i32
    %c0_i32_0 = arith.constant 0 : i32
    %c0_i32_1 = arith.constant 0 : i32
    return %c0_i32, %c0_i32_0 : i32, i32
  }
  func.func @transform_4(%arg0: i32) -> (i32, i32) {
    %c0_i32 = arith.constant 0 : i32
    %c0_i32_0 = arith.constant 0 : i32
    return %arg0, %c0_i32 : i32, i32
  }
}

module attributes {stable_mosaic.version = 11 : i64} {
  func.func @_final_mean_kernel(%arg0: memref<8x2048xbf16, #tpu.memory_space<vmem>>, %arg1: memref<1x2048xbf16, #tpu.memory_space<vmem>>, %arg2: memref<1x128xf32, #tpu.memory_space<vmem>>) attributes {dimension_semantics = [], scalar_prefetch = 0 : i64, scratch_operands = 0 : i64, tpu.core_type = #tpu.core_type<tc>} {
    %c0 = arith.constant 0 : index
    %c0_0 = arith.constant 0 : index
    %0 = vector.load %arg0[%c0, %c0_0] : memref<8x2048xbf16, #tpu.memory_space<vmem>>, vector<8x2048xbf16>
    %1 = arith.extf %0 : vector<8x2048xbf16> to vector<8x2048xf32>
    %c0_1 = arith.constant 0 : index
    %c0_2 = arith.constant 0 : index
    %2 = vector.load %arg1[%c0_1, %c0_2] : memref<1x2048xbf16, #tpu.memory_space<vmem>>, vector<1x2048xbf16>
    %3 = arith.extf %2 : vector<1x2048xbf16> to vector<1x2048xf32>
    %4 = vector.broadcast %3 : vector<1x2048xf32> to vector<8x2048xf32>
    %5 = arith.mulf %1, %4 : vector<8x2048xf32>
    %cst = arith.constant dense<0.000000e+00> : vector<2048xf32>
    %6 = vector.multi_reduction <add>, %5, %cst [0] : vector<8x2048xf32> to vector<2048xf32>
    %7 = vector.shape_cast %6 : vector<2048xf32> to vector<1x2048xf32>
    %cst_3 = arith.constant dense<0.000000e+00> : vector<1xf32>
    %8 = vector.multi_reduction <add>, %7, %cst_3 [1] : vector<1x2048xf32> to vector<1xf32>
    %9 = vector.shape_cast %8 : vector<1xf32> to vector<1x1xf32>
    %cst_4 = arith.constant 5.000000e-01 : f32
    %10 = vector.broadcast %cst_4 : f32 to vector<1x1xf32>
    %11 = arith.mulf %9, %10 : vector<1x1xf32>
    %12 = vector.shape_cast %11 : vector<1x1xf32> to vector<1x1xf32>
    %13 = vector.broadcast %12 : vector<1x1xf32> to vector<1x128xf32>
    %c0_5 = arith.constant 0 : index
    %c0_6 = arith.constant 0 : index
    %14 = vector.load %arg2[%c0_5, %c0_6] : memref<1x128xf32, #tpu.memory_space<vmem>>, vector<1x128xf32>
    tpu.vector_store %arg2[%c0_5, %c0_6], %13 {strides = array<i32>} : memref<1x128xf32, #tpu.memory_space<vmem>>, vector<1x128xf32>,
    return
  }
}

</mosaic_0001>

<llo_original>
// kernel: dcgan_d_forward.7
$region0: #{dcgan_d_forward.7}
  #allocation0 [shape = 'u32[]', space=smem, size = 0x4, offset = 0x4, fixed_abs, tag = 'smem constant byte address 0x4 - core index']
  #allocation1 [shape = 'u32[144,128]{1,0:T(1,128)}', space=vmem, size = 0x12000, scoped, tag = 'internal scratch']
  %s0 = inlined_call_operand.vmem [shape: bf16[8,8], index: 0, kind: input, shape index: {}]
  %s1 = inlined_call_operand.vmem [shape: bf16[8,256], index: 1, kind: input, shape index: {}]
  %s2 = inlined_call_operand.vmem [shape: f32[1,256], index: 2, kind: input, shape index: {}]
  %s3 = inlined_call_operand.vmem [shape: bf16[8,256], index: 3, kind: output, shape index: {}]
  %s4 = sld [smem:[#allocation0]]
  $region22: #{dcgan_d_forward.7} parent=0
    _
  %s6 = ssub.s32 1, %s4
  %s7 = scalar_select 0, %s6, %s4
  // Predicated region
  $region2: #{dcgan_d_forward.7} parent=0 // pred_check
    _
  $region3: #{dcgan_d_forward.7} parent=0 // pred_check_branch
    %9 = sbr.rel (0) target = $region5
  $region4: #{dcgan_d_forward.7} parent=0 // pred_region
    _
  $region5: #{dcgan_d_forward.7} parent=0 // pred_fallthru
    _
  // Predicated region
  $region6: #{dcgan_d_forward.7} parent=0 // pred_check
    _
  $region7: #{dcgan_d_forward.7} parent=0 // pred_check_branch
    %11 = sbr.rel (0) target = $region9
  $region8: #{dcgan_d_forward.7} parent=0 // pred_region
    _
  $region9: #{dcgan_d_forward.7} parent=0 // pred_fallthru
    _
  // Predicated region
  $region10: #{dcgan_d_forward.7} parent=0 // pred_check
    _
  $region11: #{dcgan_d_forward.7} parent=0 // pred_check_branch
    %13 = sbr.rel (0) target = $region13
  $region12: #{dcgan_d_forward.7} parent=0 // pred_region
    _
  $region13: #{dcgan_d_forward.7} parent=0 // pred_fallthru
    _
  %v15 = vld [vmem:[%s0] sm:$0xf]
  %v16 = vld [vmem:[%s1] sm:$0xff]
  %v17 = vld [vmem:[%s2] sm:$0x3]
  %v19 = vlaneseq
  %v20 = vshrl.u32 %v19, 7
  %v21 = vsub.s32 0, %v20
  %v22 = vrot.slane %v17, %v21
  %v23 = vlaneseq
  %v24 = vshrl.u32 %v23, 7
  %v25 = vsub.s32 1, %v24
  %v26 = vrot.slane %v17, %v25
  %v30 = vunpack.c.l.b16 %v16
  %v31 = vunpack.c.h.b16 %v16
  %v32 = vpack.c.b16 %v30, %v30
  %v33 = vpack.c.b16 %v31, %v31
  %vm34 = vcmask 64512
  %v36 = vsel %vm34, %v15, 0
  %vm38 = vcmask 1043456
  %v40 = vsel %vm38, %v32, 0
  %v43 = vsel %vm38, %v33, 0
  %45 = vmatprep.subr.bf16.mxu0 %v43
  %46 = vmatpush1.bf16.msra.mxu0 %v40
  %47 = vmatprep.subr.bf16.mxu0 0
  %48 = vmatpush1.bf16.msra.mxu0 0
  %49 = vmatprep.subr.bf16.mxu0 0
  %50 = vmatpush1.bf16.msra.mxu0 0
  %51 = vmatprep.subr.bf16.mxu0 0
  %52 = vmatpush1.bf16.msra.mxu0 0
  %53 = vmatprep.subr.bf16.mxu0 0
  %54 = vmatpush1.bf16.msra.mxu0 0
  %55 = vmatprep.subr.bf16.mxu0 0
  %56 = vmatpush1.bf16.msra.mxu0 0
  %57 = vmatprep.subr.bf16.mxu0 0
  %58 = vmatpush1.bf16.msra.mxu0 0
  %59 = vmatprep.subr.bf16.mxu0 0
  %60 = vmatpush1.bf16.msra.mxu0 0
  %61 = vmatprep.subr.bf16.mxu0 0
  %62 = vmatpush1.bf16.msra.mxu0 0
  %63 = vmatprep.subr.bf16.mxu0 0
  %64 = vmatpush1.bf16.msra.mxu0 0
  %65 = vmatprep.subr.bf16.mxu0 0
  %66 = vmatpush1.bf16.msra.mxu0 0
  %67 = vmatprep.subr.bf16.mxu0 0
  %68 = vmatpush1.bf16.msra.mxu0 0
  %69 = vmatprep.subr.bf16.mxu0 0
  %70 = vmatpush1.bf16.msra.mxu0 0
  %71 = vmatprep.subr.bf16.mxu0 0
  %72 = vmatpush1.bf16.msra.mxu0 0
  %73 = vmatprep.subr.bf16.mxu0 0
  %74 = vmatpush1.bf16.msra.mxu0 0
  %75 = vmatprep.subr.bf16.mxu0 0
  %76 = vmatpush1.bf16.msra.mxu0 0
  %77 = vmatprep.mubr.bf16.mxu0 0
  %78 = vmatmul.mubr.bf16.gmra.mrb[0].mxu0 %v36
  %v79 = vpop.f32.mrb[0].mxu0
  %v80 = vadd.f32 %v22, %v79
  %v81 = vpop.f32.mrb[0].mxu0
  %v82 = vadd.f32 %v26, %v81
  %v83 = vpop.f32.mrb[0].mxu0
  %v84 = vpop.f32.mrb[0].mxu0
  %85 = vdwg.mxu0
  %v86 = vpack.c.bf16 %v80, %v80
  %v87 = vpack.c.bf16 %v82, %v82
  %v90 = vunpack.c.l.b16 %v86
  %v91 = vunpack.c.l.b16 %v87
  %v92 = vpack.c.b16 %v91, %v90
  %94 = vst [vmem:[%s3] sm:$0xff] %v92
  // Predicated region
  $region14: #{dcgan_d_forward.7} parent=0 // pred_check
    _
  $region15: #{dcgan_d_forward.7} parent=0 // pred_check_branch
    %96 = sbr.rel (0) target = $region17
  $region16: #{dcgan_d_forward.7} parent=0 // pred_region
    _
  $region17: #{dcgan_d_forward.7} parent=0 // pred_fallthru
    _
  // Predicated region
  $region18: #{dcgan_d_forward.7} parent=0 // pred_check
    _
  $region19: #{dcgan_d_forward.7} parent=0 // pred_check_branch
    %98 = sbr.rel (0) target = $region21
  $region20: #{dcgan_d_forward.7} parent=0 // pred_region
    _
  $region21: #{dcgan_d_forward.7} parent=0 // pred_fallthru
    _

// kernel: dcgan_d_forward.8
$region0: #{dcgan_d_forward.8}
  #allocation0 [shape = 'u32[]', space=smem, size = 0x4, offset = 0x4, fixed_abs, tag = 'smem constant byte address 0x4 - core index']
  #allocation1 [shape = 'u32[144,128]{1,0:T(1,128)}', space=vmem, size = 0x12000, scoped, tag = 'internal scratch']
  %s0 = inlined_call_operand.vmem [shape: bf16[128,64], index: 0, kind: input, shape index: {}]
  %s1 = inlined_call_operand.vmem [shape: bf16[64,128], index: 1, kind: input, shape index: {}]
  %s2 = inlined_call_operand.vmem [shape: bf16[128,128], index: 2, kind: output, shape index: {}]
  %s3 = sld [smem:[#allocation0]]
  $region18: #{dcgan_d_forward.8} parent=0
    _
  %s5 = ssub.s32 1, %s3
  %s6 = scalar_select 0, %s5, %s3
  // Predicated region
  $region2: #{dcgan_d_forward.8} parent=0 // pred_check
    _
  $region3: #{dcgan_d_forward.8} parent=0 // pred_check_branch
    %8 = sbr.rel (0) target = $region5
  $region4: #{dcgan_d_forward.8} parent=0 // pred_region
    _
  $region5: #{dcgan_d_forward.8} parent=0 // pred_fallthru
    _
  // Predicated region
  $region6: #{dcgan_d_forward.8} parent=0 // pred_check
    _
  $region7: #{dcgan_d_forward.8} parent=0 // pred_check_branch
    %10 = sbr.rel (0) target = $region9
  $region8: #{dcgan_d_forward.8} parent=0 // pred_region
    _
  $region9: #{dcgan_d_forward.8} parent=0 // pred_fallthru
    _
  %v12 = vld [vmem:[%s0] sm:$0xf]
  %v13 = vld [vmem:[%s0 + $0x4] sm:$0xf]
  %v14 = vld [vmem:[%s0 + $0x8] sm:$0xf]
  %v15 = vld [vmem:[%s0 + $0xc] sm:$0xf]
  %v16 = vld [vmem:[%s0 + $0x10] sm:$0xf]
  %v17 = vld [vmem:[%s0 + $0x14] sm:$0xf]
  %v18 = vld [vmem:[%s0 + $0x18] sm:$0xf]
  %v19 = vld [vmem:[%s0 + $0x1c] sm:$0xf]
  %v20 = vld [vmem:[%s0 + $0x20] sm:$0xf]
  %v21 = vld [vmem:[%s0 + $0x24] sm:$0xf]
  %v22 = vld [vmem:[%s0 + $0x28] sm:$0xf]
  %v23 = vld [vmem:[%s0 + $0x2c] sm:$0xf]
  %v24 = vld [vmem:[%s0 + $0x30] sm:$0xf]
  %v25 = vld [vmem:[%s0 + $0x34] sm:$0xf]
  %v26 = vld [vmem:[%s0 + $0x38] sm:$0xf]
  %v27 = vld [vmem:[%s0 + $0x3c] sm:$0xf]
  %v28 = vld [vmem:[%s1] sm:$0xf]
  %v29 = vld [vmem:[%s1 + $0x4] sm:$0xf]
  %v30 = vld [vmem:[%s1 + $0x8] sm:$0xf]
  %v31 = vld [vmem:[%s1 + $0xc] sm:$0xf]
  %v32 = vld [vmem:[%s1 + $0x10] sm:$0xf]
  %v33 = vld [vmem:[%s1 + $0x14] sm:$0xf]
  %v34 = vld [vmem:[%s1 + $0x18] sm:$0xf]
  %v35 = vld [vmem:[%s1 + $0x1c] sm:$0xf]
  %v52 = vunpack.c.l.b16 %v12
  %v53 = vunpack.c.l.b16 %v13
  %v54 = vunpack.c.l.b16 %v14
  %v55 = vunpack.c.l.b16 %v15
  %v56 = vunpack.c.l.b16 %v16
  %v57 = vunpack.c.l.b16 %v17
  %v58 = vunpack.c.l.b16 %v18
  %v59 = vunpack.c.l.b16 %v19
  %v60 = vunpack.c.l.b16 %v20
  %v61 = vunpack.c.l.b16 %v21
  %v62 = vunpack.c.l.b16 %v22
  %v63 = vunpack.c.l.b16 %v23
  %v64 = vunpack.c.l.b16 %v24
  %v65 = vunpack.c.l.b16 %v25
  %v66 = vunpack.c.l.b16 %v26
  %v67 = vunpack.c.l.b16 %v27
  %v68 = vpack.c.b16 %v53, %v52
  %v69 = vpack.c.b16 %v55, %v54
  %v70 = vpack.c.b16 %v57, %v56
  %v71 = vpack.c.b16 %v59, %v58
  %v72 = vpack.c.b16 %v61, %v60
  %v73 = vpack.c.b16 %v63, %v62
  %v74 = vpack.c.b16 %v65, %v64
  %v75 = vpack.c.b16 %v67, %v66
  %v84 = vunpack.c.l.b16 %v28
  %v85 = vunpack.c.l.b16 %v29
  %v86 = vunpack.c.l.b16 %v30
  %v87 = vunpack.c.l.b16 %v31
  %v88 = vunpack.c.l.b16 %v32
  %v89 = vunpack.c.l.b16 %v33
  %v90 = vunpack.c.l.b16 %v34
  %v91 = vunpack.c.l.b16 %v35
  %v92 = vpack.c.b16 %v85, %v84
  %v93 = vpack.c.b16 %v87, %v86
  %v94 = vpack.c.b16 %v89, %v88
  %v95 = vpack.c.b16 %v91, %v90
  %vm100 = vcmask 523264
  %v102 = vsel %vm100, %v68, 0
  %v105 = vsel %vm100, %v69, 0
  %v108 = vsel %vm100, %v70, 0
  %v111 = vsel %vm100, %v71, 0
  %v114 = vsel %vm100, %v72, 0
  %v117 = vsel %vm100, %v73, 0
  %v120 = vsel %vm100, %v74, 0
  %v123 = vsel %vm100, %v75, 0
  %125 = vmatprep.subr.bf16.mxu0 0
  %126 = vmatpush1.bf16.msra.mxu0 %v92
  %127 = vmatprep.subr.bf16.mxu0 0
  %128 = vmatpush1.bf16.msra.mxu0 %v93
  %129 = vmatprep.subr.bf16.mxu0 0
  %130 = vmatpush1.bf16.msra.mxu0 %v94
  %131 = vmatprep.subr.bf16.mxu0 0
  %132 = vmatpush1.bf16.msra.mxu0 %v95
  %133 = vmatprep.subr.bf16.mxu0 0
  %134 = vmatpush1.bf16.msra.mxu0 0
  %135 = vmatprep.subr.bf16.mxu0 0
  %136 = vmatpush1.bf16.msra.mxu0 0
  %137 = vmatprep.subr.bf16.mxu0 0
  %138 = vmatpush1.bf16.msra.mxu0 0
  %139 = vmatprep.subr.bf16.mxu0 0
  %140 = vmatpush1.bf16.msra.mxu0 0
  %141 = vmatprep.subr.bf16.mxu0 0
  %142 = vmatpush1.bf16.msra.mxu0 0
  %143 = vmatprep.subr.bf16.mxu0 0
  %144 = vmatpush1.bf16.msra.mxu0 0
  %145 = vmatprep.subr.bf16.mxu0 0
  %146 = vmatpush1.bf16.msra.mxu0 0
  %147 = vmatprep.subr.bf16.mxu0 0
  %148 = vmatpush1.bf16.msra.mxu0 0
  %149 = vmatprep.subr.bf16.mxu0 0
  %150 = vmatpush1.bf16.msra.mxu0 0
  %151 = vmatprep.subr.bf16.mxu0 0
  %152 = vmatpush1.bf16.msra.mxu0 0
  %153 = vmatprep.subr.bf16.mxu0 0
  %154 = vmatpush1.bf16.msra.mxu0 0
  %155 = vmatprep.subr.bf16.mxu0 0
  %156 = vmatpush1.bf16.msra.mxu0 0
  %157 = vmatprep.mubr.bf16.mxu0 0
  %158 = vmatmul.mubr.bf16.gmra.mrb[0].mxu0 %v102
  %v159 = vpop.f32.mrb[0].mxu0
  %v160 = vadd.f32 0.0, %v159
  %v161 = vpop.f32.mrb[0].mxu0
  %v162 = vpop.f32.mrb[0].mxu0
  %v163 = vadd.f32 0.0, %v162
  %v164 = vpop.f32.mrb[0].mxu0
  %165 = vmatprep.mubr.bf16.mxu0 0
  %166 = vmatmul.mubr.bf16.gmra.mrb[0].mxu0 %v105
  %v167 = vpop.f32.mrb[0].mxu0
  %v168 = vadd.f32 0.0, %v167
  %v169 = vpop.f32.mrb[0].mxu0
  %v170 = vpop.f32.mrb[0].mxu0
  %v171 = vadd.f32 0.0, %v170
  %v172 = vpop.f32.mrb[0].mxu0
  %173 = vmatprep.mubr.bf16.mxu0 0
  %174 = vmatmul.mubr.bf16.gmra.mrb[0].mxu0 %v108
  %v175 = vpop.f32.mrb[0].mxu0
  %v176 = vadd.f32 0.0, %v175
  %v177 = vpop.f32.mrb[0].mxu0
  %v178 = vpop.f32.mrb[0].mxu0
  %v179 = vadd.f32 0.0, %v178
  %v180 = vpop.f32.mrb[0].mxu0
  %181 = vmatprep.mubr.bf16.mxu0 0
  %182 = vmatmul.mubr.bf16.gmra.mrb[0].mxu0 %v111
  %v183 = vpop.f32.mrb[0].mxu0
  %v184 = vadd.f32 0.0, %v183
  %v185 = vpop.f32.mrb[0].mxu0
  %v186 = vpop.f32.mrb[0].mxu0
  %v187 = vadd.f32 0.0, %v186
  %v188 = vpop.f32.mrb[0].mxu0
  %189 = vmatprep.mubr.bf16.mxu0 0
  %190 = vmatmul.mubr.bf16.gmra.mrb[0].mxu0 %v114
  %v191 = vpop.f32.mrb[0].mxu0
  %v192 = vadd.f32 0.0, %v191
  %v193 = vpop.f32.mrb[0].mxu0
  %v194 = vpop.f32.mrb[0].mxu0
  %v195 = vadd.f32 0.0, %v194
  %v196 = vpop.f32.mrb[0].mxu0
  %197 = vmatprep.mubr.bf16.mxu0 0
  %198 = vmatmul.mubr.bf16.gmra.mrb[0].mxu0 %v117
  %v199 = vpop.f32.mrb[0].mxu0
  %v200 = vadd.f32 0.0, %v199
  %v201 = vpop.f32.mrb[0].mxu0
  %v202 = vpop.f32.mrb[0].mxu0
  %v203 = vadd.f32 0.0, %v202
  %v204 = vpop.f32.mrb[0].mxu0
  %205 = vmatprep.mubr.bf16.mxu0 0
  %206 = vmatmul.mubr.bf16.gmra.mrb[0].mxu0 %v120
  %v207 = vpop.f32.mrb[0].mxu0
  %v208 = vadd.f32 0.0, %v207
  %v209 = vpop.f32.mrb[0].mxu0
  %v210 = vpop.f32.mrb[0].mxu0
  %v211 = vadd.f32 0.0, %v210
  %v212 = vpop.f32.mrb[0].mxu0
  %213 = vmatprep.mubr.bf16.mxu0 0
  %214 = vmatmul.mubr.bf16.gmra.mrb[0].mxu0 %v123
  %v215 = vpop.f32.mrb[0].mxu0
  %v216 = vadd.f32 0.0, %v215
  %v217 = vpop.f32.mrb[0].mxu0
  %v218 = vpop.f32.mrb[0].mxu0
  %v219 = vadd.f32 0.0, %v218
  %v220 = vpop.f32.mrb[0].mxu0
  %221 = vdwg.mxu0
  %vm222 = vcmp.ge.f32.partialorder %v160, 0.0
  %vm223 = vcmp.ge.f32.partialorder %v163, 0.0
  %vm224 = vcmp.ge.f32.partialorder %v168, 0.0
  %vm225 = vcmp.ge.f32.partialorder %v171, 0.0
  %vm226 = vcmp.ge.f32.partialorder %v176, 0.0
  %vm227 = vcmp.ge.f32.partialorder %v179, 0.0
  %vm228 = vcmp.ge.f32.partialorder %v184, 0.0
  %vm229 = vcmp.ge.f32.partialorder %v187, 0.0
  %vm230 = vcmp.ge.f32.partialorder %v192, 0.0
  %vm231 = vcmp.ge.f32.partialorder %v195, 0.0
  %vm232 = vcmp.ge.f32.partialorder %v200, 0.0
  %vm233 = vcmp.ge.f32.partialorder %v203, 0.0
  %vm234 = vcmp.ge.f32.partialorder %v208, 0.0
  %vm235 = vcmp.ge.f32.partialorder %v211, 0.0
  %vm236 = vcmp.ge.f32.partialorder %v216, 0.0
  %vm237 = vcmp.ge.f32.partialorder %v219, 0.0
  %v238 = vmul.f32 %v160, 0.2
  %v239 = vmul.f32 %v163, 0.2
  %v240 = vmul.f32 %v168, 0.2
  %v241 = vmul.f32 %v171, 0.2
  %v242 = vmul.f32 %v176, 0.2
  %v243 = vmul.f32 %v179, 0.2
  %v244 = vmul.f32 %v184, 0.2
  %v245 = vmul.f32 %v187, 0.2
  %v246 = vmul.f32 %v192, 0.2
  %v247 = vmul.f32 %v195, 0.2
  %v248 = vmul.f32 %v200, 0.2
  %v249 = vmul.f32 %v203, 0.2
  %v250 = vmul.f32 %v208, 0.2
  %v251 = vmul.f32 %v211, 0.2
  %v252 = vmul.f32 %v216, 0.2
  %v253 = vmul.f32 %v219, 0.2
  %v254 = vsel %vm222, %v160, %v238
  %v255 = vsel %vm223, %v163, %v239
  %v256 = vsel %vm224, %v168, %v240
  %v257 = vsel %vm225, %v171, %v241
  %v258 = vsel %vm226, %v176, %v242
  %v259 = vsel %vm227, %v179, %v243
  %v260 = vsel %vm228, %v184, %v244
  %v261 = vsel %vm229, %v187, %v245
  %v262 = vsel %vm230, %v192, %v246
  %v263 = vsel %vm231, %v195, %v247
  %v264 = vsel %vm232, %v200, %v248
  %v265 = vsel %vm233, %v203, %v249
  %v266 = vsel %vm234, %v208, %v250
  %v267 = vsel %vm235, %v211, %v251
  %v268 = vsel %vm236, %v216, %v252
  %v269 = vsel %vm237, %v219, %v253
  %v270 = vpack.c.bf16 %v255, %v254
  %v271 = vpack.c.bf16 %v257, %v256
  %v272 = vpack.c.bf16 %v259, %v258
  %v273 = vpack.c.bf16 %v261, %v260
  %v274 = vpack.c.bf16 %v263, %v262
  %v275 = vpack.c.bf16 %v265, %v264
  %v276 = vpack.c.bf16 %v267, %v266
  %v277 = vpack.c.bf16 %v269, %v268
  %v286 = vunpack.c.l.b16 %v270
  %v287 = vunpack.c.h.b16 %v270
  %v288 = vunpack.c.l.b16 %v271
  %v289 = vunpack.c.h.b16 %v271
  %v290 = vunpack.c.l.b16 %v272
  %v291 = vunpack.c.h.b16 %v272
  %v292 = vunpack.c.l.b16 %v273
  %v293 = vunpack.c.h.b16 %v273
  %v294 = vunpack.c.l.b16 %v274
  %v295 = vunpack.c.h.b16 %v274
  %v296 = vunpack.c.l.b16 %v275
  %v297 = vunpack.c.h.b16 %v275
  %v298 = vunpack.c.l.b16 %v276
  %v299 = vunpack.c.h.b16 %v276
  %v300 = vunpack.c.l.b16 %v277
  %v301 = vunpack.c.h.b16 %v277
  %v302 = vpack.c.b16 %v286, %v286
  %v303 = vpack.c.b16 %v287, %v287
  %v304 = vpack.c.b16 %v288, %v288
  %v305 = vpack.c.b16 %v289, %v289
  %v306 = vpack.c.b16 %v290, %v290
  %v307 = vpack.c.b16 %v291, %v291
  %v308 = vpack.c.b16 %v292, %v292
  %v309 = vpack.c.b16 %v293, %v293
  %v310 = vpack.c.b16 %v294, %v294
  %v311 = vpack.c.b16 %v295, %v295
  %v312 = vpack.c.b16 %v296, %v296
  %v313 = vpack.c.b16 %v297, %v297
  %v314 = vpack.c.b16 %v298, %v298
  %v315 = vpack.c.b16 %v299, %v299
  %v316 = vpack.c.b16 %v300, %v300
  %v317 = vpack.c.b16 %v301, %v301
  %334 = vst [vmem:[%s2] sm:$0xf] %v302
  %335 = vst [vmem:[%s2 + $0x4] sm:$0xf] %v303
  %336 = vst [vmem:[%s2 + $0x8] sm:$0xf] %v304
  %337 = vst [vmem:[%s2 + $0xc] sm:$0xf] %v305
  %338 = vst [vmem:[%s2 + $0x10] sm:$0xf] %v306
  %339 = vst [vmem:[%s2 + $0x14] sm:$0xf] %v307
  %340 = vst [vmem:[%s2 + $0x18] sm:$0xf] %v308
  %341 = vst [vmem:[%s2 + $0x1c] sm:$0xf] %v309
  %342 = vst [vmem:[%s2 + $0x20] sm:$0xf] %v310
  %343 = vst [vmem:[%s2 + $0x24] sm:$0xf] %v311
  %344 = vst [vmem:[%s2 + $0x28] sm:$0xf] %v312
  %345 = vst [vmem:[%s2 + $0x2c] sm:$0xf] %v313
  %346 = vst [vmem:[%s2 + $0x30] sm:$0xf] %v314
  %347 = vst [vmem:[%s2 + $0x34] sm:$0xf] %v315
  %348 = vst [vmem:[%s2 + $0x38] sm:$0xf] %v316
  %349 = vst [vmem:[%s2 + $0x3c] sm:$0xf] %v317
  // Predicated region
  $region10: #{dcgan_d_forward.8} parent=0 // pred_check
    _
  $region11: #{dcgan_d_forward.8} parent=0 // pred_check_branch
    %351 = sbr.rel (0) target = $region13
  $region12: #{dcgan_d_forward.8} parent=0 // pred_region
    _
  $region13: #{dcgan_d_forward.8} parent=0 // pred_fallthru
    _
  // Predicated region
  $region14: #{dcgan_d_forward.8} parent=0 // pred_check
    _
  $region15: #{dcgan_d_forward.8} parent=0 // pred_check_branch
    %353 = sbr.rel (0) target = $region17
  $region16: #{dcgan_d_forward.8} parent=0 // pred_region
    _
  $region17: #{dcgan_d_forward.8} parent=0 // pred_fallthru
    _

// kernel: dcgan_d_forward.10
$region0: #{dcgan_d_forward.10}
  #allocation0 [shape = 'u32[]', space=smem, size = 0x4, offset = 0x4, fixed_abs, tag = 'smem constant byte address 0x4 - core index']
  #allocation1 [shape = 'u32[144,128]{1,0:T(1,128)}', space=vmem, size = 0x12000, scoped, tag = 'internal scratch']
  %s0 = inlined_call_operand.vmem [shape: bf16[128,128], index: 0, kind: input, shape index: {}]
  %s1 = inlined_call_operand.vmem [shape: f32[8,128], index: 1, kind: input, shape index: {}]
  %s2 = inlined_call_operand.vmem [shape: f32[1,128], index: 2, kind: input, shape index: {}]
  %s3 = inlined_call_operand.vmem [shape: f32[1,128], index: 3, kind: input, shape index: {}]
  %s4 = inlined_call_operand.vmem [shape: bf16[128,128], index: 4, kind: output, shape index: {}]
  %s5 = sld [smem:[#allocation0]]
  $region26: #{dcgan_d_forward.10} parent=0
    _
  %s7 = ssub.s32 1, %s5
  %s8 = scalar_select 0, %s7, %s5
  // Predicated region
  $region2: #{dcgan_d_forward.10} parent=0 // pred_check
    _
  $region3: #{dcgan_d_forward.10} parent=0 // pred_check_branch
    %10 = sbr.rel (0) target = $region5
  $region4: #{dcgan_d_forward.10} parent=0 // pred_region
    _
  $region5: #{dcgan_d_forward.10} parent=0 // pred_fallthru
    _
  // Predicated region
  $region6: #{dcgan_d_forward.10} parent=0 // pred_check
    _
  $region7: #{dcgan_d_forward.10} parent=0 // pred_check_branch
    %12 = sbr.rel (0) target = $region9
  $region8: #{dcgan_d_forward.10} parent=0 // pred_region
    _
  $region9: #{dcgan_d_forward.10} parent=0 // pred_fallthru
    _
  // Predicated region
  $region10: #{dcgan_d_forward.10} parent=0 // pred_check
    _
  $region11: #{dcgan_d_forward.10} parent=0 // pred_check_branch
    %14 = sbr.rel (0) target = $region13
  $region12: #{dcgan_d_forward.10} parent=0 // pred_region
    _
  $region13: #{dcgan_d_forward.10} parent=0 // pred_fallthru
    _
  // Predicated region
  $region14: #{dcgan_d_forward.10} parent=0 // pred_check
    _
  $region15: #{dcgan_d_forward.10} parent=0 // pred_check_branch
    %16 = sbr.rel (0) target = $region17
  $region16: #{dcgan_d_forward.10} parent=0 // pred_region
    _
  $region17: #{dcgan_d_forward.10} parent=0 // pred_fallthru
    _
  %v17 = vld [vmem:[%s0] sm:$0xf]
  %v18 = vld [vmem:[%s0 + $0x4] sm:$0xf]
  %v19 = vld [vmem:[%s0 + $0x8] sm:$0xf]
  %v20 = vld [vmem:[%s0 + $0xc] sm:$0xf]
  %v21 = vld [vmem:[%s0 + $0x10] sm:$0xf]
  %v22 = vld [vmem:[%s0 + $0x14] sm:$0xf]
  %v23 = vld [vmem:[%s0 + $0x18] sm:$0xf]
  %v24 = vld [vmem:[%s0 + $0x1c] sm:$0xf]
  %v25 = vld [vmem:[%s0 + $0x20] sm:$0xf]
  %v26 = vld [vmem:[%s0 + $0x24] sm:$0xf]
  %v27 = vld [vmem:[%s0 + $0x28] sm:$0xf]
  %v28 = vld [vmem:[%s0 + $0x2c] sm:$0xf]
  %v29 = vld [vmem:[%s0 + $0x30] sm:$0xf]
  %v30 = vld [vmem:[%s0 + $0x34] sm:$0xf]
  %v31 = vld [vmem:[%s0 + $0x38] sm:$0xf]
  %v32 = vld [vmem:[%s0 + $0x3c] sm:$0xf]
  %v33 = vunpack.c.l.bf16 %v17
  %v34 = vunpack.c.l.bf16 %v18
  %v35 = vunpack.c.l.bf16 %v19
  %v36 = vunpack.c.l.bf16 %v20
  %v37 = vunpack.c.l.bf16 %v21
  %v38 = vunpack.c.l.bf16 %v22
  %v39 = vunpack.c.l.bf16 %v23
  %v40 = vunpack.c.l.bf16 %v24
  %v41 = vunpack.c.l.bf16 %v25
  %v42 = vunpack.c.l.bf16 %v26
  %v43 = vunpack.c.l.bf16 %v27
  %v44 = vunpack.c.l.bf16 %v28
  %v45 = vunpack.c.l.bf16 %v29
  %v46 = vunpack.c.l.bf16 %v30
  %v47 = vunpack.c.l.bf16 %v31
  %v48 = vunpack.c.l.bf16 %v32
  %v49 = vld [vmem:[%s1] sm:$0x1]
  %v50 = vmul.f32 %v49, 0.0078125
  %v51 = vld [vmem:[%s1 + $0x1] sm:$0x1]
  %v52 = vmul.f32 %v51, 0.0078125
  %v53 = vmul.f32 %v50, %v50
  %v54 = vsub.f32 %v52, %v53
  %v55 = vmax.f32 %v54, 0.0
  %v56 = vadd.f32 %v55, 1e-05
  %v57 = vrsqrt.pop %v56
  %v58 = vld [vmem:[%s2] sm:$0x1]
  %v59 = vmul.f32 %v57, %v58
  %v60 = vlaneseq
  %v61 = vshrl.u32 %v60, 7
  %v62 = vsub.s32 0, %v61
  %v63 = vrot.slane %v50, %v62
  %v64 = vsub.f32 %v33, %v63
  %v65 = vsub.f32 %v34, %v63
  %v66 = vsub.f32 %v35, %v63
  %v67 = vsub.f32 %v36, %v63
  %v68 = vsub.f32 %v37, %v63
  %v69 = vsub.f32 %v38, %v63
  %v70 = vsub.f32 %v39, %v63
  %v71 = vsub.f32 %v40, %v63
  %v72 = vsub.f32 %v41, %v63
  %v73 = vsub.f32 %v42, %v63
  %v74 = vsub.f32 %v43, %v63
  %v75 = vsub.f32 %v44, %v63
  %v76 = vsub.f32 %v45, %v63
  %v77 = vsub.f32 %v46, %v63
  %v78 = vsub.f32 %v47, %v63
  %v79 = vsub.f32 %v48, %v63
  %v80 = vlaneseq
  %v81 = vshrl.u32 %v80, 7
  %v82 = vsub.s32 0, %v81
  %v83 = vrot.slane %v59, %v82
  %v84 = vmul.f32 %v64, %v83
  %v85 = vmul.f32 %v65, %v83
  %v86 = vmul.f32 %v66, %v83
  %v87 = vmul.f32 %v67, %v83
  %v88 = vmul.f32 %v68, %v83
  %v89 = vmul.f32 %v69, %v83
  %v90 = vmul.f32 %v70, %v83
  %v91 = vmul.f32 %v71, %v83
  %v92 = vmul.f32 %v72, %v83
  %v93 = vmul.f32 %v73, %v83
  %v94 = vmul.f32 %v74, %v83
  %v95 = vmul.f32 %v75, %v83
  %v96 = vmul.f32 %v76, %v83
  %v97 = vmul.f32 %v77, %v83
  %v98 = vmul.f32 %v78, %v83
  %v99 = vmul.f32 %v79, %v83
  %v100 = vld [vmem:[%s3] sm:$0x1]
  %v102 = vlaneseq
  %v103 = vshrl.u32 %v102, 7
  %v104 = vsub.s32 0, %v103
  %v105 = vrot.slane %v100, %v104
  %v107 = vadd.f32 %v84, %v105
  %v108 = vadd.f32 %v85, %v105
  %v109 = vadd.f32 %v86, %v105
  %v110 = vadd.f32 %v87, %v105
  %v111 = vadd.f32 %v88, %v105
  %v112 = vadd.f32 %v89, %v105
  %v113 = vadd.f32 %v90, %v105
  %v114 = vadd.f32 %v91, %v105
  %v115 = vadd.f32 %v92, %v105
  %v116 = vadd.f32 %v93, %v105
  %v117 = vadd.f32 %v94, %v105
  %v118 = vadd.f32 %v95, %v105
  %v119 = vadd.f32 %v96, %v105
  %v120 = vadd.f32 %v97, %v105
  %v121 = vadd.f32 %v98, %v105
  %v122 = vadd.f32 %v99, %v105
  %vm123 = vcmp.ge.f32.partialorder %v107, 0.0
  %vm124 = vcmp.ge.f32.partialorder %v108, 0.0
  %vm125 = vcmp.ge.f32.partialorder %v109, 0.0
  %vm126 = vcmp.ge.f32.partialorder %v110, 0.0
  %vm127 = vcmp.ge.f32.partialorder %v111, 0.0
  %vm128 = vcmp.ge.f32.partialorder %v112, 0.0
  %vm129 = vcmp.ge.f32.partialorder %v113, 0.0
  %vm130 = vcmp.ge.f32.partialorder %v114, 0.0
  %vm131 = vcmp.ge.f32.partialorder %v115, 0.0
  %vm132 = vcmp.ge.f32.partialorder %v116, 0.0
  %vm133 = vcmp.ge.f32.partialorder %v117, 0.0
  %vm134 = vcmp.ge.f32.partialorder %v118, 0.0
  %vm135 = vcmp.ge.f32.partialorder %v119, 0.0
  %vm136 = vcmp.ge.f32.partialorder %v120, 0.0
  %vm137 = vcmp.ge.f32.partialorder %v121, 0.0
  %vm138 = vcmp.ge.f32.partialorder %v122, 0.0
  %v139 = vmul.f32 %v107, 0.2
  %v140 = vmul.f32 %v108, 0.2
  %v141 = vmul.f32 %v109, 0.2
  %v142 = vmul.f32 %v110, 0.2
  %v143 = vmul.f32 %v111, 0.2
  %v144 = vmul.f32 %v112, 0.2
  %v145 = vmul.f32 %v113, 0.2
  %v146 = vmul.f32 %v114, 0.2
  %v147 = vmul.f32 %v115, 0.2
  %v148 = vmul.f32 %v116, 0.2
  %v149 = vmul.f32 %v117, 0.2
  %v150 = vmul.f32 %v118, 0.2
  %v151 = vmul.f32 %v119, 0.2
  %v152 = vmul.f32 %v120, 0.2
  %v153 = vmul.f32 %v121, 0.2
  %v154 = vmul.f32 %v122, 0.2
  %v155 = vsel %vm123, %v107, %v139
  %v156 = vsel %vm124, %v108, %v140
  %v157 = vsel %vm125, %v109, %v141
  %v158 = vsel %vm126, %v110, %v142
  %v159 = vsel %vm127, %v111, %v143
  %v160 = vsel %vm128, %v112, %v144
  %v161 = vsel %vm129, %v113, %v145
  %v162 = vsel %vm130, %v114, %v146
  %v163 = vsel %vm131, %v115, %v147
  %v164 = vsel %vm132, %v116, %v148
  %v165 = vsel %vm133, %v117, %v149
  %v166 = vsel %vm134, %v118, %v150
  %v167 = vsel %vm135, %v119, %v151
  %v168 = vsel %vm136, %v120, %v152
  %v169 = vsel %vm137, %v121, %v153
  %v170 = vsel %vm138, %v122, %v154
  %v171 = vpack.c.bf16 %v156, %v155
  %v172 = vpack.c.bf16 %v158, %v157
  %v173 = vpack.c.bf16 %v160, %v159
  %v174 = vpack.c.bf16 %v162, %v161
  %v175 = vpack.c.bf16 %v164, %v163
  %v176 = vpack.c.bf16 %v166, %v165
  %v177 = vpack.c.bf16 %v168, %v167
  %v178 = vpack.c.bf16 %v170, %v169
  %v187 = vunpack.c.l.b16 %v171
  %v188 = vunpack.c.h.b16 %v171
  %v189 = vunpack.c.l.b16 %v172
  %v190 = vunpack.c.h.b16 %v172
  %v191 = vunpack.c.l.b16 %v173
  %v192 = vunpack.c.h.b16 %v173
  %v193 = vunpack.c.l.b16 %v174
  %v194 = vunpack.c.h.b16 %v174
  %v195 = vunpack.c.l.b16 %v175
  %v196 = vunpack.c.h.b16 %v175
  %v197 = vunpack.c.l.b16 %v176
  %v198 = vunpack.c.h.b16 %v176
  %v199 = vunpack.c.l.b16 %v177
  %v200 = vunpack.c.h.b16 %v177
  %v201 = vunpack.c.l.b16 %v178
  %v202 = vunpack.c.h.b16 %v178
  %v203 = vpack.c.b16 %v187, %v187
  %v204 = vpack.c.b16 %v188, %v188
  %v205 = vpack.c.b16 %v189, %v189
  %v206 = vpack.c.b16 %v190, %v190
  %v207 = vpack.c.b16 %v191, %v191
  %v208 = vpack.c.b16 %v192, %v192
  %v209 = vpack.c.b16 %v193, %v193
  %v210 = vpack.c.b16 %v194, %v194
  %v211 = vpack.c.b16 %v195, %v195
  %v212 = vpack.c.b16 %v196, %v196
  %v213 = vpack.c.b16 %v197, %v197
  %v214 = vpack.c.b16 %v198, %v198
  %v215 = vpack.c.b16 %v199, %v199
  %v216 = vpack.c.b16 %v200, %v200
  %v217 = vpack.c.b16 %v201, %v201
  %v218 = vpack.c.b16 %v202, %v202
  %235 = vst [vmem:[%s4] sm:$0xf] %v203
  %236 = vst [vmem:[%s4 + $0x4] sm:$0xf] %v204
  %237 = vst [vmem:[%s4 + $0x8] sm:$0xf] %v205
  %238 = vst [vmem:[%s4 + $0xc] sm:$0xf] %v206
  %239 = vst [vmem:[%s4 + $0x10] sm:$0xf] %v207
  %240 = vst [vmem:[%s4 + $0x14] sm:$0xf] %v208
  %241 = vst [vmem:[%s4 + $0x18] sm:$0xf] %v209
  %242 = vst [vmem:[%s4 + $0x1c] sm:$0xf] %v210
  %243 = vst [vmem:[%s4 + $0x20] sm:$0xf] %v211
  %244 = vst [vmem:[%s4 + $0x24] sm:$0xf] %v212
  %245 = vst [vmem:[%s4 + $0x28] sm:$0xf] %v213
  %246 = vst [vmem:[%s4 + $0x2c] sm:$0xf] %v214
  %247 = vst [vmem:[%s4 + $0x30] sm:$0xf] %v215
  %248 = vst [vmem:[%s4 + $0x34] sm:$0xf] %v216
  %249 = vst [vmem:[%s4 + $0x38] sm:$0xf] %v217
  %250 = vst [vmem:[%s4 + $0x3c] sm:$0xf] %v218
  // Predicated region
  $region18: #{dcgan_d_forward.10} parent=0 // pred_check
    _
  $region19: #{dcgan_d_forward.10} parent=0 // pred_check_branch
    %252 = sbr.rel (0) target = $region21
  $region20: #{dcgan_d_forward.10} parent=0 // pred_region
    _
  $region21: #{dcgan_d_forward.10} parent=0 // pred_fallthru
    _
  // Predicated region
  $region22: #{dcgan_d_forward.10} parent=0 // pred_check
    _
  $region23: #{dcgan_d_forward.10} parent=0 // pred_check_branch
    %254 = sbr.rel (0) target = $region25
  $region24: #{dcgan_d_forward.10} parent=0 // pred_region
    _
  $region25: #{dcgan_d_forward.10} parent=0 // pred_fallthru
    _

// kernel: dcgan_d_forward.9
$region0: #{dcgan_d_forward.9}
  #allocation0 [shape = 'u32[]', space=smem, size = 0x4, offset = 0x4, fixed_abs, tag = 'smem constant byte address 0x4 - core index']
  #allocation1 [shape = 'u32[144,128]{1,0:T(1,128)}', space=vmem, size = 0x12000, scoped, tag = 'internal scratch']
  %s0 = inlined_call_operand.vmem [shape: bf16[128,1152], index: 0, kind: input, shape index: {}]
  %s1 = inlined_call_operand.vmem [shape: bf16[1152,128], index: 1, kind: input, shape index: {}]
  %s2 = inlined_call_operand.vmem [shape: bf16[128,128], index: 2, kind: output, shape index: {0}]
  %s3 = inlined_call_operand.vmem [shape: f32[8,128], index: 3, kind: output, shape index: {1}]
  %4 = xla_tuple %s2, %s3
  %s5 = sld [smem:[#allocation0]]
  $region30: #{dcgan_d_forward.9} parent=0
    _
  %s7 = ssub.s32 1, %s5
  %s8 = scalar_select 0, %s7, %s5
  // Predicated region
  $region2: #{dcgan_d_forward.9} parent=0 // pred_check
    _
  $region3: #{dcgan_d_forward.9} parent=0 // pred_check_branch
    %10 = sbr.rel (0) target = $region5
  $region4: #{dcgan_d_forward.9} parent=0 // pred_region
    _
  $region5: #{dcgan_d_forward.9} parent=0 // pred_fallthru
    _
  // Predicated region
  $region6: #{dcgan_d_forward.9} parent=0 // pred_check
    _
  $region7: #{dcgan_d_forward.9} parent=0 // pred_check_branch
    %12 = sbr.rel (0) target = $region9
  $region8: #{dcgan_d_forward.9} parent=0 // pred_region
    _
  $region9: #{dcgan_d_forward.9} parent=0 // pred_fallthru
    _
  %v14 = vld [vmem:[%s0] sm:$0xff]
  %v15 = vld [vmem:[%s0 + $0x8] sm:$0xff]
  %v16 = vld [vmem:[%s0 + $0x10] sm:$0xff]
  %v17 = vld [vmem:[%s0 + $0x18] sm:$0xff]
  %v18 = vld [vmem:[%s0 + $0x20] sm:$0xf]
  %v19 = vld [vmem:[%s0 + $0x24] sm:$0xff]
  %v20 = vld [vmem:[%s0 + $0x2c] sm:$0xff]
  %v21 = vld [vmem:[%s0 + $0x34] sm:$0xff]
  %v22 = vld [vmem:[%s0 + $0x3c] sm:$0xff]
  %v23 = vld [vmem:[%s0 + $0x44] sm:$0xf]
  %v24 = vld [vmem:[%s0 + $0x48] sm:$0xff]
  %v25 = vld [vmem:[%s0 + $0x50] sm:$0xff]
  %v26 = vld [vmem:[%s0 + $0x58] sm:$0xff]
  %v27 = vld [vmem:[%s0 + $0x60] sm:$0xff]
  %v28 = vld [vmem:[%s0 + $0x68] sm:$0xf]
  %v29 = vld [vmem:[%s0 + $0x6c] sm:$0xff]
  %v30 = vld [vmem:[%s0 + $0x74] sm:$0xff]
  %v31 = vld [vmem:[%s0 + $0x7c] sm:$0xff]
  %v32 = vld [vmem:[%s0 + $0x84] sm:$0xff]
  %v33 = vld [vmem:[%s0 + $0x8c] sm:$0xf]
  %v34 = vld [vmem:[%s0 + $0x90] sm:$0xff]
  %v35 = vld [vmem:[%s0 + $0x98] sm:$0xff]
  %v36 = vld [vmem:[%s0 + $0xa0] sm:$0xff]
  %v37 = vld [vmem:[%s0 + $0xa8] sm:$0xff]
  %v38 = vld [vmem:[%s0 + $0xb0] sm:$0xf]
  %v39 = vld [vmem:[%s0 + $0xb4] sm:$0xff]
  %v40 = vld [vmem:[%s0 + $0xbc] sm:$0xff]
  %v41 = vld [vmem:[%s0 + $0xc4] sm:$0xff]
  %v42 = vld [vmem:[%s0 + $0xcc] sm:$0xff]
  %v43 = vld [vmem:[%s0 + $0xd4] sm:$0xf]
  %v44 = vld [vmem:[%s0 + $0xd8] sm:$0xff]
  %v45 = vld [vmem:[%s0 + $0xe0] sm:$0xff]
  %v46 = vld [vmem:[%s0 + $0xe8] sm:$0xff]
  %v47 = vld [vmem:[%s0 + $0xf0] sm:$0xff]
  %v48 = vld [vmem:[%s0 + $0xf8] sm:$0xf]
  %v49 = vld [vmem:[%s0 + $0xfc] sm:$0xff]
  %v50 = vld [vmem:[%s0 + $0x104] sm:$0xff]
  %v51 = vld [vmem:[%s0 + $0x10c] sm:$0xff]
  %v52 = vld [vmem:[%s0 + $0x114] sm:$0xff]
  %v53 = vld [vmem:[%s0 + $0x11c] sm:$0xf]
  %v54 = vld [vmem:[%s0 + $0x120] sm:$0xff]
  %v55 = vld [vmem:[%s0 + $0x128] sm:$0xff]
  %v56 = vld [vmem:[%s0 + $0x130] sm:$0xff]
  %v57 = vld [vmem:[%s0 + $0x138] sm:$0xff]
  %v58 = vld [vmem:[%s0 + $0x140] sm:$0xf]
  %v59 = vld [vmem:[%s0 + $0x144] sm:$0xff]
  %v60 = vld [vmem:[%s0 + $0x14c] sm:$0xff]
  %v61 = vld [vmem:[%s0 + $0x154] sm:$0xff]
  %v62 = vld [vmem:[%s0 + $0x15c] sm:$0xff]
  %v63 = vld [vmem:[%s0 + $0x164] sm:$0xf]
  %v64 = vld [vmem:[%s0 + $0x168] sm:$0xff]
  %v65 = vld [vmem:[%s0 + $0x170] sm:$0xff]
  %v66 = vld [vmem:[%s0 + $0x178] sm:$0xff]
  %v67 = vld [vmem:[%s0 + $0x180] sm:$0xff]
  %v68 = vld [vmem:[%s0 + $0x188] sm:$0xf]
  %v69 = vld [vmem:[%s0 + $0x18c] sm:$0xff]
  %v70 = vld [vmem:[%s0 + $0x194] sm:$0xff]
  %v71 = vld [vmem:[%s0 + $0x19c] sm:$0xff]
  %v72 = vld [vmem:[%s0 + $0x1a4] sm:$0xff]
  %v73 = vld [vmem:[%s0 + $0x1ac] sm:$0xf]
  %v74 = vld [vmem:[%s0 + $0x1b0] sm:$0xff]
  %v75 = vld [vmem:[%s0 + $0x1b8] sm:$0xff]
  %v76 = vld [vmem:[%s0 + $0x1c0] sm:$0xff]
  %v77 = vld [vmem:[%s0 + $0x1c8] sm:$0xff]
  %v78 = vld [vmem:[%s0 + $0x1d0] sm:$0xf]
  %v79 = vld [vmem:[%s0 + $0x1d4] sm:$0xff]
  %v80 = vld [vmem:[%s0 + $0x1dc] sm:$0xff]
  %v81 = vld [vmem:[%s0 + $0x1e4] sm:$0xff]
  %v82 = vld [vmem:[%s0 + $0x1ec] sm:$0xff]
  %v83 = vld [vmem:[%s0 + $0x1f4] sm:$0xf]
  %v84 = vld [vmem:[%s0 + $0x1f8] sm:$0xff]
  %v85 = vld [vmem:[%s0 + $0x200] sm:$0xff]
  %v86 = vld [vmem:[%s0 + $0x208] sm:$0xff]
  %v87 = vld [vmem:[%s0 + $0x210] sm:$0xff]
  %v88 = vld [vmem:[%s0 + $0x218] sm:$0xf]
  %v89 = vld [vmem:[%s0 + $0x21c] sm:$0xff]
  %v90 = vld [vmem:[%s0 + $0x224] sm:$0xff]
  %v91 = vld [vmem:[%s0 + $0x22c] sm:$0xff]
  %v92 = vld [vmem:[%s0 + $0x234] sm:$0xff]
  %v93 = vld [vmem:[%s0 + $0x23c] sm:$0xf]
  %v94 = vld [vmem:[%s1] sm:$0xf]
  %v95 = vld [vmem:[%s1 + $0x4] sm:$0xf]
  %v96 = vld [vmem:[%s1 + $0x8] sm:$0xf]
  %v97 = vld [vmem:[%s1 + $0xc] sm:$0xf]
  %v98 = vld [vmem:[%s1 + $0x10] sm:$0xf]
  %v99 = vld [vmem:[%s1 + $0x14] sm:$0xf]
  %v100 = vld [vmem:[%s1 + $0x18] sm:$0xf]
  %v101 = vld [vmem:[%s1 + $0x1c] sm:$0xf]
  %v102 = vld [vmem:[%s1 + $0x20] sm:$0xf]
  %v103 = vld [vmem:[%s1 + $0x24] sm:$0xf]
  %v104 = vld [vmem:[%s1 + $0x28] sm:$0xf]
  %v105 = vld [vmem:[%s1 + $0x2c] sm:$0xf]
  %v106 = vld [vmem:[%s1 + $0x30] sm:$0xf]
  %v107 = vld [vmem:[%s1 + $0x34] sm:$0xf]
  %v108 = vld [vmem:[%s1 + $0x38] sm:$0xf]
  %v109 = vld [vmem:[%s1 + $0x3c] sm:$0xf]
  %v110 = vld [vmem:[%s1 + $0x40] sm:$0xf]
  %v111 = vld [vmem:[%s1 + $0x44] sm:$0xf]
  %v112 = vld [vmem:[%s1 + $0x48] sm:$0xf]
  %v113 = vld [vmem:[%s1 + $0x4c] sm:$0xf]
  %v114 = vld [vmem:[%s1 + $0x50] sm:$0xf]
  %v115 = vld [vmem:[%s1 + $0x54] sm:$0xf]
  %v116 = vld [vmem:[%s1 + $0x58] sm:$0xf]
  %v117 = vld [vmem:[%s1 + $0x5c] sm:$0xf]
  %v118 = vld [vmem:[%s1 + $0x60] sm:$0xf]
  %v119 = vld [vmem:[%s1 + $0x64] sm:$0xf]
  %v120 = vld [vmem:[%s1 + $0x68] sm:$0xf]
  %v121 = vld [vmem:[%s1 + $0x6c] sm:$0xf]
  %v122 = vld [vmem:[%s1 + $0x70] sm:$0xf]
  %v123 = vld [vmem:[%s1 + $0x74] sm:$0xf]
  %v124 = vld [vmem:[%s1 + $0x78] sm:$0xf]
  %v125 = vld [vmem:[%s1 + $0x7c] sm:$0xf]
  %v126 = vld [vmem:[%s1 + $0x80] sm:$0xf]
  %v127 = vld [vmem:[%s1 + $0x84] sm:$0xf]
  %v128 = vld [vmem:[%s1 + $0x88] sm:$0xf]
  %v129 = vld [vmem:[%s1 + $0x8c] sm:$0xf]
  %v130 = vld [vmem:[%s1 + $0x90] sm:$0xf]
  %v131 = vld [vmem:[%s1 + $0x94] sm:$0xf]
  %v132 = vld [vmem:[%s1 + $0x98] sm:$0xf]
  %v133 = vld [vmem:[%s1 + $0x9c] sm:$0xf]
  %v134 = vld [vmem:[%s1 + $0xa0] sm:$0xf]
  %v135 = vld [vmem:[%s1 + $0xa4] sm:$0xf]
  %v136 = vld [vmem:[%s1 + $0xa8] sm:$0xf]
  %v137 = vld [vmem:[%s1 + $0xac] sm:$0xf]
  %v138 = vld [vmem:[%s1 + $0xb0] sm:$0xf]
  %v139 = vld [vmem:[%s1 + $0xb4] sm:$0xf]
  %v140 = vld [vmem:[%s1 + $0xb8] sm:$0xf]
  %v141 = vld [vmem:[%s1 + $0xbc] sm:$0xf]
  %v142 = vld [vmem:[%s1 + $0xc0] sm:$0xf]
  %v143 = vld [vmem:[%s1 + $0xc4] sm:$0xf]
  %v144 = vld [vmem:[%s1 + $0xc8] sm:$0xf]
  %v145 = vld [vmem:[%s1 + $0xcc] sm:$0xf]
  %v146 = vld [vmem:[%s1 + $0xd0] sm:$0xf]
  %v147 = vld [vmem:[%s1 + $0xd4] sm:$0xf]
  %v148 = vld [vmem:[%s1 + $0xd8] sm:$0xf]
  %v149 = vld [vmem:[%s1 + $0xdc] sm:$0xf]
  %v150 = vld [vmem:[%s1 + $0xe0] sm:$0xf]
  %v151 = vld [vmem:[%s1 + $0xe4] sm:$0xf]
  %v152 = vld [vmem:[%s1 + $0xe8] sm:$0xf]
  %v153 = vld [vmem:[%s1 + $0xec] sm:$0xf]
  %v154 = vld [vmem:[%s1 + $0xf0] sm:$0xf]
  %v155 = vld [vmem:[%s1 + $0xf4] sm:$0xf]
  %v156 = vld [vmem:[%s1 + $0xf8] sm:$0xf]
  %v157 = vld [vmem:[%s1 + $0xfc] sm:$0xf]
  %v158 = vld [vmem:[%s1 + $0x100] sm:$0xf]
  %v159 = vld [vmem:[%s1 + $0x104] sm:$0xf]
  %v160 = vld [vmem:[%s1 + $0x108] sm:$0xf]
  %v161 = vld [vmem:[%s1 + $0x10c] sm:$0xf]
  %v162 = vld [vmem:[%s1 + $0x110] sm:$0xf]
  %v163 = vld [vmem:[%s1 + $0x114] sm:$0xf]
  %v164 = vld [vmem:[%s1 + $0x118] sm:$0xf]
  %v165 = vld [vmem:[%s1 + $0x11c] sm:$0xf]
  %v166 = vld [vmem:[%s1 + $0x120] sm:$0xf]
  %v167 = vld [vmem:[%s1 + $0x124] sm:$0xf]
  %v168 = vld [vmem:[%s1 + $0x128] sm:$0xf]
  %v169 = vld [vmem:[%s1 + $0x12c] sm:$0xf]
  %v170 = vld [vmem:[%s1 + $0x130] sm:$0xf]
  %v171 = vld [vmem:[%s1 + $0x134] sm:$0xf]
  %v172 = vld [vmem:[%s1 + $0x138] sm:$0xf]
  %v173 = vld [vmem:[%s1 + $0x13c] sm:$0xf]
  %v174 = vld [vmem:[%s1 + $0x140] sm:$0xf]
  %v175 = vld [vmem:[%s1 + $0x144] sm:$0xf]
  %v176 = vld [vmem:[%s1 + $0x148] sm:$0xf]
  %v177 = vld [vmem:[%s1 + $0x14c] sm:$0xf]
  %v178 = vld [vmem:[%s1 + $0x150] sm:$0xf]
  %v179 = vld [vmem:[%s1 + $0x154] sm:$0xf]
  %v180 = vld [vmem:[%s1 + $0x158] sm:$0xf]
  %v181 = vld [vmem:[%s1 + $0x15c] sm:$0xf]
  %v182 = vld [vmem:[%s1 + $0x160] sm:$0xf]
  %v183 = vld [vmem:[%s1 + $0x164] sm:$0xf]
  %v184 = vld [vmem:[%s1 + $0x168] sm:$0xf]
  %v185 = vld [vmem:[%s1 + $0x16c] sm:$0xf]
  %v186 = vld [vmem:[%s1 + $0x170] sm:$0xf]
  %v187 = vld [vmem:[%s1 + $0x174] sm:$0xf]
  %v188 = vld [vmem:[%s1 + $0x178] sm:$0xf]
  %v189 = vld [vmem:[%s1 + $0x17c] sm:$0xf]
  %v190 = vld [vmem:[%s1 + $0x180] sm:$0xf]
  %v191 = vld [vmem:[%s1 + $0x184] sm:$0xf]
  %v192 = vld [vmem:[%s1 + $0x188] sm:$0xf]
  %v193 = vld [vmem:[%s1 + $0x18c] sm:$0xf]
  %v194 = vld [vmem:[%s1 + $0x190] sm:$0xf]
  %v195 = vld [vmem:[%s1 + $0x194] sm:$0xf]
  %v196 = vld [vmem:[%s1 + $0x198] sm:$0xf]
  %v197 = vld [vmem:[%s1 + $0x19c] sm:$0xf]
  %v198 = vld [vmem:[%s1 + $0x1a0] sm:$0xf]
  %v199 = vld [vmem:[%s1 + $0x1a4] sm:$0xf]
  %v200 = vld [vmem:[%s1 + $0x1a8] sm:$0xf]
  %v201 = vld [vmem:[%s1 + $0x1ac] sm:$0xf]
  %v202 = vld [vmem:[%s1 + $0x1b0] sm:$0xf]
  %v203 = vld [vmem:[%s1 + $0x1b4] sm:$0xf]
  %v204 = vld [vmem:[%s1 + $0x1b8] sm:$0xf]
  %v205 = vld [vmem:[%s1 + $0x1bc] sm:$0xf]
  %v206 = vld [vmem:[%s1 + $0x1c0] sm:$0xf]
  %v207 = vld [vmem:[%s1 + $0x1c4] sm:$0xf]
  %v208 = vld [vmem:[%s1 + $0x1c8] sm:$0xf]
  %v209 = vld [vmem:[%s1 + $0x1cc] sm:$0xf]
  %v210 = vld [vmem:[%s1 + $0x1d0] sm:$0xf]
  %v211 = vld [vmem:[%s1 + $0x1d4] sm:$0xf]
  %v212 = vld [vmem:[%s1 + $0x1d8] sm:$0xf]
  %v213 = vld [vmem:[%s1 + $0x1dc] sm:$0xf]
  %v214 = vld [vmem:[%s1 + $0x1e0] sm:$0xf]
  %v215 = vld [vmem:[%s1 + $0x1e4] sm:$0xf]
  %v216 = vld [vmem:[%s1 + $0x1e8] sm:$0xf]
  %v217 = vld [vmem:[%s1 + $0x1ec] sm:$0xf]
  %v218 = vld [vmem:[%s1 + $0x1f0] sm:$0xf]
  %v219 = vld [vmem:[%s1 + $0x1f4] sm:$0xf]
  %v220 = vld [vmem:[%s1 + $0x1f8] sm:$0xf]
  %v221 = vld [vmem:[%s1 + $0x1fc] sm:$0xf]
  %v222 = vld [vmem:[%s1 + $0x200] sm:$0xf]
  %v223 = vld [vmem:[%s1 + $0x204] sm:$0xf]
  %v224 = vld [vmem:[%s1 + $0x208] sm:$0xf]
  %v225 = vld [vmem:[%s1 + $0x20c] sm:$0xf]
  %v226 = vld [vmem:[%s1 + $0x210] sm:$0xf]
  %v227 = vld [vmem:[%s1 + $0x214] sm:$0xf]
  %v228 = vld [vmem:[%s1 + $0x218] sm:$0xf]
  %v229 = vld [vmem:[%s1 + $0x21c] sm:$0xf]
  %v230 = vld [vmem:[%s1 + $0x220] sm:$0xf]
  %v231 = vld [vmem:[%s1 + $0x224] sm:$0xf]
  %v232 = vld [vmem:[%s1 + $0x228] sm:$0xf]
  %v233 = vld [vmem:[%s1 + $0x22c] sm:$0xf]
  %v234 = vld [vmem:[%s1 + $0x230] sm:$0xf]
  %v235 = vld [vmem:[%s1 + $0x234] sm:$0xf]
  %v236 = vld [vmem:[%s1 + $0x238] sm:$0xf]
  %v237 = vld [vmem:[%s1 + $0x23c] sm:$0xf]
  %v318 = vunpack.c.l.b16 %v14
  %v319 = vunpack.c.h.b16 %v14
  %v320 = vunpack.c.l.b16 %v15
  %v321 = vunpack.c.h.b16 %v15
  %v322 = vunpack.c.l.b16 %v16
  %v323 = vunpack.c.h.b16 %v16
  %v324 = vunpack.c.l.b16 %v17
  %v325 = vunpack.c.h.b16 %v17
  %v326 = vunpack.c.l.b16 %v18
  %v327 = vunpack.c.l.b16 %v19
  %v328 = vunpack.c.h.b16 %v19
  %v329 = vunpack.c.l.b16 %v20
  %v330 = vunpack.c.h.b16 %v20
  %v331 = vunpack.c.l.b16 %v21
  %v332 = vunpack.c.h.b16 %v21
  %v333 = vunpack.c.l.b16 %v22
  %v334 = vunpack.c.h.b16 %v22
  %v335 = vunpack.c.l.b16 %v23
  %v336 = vunpack.c.l.b16 %v24
  %v337 = vunpack.c.h.b16 %v24
  %v338 = vunpack.c.l.b16 %v25
  %v339 = vunpack.c.h.b16 %v25
  %v340 = vunpack.c.l.b16 %v26
  %v341 = vunpack.c.h.b16 %v26
  %v342 = vunpack.c.l.b16 %v27
  %v343 = vunpack.c.h.b16 %v27
  %v344 = vunpack.c.l.b16 %v28
  %v345 = vunpack.c.l.b16 %v29
  %v346 = vunpack.c.h.b16 %v29
  %v347 = vunpack.c.l.b16 %v30
  %v348 = vunpack.c.h.b16 %v30
  %v349 = vunpack.c.l.b16 %v31
  %v350 = vunpack.c.h.b16 %v31
  %v351 = vunpack.c.l.b16 %v32
  %v352 = vunpack.c.h.b16 %v32
  %v353 = vunpack.c.l.b16 %v33
  %v354 = vunpack.c.l.b16 %v34
  %v355 = vunpack.c.h.b16 %v34
  %v356 = vunpack.c.l.b16 %v35
  %v357 = vunpack.c.h.b16 %v35
  %v358 = vunpack.c.l.b16 %v36
  %v359 = vunpack.c.h.b16 %v36
  %v360 = vunpack.c.l.b16 %v37
  %v361 = vunpack.c.h.b16 %v37
  %v362 = vunpack.c.l.b16 %v38
  %v363 = vunpack.c.l.b16 %v39
  %v364 = vunpack.c.h.b16 %v39
  %v365 = vunpack.c.l.b16 %v40
  %v366 = vunpack.c.h.b16 %v40
  %v367 = vunpack.c.l.b16 %v41
  %v368 = vunpack.c.h.b16 %v41
  %v369 = vunpack.c.l.b16 %v42
  %v370 = vunpack.c.h.b16 %v42
  %v371 = vunpack.c.l.b16 %v43
  %v372 = vunpack.c.l.b16 %v44
  %v373 = vunpack.c.h.b16 %v44
  %v374 = vunpack.c.l.b16 %v45
  %v375 = vunpack.c.h.b16 %v45
  %v376 = vunpack.c.l.b16 %v46
  %v377 = vunpack.c.h.b16 %v46
  %v378 = vunpack.c.l.b16 %v47
  %v379 = vunpack.c.h.b16 %v47
  %v380 = vunpack.c.l.b16 %v48
  %v381 = vunpack.c.l.b16 %v49
  %v382 = vunpack.c.h.b16 %v49
  %v383 = vunpack.c.l.b16 %v50
  %v384 = vunpack.c.h.b16 %v50
  %v385 = vunpack.c.l.b16 %v51
  %v386 = vunpack.c.h.b16 %v51
  %v387 = vunpack.c.l.b16 %v52
  %v388 = vunpack.c.h.b16 %v52
  %v389 = vunpack.c.l.b16 %v53
  %v390 = vunpack.c.l.b16 %v54
  %v391 = vunpack.c.h.b16 %v54
  %v392 = vunpack.c.l.b16 %v55
  %v393 = vunpack.c.h.b16 %v55
  %v394 = vunpack.c.l.b16 %v56
  %v395 = vunpack.c.h.b16 %v56
  %v396 = vunpack.c.l.b16 %v57
  %v397 = vunpack.c.h.b16 %v57
  %v398 = vunpack.c.l.b16 %v58
  %v399 = vunpack.c.l.b16 %v59
  %v400 = vunpack.c.h.b16 %v59
  %v401 = vunpack.c.l.b16 %v60
  %v402 = vunpack.c.h.b16 %v60
  %v403 = vunpack.c.l.b16 %v61
  %v404 = vunpack.c.h.b16 %v61
  %v405 = vunpack.c.l.b16 %v62
  %v406 = vunpack.c.h.b16 %v62
  %v407 = vunpack.c.l.b16 %v63
  %v408 = vunpack.c.l.b16 %v64
  %v409 = vunpack.c.h.b16 %v64
  %v410 = vunpack.c.l.b16 %v65
  %v411 = vunpack.c.h.b16 %v65
  %v412 = vunpack.c.l.b16 %v66
  %v413 = vunpack.c.h.b16 %v66
  %v414 = vunpack.c.l.b16 %v67
  %v415 = vunpack.c.h.b16 %v67
  %v416 = vunpack.c.l.b16 %v68
  %v417 = vunpack.c.l.b16 %v69
  %v418 = vunpack.c.h.b16 %v69
  %v419 = vunpack.c.l.b16 %v70
  %v420 = vunpack.c.h.b16 %v70
  %v421 = vunpack.c.l.b16 %v71
  %v422 = vunpack.c.h.b16 %v71
  %v423 = vunpack.c.l.b16 %v72
  %v424 = vunpack.c.h.b16 %v72
  %v425 = vunpack.c.l.b16 %v73
  %v426 = vunpack.c.l.b16 %v74
  %v427 = vunpack.c.h.b16 %v74
  %v428 = vunpack.c.l.b16 %v75
  %v429 = vunpack.c.h.b16 %v75
  %v430 = vunpack.c.l.b16 %v76
  %v431 = vunpack.c.h.b16 %v76
  %v432 = vunpack.c.l.b16 %v77
  %v433 = vunpack.c.h.b16 %v77
  %v434 = vunpack.c.l.b16 %v78
  %v435 = vunpack.c.l.b16 %v79
  %v436 = vunpack.c.h.b16 %v79
  %v437 = vunpack.c.l.b16 %v80
  %v438 = vunpack.c.h.b16 %v80
  %v439 = vunpack.c.l.b16 %v81
  %v440 = vunpack.c.h.b16 %v81
  %v441 = vunpack.c.l.b16 %v82
  %v442 = vunpack.c.h.b16 %v82
  %v443 = vunpack.c.l.b16 %v83
  %v444 = vunpack.c.l.b16 %v84
  %v445 = vunpack.c.h.b16 %v84
  %v446 = vunpack.c.l.b16 %v85
  %v447 = vunpack.c.h.b16 %v85
  %v448 = vunpack.c.l.b16 %v86
  %v449 = vunpack.c.h.b16 %v86
  %v450 = vunpack.c.l.b16 %v87
  %v451 = vunpack.c.h.b16 %v87
  %v452 = vunpack.c.l.b16 %v88
  %v453 = vunpack.c.l.b16 %v89
  %v454 = vunpack.c.h.b16 %v89
  %v455 = vunpack.c.l.b16 %v90
  %v456 = vunpack.c.h.b16 %v90
  %v457 = vunpack.c.l.b16 %v91
  %v458 = vunpack.c.h.b16 %v91
  %v459 = vunpack.c.l.b16 %v92
  %v460 = vunpack.c.h.b16 %v92
  %v461 = vunpack.c.l.b16 %v93
  %v462 = vpack.c.b16 %v327, %v318
  %v463 = vpack.c.b16 %v328, %v319
  %v464 = vpack.c.b16 %v329, %v320
  %v465 = vpack.c.b16 %v330, %v321
  %v466 = vpack.c.b16 %v331, %v322
  %v467 = vpack.c.b16 %v332, %v323
  %v468 = vpack.c.b16 %v333, %v324
  %v469 = vpack.c.b16 %v334, %v325
  %v470 = vpack.c.b16 %v335, %v326
  %v471 = vpack.c.b16 %v345, %v336
  %v472 = vpack.c.b16 %v346, %v337
  %v473 = vpack.c.b16 %v347, %v338
  %v474 = vpack.c.b16 %v348, %v339
  %v475 = vpack.c.b16 %v349, %v340
  %v476 = vpack.c.b16 %v350, %v341
  %v477 = vpack.c.b16 %v351, %v342
  %v478 = vpack.c.b16 %v352, %v343
  %v479 = vpack.c.b16 %v353, %v344
  %v480 = vpack.c.b16 %v363, %v354
  %v481 = vpack.c.b16 %v364, %v355
  %v482 = vpack.c.b16 %v365, %v356
  %v483 = vpack.c.b16 %v366, %v357
  %v484 = vpack.c.b16 %v367, %v358
  %v485 = vpack.c.b16 %v368, %v359
  %v486 = vpack.c.b16 %v369, %v360
  %v487 = vpack.c.b16 %v370, %v361
  %v488 = vpack.c.b16 %v371, %v362
  %v489 = vpack.c.b16 %v381, %v372
  %v490 = vpack.c.b16 %v382, %v373
  %v491 = vpack.c.b16 %v383, %v374
  %v492 = vpack.c.b16 %v384, %v375
  %v493 = vpack.c.b16 %v385, %v376
  %v494 = vpack.c.b16 %v386, %v377
  %v495 = vpack.c.b16 %v387, %v378
  %v496 = vpack.c.b16 %v388, %v379
  %v497 = vpack.c.b16 %v389, %v380
  %v498 = vpack.c.b16 %v399, %v390
  %v499 = vpack.c.b16 %v400, %v391
  %v500 = vpack.c.b16 %v401, %v392
  %v501 = vpack.c.b16 %v402, %v393
  %v502 = vpack.c.b16 %v403, %v394
  %v503 = vpack.c.b16 %v404, %v395
  %v504 = vpack.c.b16 %v405, %v396
  %v505 = vpack.c.b16 %v406, %v397
  %v506 = vpack.c.b16 %v407, %v398
  %v507 = vpack.c.b16 %v417, %v408
  %v508 = vpack.c.b16 %v418, %v409
  %v509 = vpack.c.b16 %v419, %v410
  %v510 = vpack.c.b16 %v420, %v411
  %v511 = vpack.c.b16 %v421, %v412
  %v512 = vpack.c.b16 %v422, %v413
  %v513 = vpack.c.b16 %v423, %v414
  %v514 = vpack.c.b16 %v424, %v415
  %v515 = vpack.c.b16 %v425, %v416
  %v516 = vpack.c.b16 %v435, %v426
  %v517 = vpack.c.b16 %v436, %v427
  %v518 = vpack.c.b16 %v437, %v428
  %v519 = vpack.c.b16 %v438, %v429
  %v520 = vpack.c.b16 %v439, %v430
  %v521 = vpack.c.b16 %v440, %v431
  %v522 = vpack.c.b16 %v441, %v432
  %v523 = vpack.c.b16 %v442, %v433
  %v524 = vpack.c.b16 %v443, %v434
  %v525 = vpack.c.b16 %v453, %v444
  %v526 = vpack.c.b16 %v454, %v445
  %v527 = vpack.c.b16 %v455, %v446
  %v528 = vpack.c.b16 %v456, %v447
  %v529 = vpack.c.b16 %v457, %v448
  %v530 = vpack.c.b16 %v458, %v449
  %v531 = vpack.c.b16 %v459, %v450
  %v532 = vpack.c.b16 %v460, %v451
  %v533 = vpack.c.b16 %v461, %v452
  %v750 = vunpack.c.l.b16 %v94
  %v751 = vunpack.c.l.b16 %v95
  %v752 = vunpack.c.l.b16 %v96
  %v753 = vunpack.c.l.b16 %v97
  %v754 = vunpack.c.l.b16 %v98
  %v755 = vunpack.c.l.b16 %v99
  %v756 = vunpack.c.l.b16 %v100
  %v757 = vunpack.c.l.b16 %v101
  %v758 = vunpack.c.l.b16 %v102
  %v759 = vunpack.c.l.b16 %v103
  %v760 = vunpack.c.l.b16 %v104
  %v761 = vunpack.c.l.b16 %v105
  %v762 = vunpack.c.l.b16 %v106
  %v763 = vunpack.c.l.b16 %v107
  %v764 = vunpack.c.l.b16 %v108
  %v765 = vunpack.c.l.b16 %v109
  %v766 = vunpack.c.l.b16 %v110
  %v767 = vunpack.c.l.b16 %v111
  %v768 = vunpack.c.l.b16 %v112
  %v769 = vunpack.c.l.b16 %v113
  %v770 = vunpack.c.l.b16 %v114
  %v771 = vunpack.c.l.b16 %v115
  %v772 = vunpack.c.l.b16 %v116
  %v773 = vunpack.c.l.b16 %v117
  %v774 = vunpack.c.l.b16 %v118
  %v775 = vunpack.c.l.b16 %v119
  %v776 = vunpack.c.l.b16 %v120
  %v777 = vunpack.c.l.b16 %v121
  %v778 = vunpack.c.l.b16 %v122
  %v779 = vunpack.c.l.b16 %v123
  %v780 = vunpack.c.l.b16 %v124
  %v781 = vunpack.c.l.b16 %v125
  %v782 = vunpack.c.l.b16 %v126
  %v783 = vunpack.c.l.b16 %v127
  %v784 = vunpack.c.l.b16 %v128
  %v785 = vunpack.c.l.b16 %v129
  %v786 = vunpack.c.l.b16 %v130
  %v787 = vunpack.c.l.b16 %v131
  %v788 = vunpack.c.l.b16 %v132
  %v789 = vunpack.c.l.b16 %v133
  %v790 = vunpack.c.l.b16 %v134
  %v791 = vunpack.c.l.b16 %v135
  %v792 = vunpack.c.l.b16 %v136
  %v793 = vunpack.c.l.b16 %v137
  %v794 = vunpack.c.l.b16 %v138
  %v795 = vunpack.c.l.b16 %v139
  %v796 = vunpack.c.l.b16 %v140
  %v797 = vunpack.c.l.b16 %v141
  %v798 = vunpack.c.l.b16 %v142
  %v799 = vunpack.c.l.b16 %v143
  %v800 = vunpack.c.l.b16 %v144
  %v801 = vunpack.c.l.b16 %v145
  %v802 = vunpack.c.l.b16 %v146
  %v803 = vunpack.c.l.b16 %v147
  %v804 = vunpack.c.l.b16 %v148
  %v805 = vunpack.c.l.b16 %v149
  %v806 = vunpack.c.l.b16 %v150
  %v807 = vunpack.c.l.b16 %v151
  %v808 = vunpack.c.l.b16 %v152
  %v809 = vunpack.c.l.b16 %v153
  %v810 = vunpack.c.l.b16 %v154
  %v811 = vunpack.c.l.b16 %v155
  %v812 = vunpack.c.l.b16 %v156
  %v813 = vunpack.c.l.b16 %v157
  %v814 = vunpack.c.l.b16 %v158
  %v815 = vunpack.c.l.b16 %v159
  %v816 = vunpack.c.l.b16 %v160
  %v817 = vunpack.c.l.b16 %v161
  %v818 = vunpack.c.l.b16 %v162
  %v819 = vunpack.c.l.b16 %v163
  %v820 = vunpack.c.l.b16 %v164
  %v821 = vunpack.c.l.b16 %v165
  %v822 = vunpack.c.l.b16 %v166
  %v823 = vunpack.c.l.b16 %v167
  %v824 = vunpack.c.l.b16 %v168
  %v825 = vunpack.c.l.b16 %v169
  %v826 = vunpack.c.l.b16 %v170
  %v827 = vunpack.c.l.b16 %v171
  %v828 = vunpack.c.l.b16 %v172
  %v829 = vunpack.c.l.b16 %v173
  %v830 = vunpack.c.l.b16 %v174
  %v831 = vunpack.c.l.b16 %v175
  %v832 = vunpack.c.l.b16 %v176
  %v833 = vunpack.c.l.b16 %v177
  %v834 = vunpack.c.l.b16 %v178
  %v835 = vunpack.c.l.b16 %v179
  %v836 = vunpack.c.l.b16 %v180
  %v837 = vunpack.c.l.b16 %v181
  %v838 = vunpack.c.l.b16 %v182
  %v839 = vunpack.c.l.b16 %v183
  %v840 = vunpack.c.l.b16 %v184
  %v841 = vunpack.c.l.b16 %v185
  %v842 = vunpack.c.l.b16 %v186
  %v843 = vunpack.c.l.b16 %v187
  %v844 = vunpack.c.l.b16 %v188
  %v845 = vunpack.c.l.b16 %v189
  %v846 = vunpack.c.l.b16 %v190
  %v847 = vunpack.c.l.b16 %v191
  %v848 = vunpack.c.l.b16 %v192
  %v849 = vunpack.c.l.b16 %v193
  %v850 = vunpack.c.l.b16 %v194
  %v851 = vunpack.c.l.b16 %v195
  %v852 = vunpack.c.l.b16 %v196
  %v853 = vunpack.c.l.b16 %v197
  %v854 = vunpack.c.l.b16 %v198
  %v855 = vunpack.c.l.b16 %v199
  %v856 = vunpack.c.l.b16 %v200
  %v857 = vunpack.c.l.b16 %v201
  %v858 = vunpack.c.l.b16 %v202
  %v859 = vunpack.c.l.b16 %v203
  %v860 = vunpack.c.l.b16 %v204
  %v861 = vunpack.c.l.b16 %v205
  %v862 = vunpack.c.l.b16 %v206
  %v863 = vunpack.c.l.b16 %v207
  %v864 = vunpack.c.l.b16 %v208
  %v865 = vunpack.c.l.b16 %v209
  %v866 = vunpack.c.l.b16 %v210
  %v867 = vunpack.c.l.b16 %v211
  %v868 = vunpack.c.l.b16 %v212
  %v869 = vunpack.c.l.b16 %v213
  %v870 = vunpack.c.l.b16 %v214
  %v871 = vunpack.c.l.b16 %v215
  %v872 = vunpack.c.l.b16 %v216
  %v873 = vunpack.c.l.b16 %v217
  %v874 = vunpack.c.l.b16 %v218
  %v875 = vunpack.c.l.b16 %v219
  %v876 = vunpack.c.l.b16 %v220
  %v877 = vunpack.c.l.b16 %v221
  %v878 = vunpack.c.l.b16 %v222
  %v879 = vunpack.c.l.b16 %v223
  %v880 = vunpack.c.l.b16 %v224
  %v881 = vunpack.c.l.b16 %v225
  %v882 = vunpack.c.l.b16 %v226
  %v883 = vunpack.c.l.b16 %v227
  %v884 = vunpack.c.l.b16 %v228
  %v885 = vunpack.c.l.b16 %v229
  %v886 = vunpack.c.l.b16 %v230
  %v887 = vunpack.c.l.b16 %v231
  %v888 = vunpack.c.l.b16 %v232
  %v889 = vunpack.c.l.b16 %v233
  %v890 = vunpack.c.l.b16 %v234
  %v891 = vunpack.c.l.b16 %v235
  %v892 = vunpack.c.l.b16 %v236
  %v893 = vunpack.c.l.b16 %v237
  %v894 = vpack.c.b16 %v751, %v750
  %v895 = vpack.c.b16 %v753, %v752
  %v896 = vpack.c.b16 %v755, %v754
  %v897 = vpack.c.b16 %v757, %v756
  %v898 = vpack.c.b16 %v759, %v758
  %v899 = vpack.c.b16 %v761, %v760
  %v900 = vpack.c.b16 %v763, %v762
  %v901 = vpack.c.b16 %v765, %v764
  %v902 = vpack.c.b16 %v767, %v766
  %v903 = vpack.c.b16 %v769, %v768
  %v904 = vpack.c.b16 %v771, %v770
  %v905 = vpack.c.b16 %v773, %v772
  %v906 = vpack.c.b16 %v775, %v774
  %v907 = vpack.c.b16 %v777, %v776
  %v908 = vpack.c.b16 %v779, %v778
  %v909 = vpack.c.b16 %v781, %v780
  %v910 = vpack.c.b16 %v783, %v782
  %v911 = vpack.c.b16 %v785, %v784
  %v912 = vpack.c.b16 %v787, %v786
  %v913 = vpack.c.b16 %v789, %v788
  %v914 = vpack.c.b16 %v791, %v790
  %v915 = vpack.c.b16 %v793, %v792
  %v916 = vpack.c.b16 %v795, %v794
  %v917 = vpack.c.b16 %v797, %v796
  %v918 = vpack.c.b16 %v799, %v798
  %v919 = vpack.c.b16 %v801, %v800
  %v920 = vpack.c.b16 %v803, %v802
  %v921 = vpack.c.b16 %v805, %v804
  %v922 = vpack.c.b16 %v807, %v806
  %v923 = vpack.c.b16 %v809, %v808
  %v924 = vpack.c.b16 %v811, %v810
  %v925 = vpack.c.b16 %v813, %v812
  %v926 = vpack.c.b16 %v815, %v814
  %v927 = vpack.c.b16 %v817, %v816
  %v928 = vpack.c.b16 %v819, %v818
  %v929 = vpack.c.b16 %v821, %v820
  %v930 = vpack.c.b16 %v823, %v822
  %v931 = vpack.c.b16 %v825, %v824
  %v932 = vpack.c.b16 %v827, %v826
  %v933 = vpack.c.b16 %v829, %v828
  %v934 = vpack.c.b16 %v831, %v830
  %v935 = vpack.c.b16 %v833, %v832
  %v936 = vpack.c.b16 %v835, %v834
  %v937 = vpack.c.b16 %v837, %v836
  %v938 = vpack.c.b16 %v839, %v838
  %v939 = vpack.c.b16 %v841, %v840
  %v940 = vpack.c.b16 %v843, %v842
  %v941 = vpack.c.b16 %v845, %v844
  %v942 = vpack.c.b16 %v847, %v846
  %v943 = vpack.c.b16 %v849, %v848
  %v944 = vpack.c.b16 %v851, %v850
  %v945 = vpack.c.b16 %v853, %v852
  %v946 = vpack.c.b16 %v855, %v854
  %v947 = vpack.c.b16 %v857, %v856
  %v948 = vpack.c.b16 %v859, %v858
  %v949 = vpack.c.b16 %v861, %v860
  %v950 = vpack.c.b16 %v863, %v862
  %v951 = vpack.c.b16 %v865, %v864
  %v952 = vpack.c.b16 %v867, %v866
  %v953 = vpack.c.b16 %v869, %v868
  %v954 = vpack.c.b16 %v871, %v870
  %v955 = vpack.c.b16 %v873, %v872
  %v956 = vpack.c.b16 %v875, %v874
  %v957 = vpack.c.b16 %v877, %v876
  %v958 = vpack.c.b16 %v879, %v878
  %v959 = vpack.c.b16 %v881, %v880
  %v960 = vpack.c.b16 %v883, %v882
  %v961 = vpack.c.b16 %v885, %v884
  %v962 = vpack.c.b16 %v887, %v886
  %v963 = vpack.c.b16 %v889, %v888
  %v964 = vpack.c.b16 %v891, %v890
  %v965 = vpack.c.b16 %v893, %v892
  %1038 = vmatprep.subr.bf16.mxu0 0
  %1039 = vmatpush1.bf16.msra.mxu0 %v894
  %1040 = vmatprep.subr.bf16.mxu0 0
  %1041 = vmatpush1.bf16.msra.mxu0 %v895
  %1042 = vmatprep.subr.bf16.mxu0 0
  %1043 = vmatpush1.bf16.msra.mxu0 %v896
  %1044 = vmatprep.subr.bf16.mxu0 0
  %1045 = vmatpush1.bf16.msra.mxu0 %v897
  %1046 = vmatprep.subr.bf16.mxu0 0
  %1047 = vmatpush1.bf16.msra.mxu0 %v898
  %1048 = vmatprep.subr.bf16.mxu0 0
  %1049 = vmatpush1.bf16.msra.mxu0 %v899
  %1050 = vmatprep.subr.bf16.mxu0 0
  %1051 = vmatpush1.bf16.msra.mxu0 %v900
  %1052 = vmatprep.subr.bf16.mxu0 0
  %1053 = vmatpush1.bf16.msra.mxu0 %v901
  %1054 = vmatprep.subr.bf16.mxu0 0
  %1055 = vmatpush1.bf16.msra.mxu0 %v902
  %1056 = vmatprep.subr.bf16.mxu0 0
  %1057 = vmatpush1.bf16.msra.mxu0 %v903
  %1058 = vmatprep.subr.bf16.mxu0 0
  %1059 = vmatpush1.bf16.msra.mxu0 %v904
  %1060 = vmatprep.subr.bf16.mxu0 0
  %1061 = vmatpush1.bf16.msra.mxu0 %v905
  %1062 = vmatprep.subr.bf16.mxu0 0
  %1063 = vmatpush1.bf16.msra.mxu0 %v906
  %1064 = vmatprep.subr.bf16.mxu0 0
  %1065 = vmatpush1.bf16.msra.mxu0 %v907
  %1066 = vmatprep.subr.bf16.mxu0 0
  %1067 = vmatpush1.bf16.msra.mxu0 %v908
  %1068 = vmatprep.subr.bf16.mxu0 0
  %1069 = vmatpush1.bf16.msra.mxu0 %v909
  %1070 = vmatprep.mubr.bf16.mxu0 %v463
  %1071 = vmatmul.mubr.bf16.gmra.mrb[0].mxu0 %v462
  %v1072 = vpop.f32.mrb[0].mxu0
  %v1073 = vadd.f32 0.0, %v1072
  %v1074 = vpop.f32.mrb[0].mxu0
  %v1075 = vpop.f32.mrb[0].mxu0
  %v1076 = vadd.f32 0.0, %v1075
  %v1077 = vpop.f32.mrb[0].mxu0
  %1078 = vmatprep.mubr.bf16.mxu0 %v472
  %1079 = vmatmul.mubr.bf16.gmra.mrb[0].mxu0 %v471
  %v1080 = vpop.f32.mrb[0].mxu0
  %v1081 = vadd.f32 0.0, %v1080
  %v1082 = vpop.f32.mrb[0].mxu0
  %v1083 = vpop.f32.mrb[0].mxu0
  %v1084 = vadd.f32 0.0, %v1083
  %v1085 = vpop.f32.mrb[0].mxu0
  %1086 = vmatprep.mubr.bf16.mxu0 %v481
  %1087 = vmatmul.mubr.bf16.gmra.mrb[0].mxu0 %v480
  %v1088 = vpop.f32.mrb[0].mxu0
  %v1089 = vadd.f32 0.0, %v1088
  %v1090 = vpop.f32.mrb[0].mxu0
  %v1091 = vpop.f32.mrb[0].mxu0
  %v1092 = vadd.f32 0.0, %v1091
  %v1093 = vpop.f32.mrb[0].mxu0
  %1094 = vmatprep.mubr.bf16.mxu0 %v490
  %1095 = vmatmul.mubr.bf16.gmra.mrb[0].mxu0 %v489
  %v1096 = vpop.f32.mrb[0].mxu0
  %v1097 = vadd.f32 0.0, %v1096
  %v1098 = vpop.f32.mrb[0].mxu0
  %v1099 = vpop.f32.mrb[0].mxu0
  %v1100 = vadd.f32 0.0, %v1099
  %v1101 = vpop.f32.mrb[0].mxu0
  %1102 = vmatprep.mubr.bf16.mxu0 %v499
  %1103 = vmatmul.mubr.bf16.gmra.mrb[0].mxu0 %v498
  %v1104 = vpop.f32.mrb[0].mxu0
  %v1105 = vadd.f32 0.0, %v1104
  %v1106 = vpop.f32.mrb[0].mxu0
  %v1107 = vpop.f32.mrb[0].mxu0
  %v1108 = vadd.f32 0.0, %v1107
  %v1109 = vpop.f32.mrb[0].mxu0
  %1110 = vmatprep.mubr.bf16.mxu0 %v508
  %1111 = vmatmul.mubr.bf16.gmra.mrb[0].mxu0 %v507
  %v1112 = vpop.f32.mrb[0].mxu0
  %v1113 = vadd.f32 0.0, %v1112
  %v1114 = vpop.f32.mrb[0].mxu0
  %v1115 = vpop.f32.mrb[0].mxu0
  %v1116 = vadd.f32 0.0, %v1115
  %v1117 = vpop.f32.mrb[0].mxu0
  %1118 = vmatprep.mubr.bf16.mxu0 %v517
  %1119 = vmatmul.mubr.bf16.gmra.mrb[0].mxu0 %v516
  %v1120 = vpop.f32.mrb[0].mxu0
  %v1121 = vadd.f32 0.0, %v1120
  %v1122 = vpop.f32.mrb[0].mxu0
  %v1123 = vpop.f32.mrb[0].mxu0
  %v1124 = vadd.f32 0.0, %v1123
  %v1125 = vpop.f32.mrb[0].mxu0
  %1126 = vmatprep.mubr.bf16.mxu0 %v526
  %1127 = vmatmul.mubr.bf16.gmra.mrb[0].mxu0 %v525
  %v1128 = vpop.f32.mrb[0].mxu0
  %v1129 = vadd.f32 0.0, %v1128
  %v1130 = vpop.f32.mrb[0].mxu0
  %v1131 = vpop.f32.mrb[0].mxu0
  %v1132 = vadd.f32 0.0, %v1131
  %v1133 = vpop.f32.mrb[0].mxu0
  %1134 = vdwg.mxu0
  %1135 = vmatprep.subr.bf16.mxu0 0
  %1136 = vmatpush1.bf16.msra.mxu0 %v910
  %1137 = vmatprep.subr.bf16.mxu0 0
  %1138 = vmatpush1.bf16.msra.mxu0 %v911
  %1139 = vmatprep.subr.bf16.mxu0 0
  %1140 = vmatpush1.bf16.msra.mxu0 %v912
  %1141 = vmatprep.subr.bf16.mxu0 0
  %1142 = vmatpush1.bf16.msra.mxu0 %v913
  %1143 = vmatprep.subr.bf16.mxu0 0
  %1144 = vmatpush1.bf16.msra.mxu0 %v914
  %1145 = vmatprep.subr.bf16.mxu0 0
  %1146 = vmatpush1.bf16.msra.mxu0 %v915
  %1147 = vmatprep.subr.bf16.mxu0 0
  %1148 = vmatpush1.bf16.msra.mxu0 %v916
  %1149 = vmatprep.subr.bf16.mxu0 0
  %1150 = vmatpush1.bf16.msra.mxu0 %v917
  %1151 = vmatprep.subr.bf16.mxu0 0
  %1152 = vmatpush1.bf16.msra.mxu0 %v918
  %1153 = vmatprep.subr.bf16.mxu0 0
  %1154 = vmatpush1.bf16.msra.mxu0 %v919
  %1155 = vmatprep.subr.bf16.mxu0 0
  %1156 = vmatpush1.bf16.msra.mxu0 %v920
  %1157 = vmatprep.subr.bf16.mxu0 0
  %1158 = vmatpush1.bf16.msra.mxu0 %v921
  %1159 = vmatprep.subr.bf16.mxu0 0
  %1160 = vmatpush1.bf16.msra.mxu0 %v922
  %1161 = vmatprep.subr.bf16.mxu0 0
  %1162 = vmatpush1.bf16.msra.mxu0 %v923
  %1163 = vmatprep.subr.bf16.mxu0 0
  %1164 = vmatpush1.bf16.msra.mxu0 %v924
  %1165 = vmatprep.subr.bf16.mxu0 0
  %1166 = vmatpush1.bf16.msra.mxu0 %v925
  %1167 = vmatprep.mubr.bf16.mxu0 %v465
  %1168 = vmatmul.mubr.bf16.gmra.mrb[0].mxu0 %v464
  %v1169 = vpop.f32.mrb[0].mxu0
  %v1170 = vadd.f32 %v1073, %v1169
  %v1171 = vpop.f32.mrb[0].mxu0
  %v1172 = vpop.f32.mrb[0].mxu0
  %v1173 = vadd.f32 %v1076, %v1172
  %v1174 = vpop.f32.mrb[0].mxu0
  %1175 = vmatprep.mubr.bf16.mxu0 %v474
  %1176 = vmatmul.mubr.bf16.gmra.mrb[0].mxu0 %v473
  %v1177 = vpop.f32.mrb[0].mxu0
  %v1178 = vadd.f32 %v1081, %v1177
  %v1179 = vpop.f32.mrb[0].mxu0
  %v1180 = vpop.f32.mrb[0].mxu0
  %v1181 = vadd.f32 %v1084, %v1180
  %v1182 = vpop.f32.mrb[0].mxu0
  %1183 = vmatprep.mubr.bf16.mxu0 %v483
  %1184 = vmatmul.mubr.bf16.gmra.mrb[0].mxu0 %v482
  %v1185 = vpop.f32.mrb[0].mxu0
  %v1186 = vadd.f32 %v1089, %v1185
  %v1187 = vpop.f32.mrb[0].mxu0
  %v1188 = vpop.f32.mrb[0].mxu0
  %v1189 = vadd.f32 %v1092, %v1188
  %v1190 = vpop.f32.mrb[0].mxu0
  %1191 = vmatprep.mubr.bf16.mxu0 %v492
  %1192 = vmatmul.mubr.bf16.gmra.mrb[0].mxu0 %v491
  %v1193 = vpop.f32.mrb[0].mxu0
  %v1194 = vadd.f32 %v1097, %v1193
  %v1195 = vpop.f32.mrb[0].mxu0
  %v1196 = vpop.f32.mrb[0].mxu0
  %v1197 = vadd.f32 %v1100, %v1196
  %v1198 = vpop.f32.mrb[0].mxu0
  %1199 = vmatprep.mubr.bf16.mxu0 %v501
  %1200 = vmatmul.mubr.bf16.gmra.mrb[0].mxu0 %v500
  %v1201 = vpop.f32.mrb[0].mxu0
  %v1202 = vadd.f32 %v1105, %v1201
  %v1203 = vpop.f32.mrb[0].mxu0
  %v1204 = vpop.f32.mrb[0].mxu0
  %v1205 = vadd.f32 %v1108, %v1204
  %v1206 = vpop.f32.mrb[0].mxu0
  %1207 = vmatprep.mubr.bf16.mxu0 %v510
  %1208 = vmatmul.mubr.bf16.gmra.mrb[0].mxu0 %v509
  %v1209 = vpop.f32.mrb[0].mxu0
  %v1210 = vadd.f32 %v1113, %v1209
  %v1211 = vpop.f32.mrb[0].mxu0
  %v1212 = vpop.f32.mrb[0].mxu0
  %v1213 = vadd.f32 %v1116, %v1212
  %v1214 = vpop.f32.mrb[0].mxu0
  %1215 = vmatprep.mubr.bf16.mxu0 %v519
  %1216 = vmatmul.mubr.bf16.gmra.mrb[0].mxu0 %v518
  %v1217 = vpop.f32.mrb[0].mxu0
  %v1218 = vadd.f32 %v1121, %v1217
  %v1219 = vpop.f32.mrb[0].mxu0
  %v1220 = vpop.f32.mrb[0].mxu0
  %v1221 = vadd.f32 %v1124, %v1220
  %v1222 = vpop.f32.mrb[0].mxu0
  %1223 = vmatprep.mubr.bf16.mxu0 %v528
  %1224 = vmatmul.mubr.bf16.gmra.mrb[0].mxu0 %v527
  %v1225 = vpop.f32.mrb[0].mxu0
  %v1226 = vadd.f32 %v1129, %v1225
  %v1227 = vpop.f32.mrb[0].mxu0
  %v1228 = vpop.f32.mrb[0].mxu0
  %v1229 = vadd.f32 %v1132, %v1228
  %v1230 = vpop.f32.mrb[0].mxu0
  %1231 = vdwg.mxu0
  %1232 = vmatprep.subr.bf16.mxu0 0
  %1233 = vmatpush1.bf16.msra.mxu0 %v926
  %1234 = vmatprep.subr.bf16.mxu0 0
  %1235 = vmatpush1.bf16.msra.mxu0 %v927
  %1236 = vmatprep.subr.bf16.mxu0 0
  %1237 = vmatpush1.bf16.msra.mxu0 %v928
  %1238 = vmatprep.subr.bf16.mxu0 0
  %1239 = vmatpush1.bf16.msra.mxu0 %v929
  %1240 = vmatprep.subr.bf16.mxu0 0
  %1241 = vmatpush1.bf16.msra.mxu0 %v930
  %1242 = vmatprep.subr.bf16.mxu0 0
  %1243 = vmatpush1.bf16.msra.mxu0 %v931
  %1244 = vmatprep.subr.bf16.mxu0 0
  %1245 = vmatpush1.bf16.msra.mxu0 %v932
  %1246 = vmatprep.subr.bf16.mxu0 0
  %1247 = vmatpush1.bf16.msra.mxu0 %v933
  %1248 = vmatprep.subr.bf16.mxu0 0
  %1249 = vmatpush1.bf16.msra.mxu0 %v934
  %1250 = vmatprep.subr.bf16.mxu0 0
  %1251 = vmatpush1.bf16.msra.mxu0 %v935
  %1252 = vmatprep.subr.bf16.mxu0 0
  %1253 = vmatpush1.bf16.msra.mxu0 %v936
  %1254 = vmatprep.subr.bf16.mxu0 0
  %1255 = vmatpush1.bf16.msra.mxu0 %v937
  %1256 = vmatprep.subr.bf16.mxu0 0
  %1257 = vmatpush1.bf16.msra.mxu0 %v938
  %1258 = vmatprep.subr.bf16.mxu0 0
  %1259 = vmatpush1.bf16.msra.mxu0 %v939
  %1260 = vmatprep.subr.bf16.mxu0 0
  %1261 = vmatpush1.bf16.msra.mxu0 %v940
  %1262 = vmatprep.subr.bf16.mxu0 0
  %1263 = vmatpush1.bf16.msra.mxu0 %v941
  %1264 = vmatprep.mubr.bf16.mxu0 %v467
  %1265 = vmatmul.mubr.bf16.gmra.mrb[0].mxu0 %v466
  %v1266 = vpop.f32.mrb[0].mxu0
  %v1267 = vadd.f32 %v1170, %v1266
  %v1268 = vpop.f32.mrb[0].mxu0
  %v1269 = vpop.f32.mrb[0].mxu0
  %v1270 = vadd.f32 %v1173, %v1269
  %v1271 = vpop.f32.mrb[0].mxu0
  %1272 = vmatprep.mubr.bf16.mxu0 %v476
  %1273 = vmatmul.mubr.bf16.gmra.mrb[0].mxu0 %v475
  %v1274 = vpop.f32.mrb[0].mxu0
  %v1275 = vadd.f32 %v1178, %v1274
  %v1276 = vpop.f32.mrb[0].mxu0
  %v1277 = vpop.f32.mrb[0].mxu0
  %v1278 = vadd.f32 %v1181, %v1277
  %v1279 = vpop.f32.mrb[0].mxu0
  %1280 = vmatprep.mubr.bf16.mxu0 %v485
  %1281 = vmatmul.mubr.bf16.gmra.mrb[0].mxu0 %v484
  %v1282 = vpop.f32.mrb[0].mxu0
  %v1283 = vadd.f32 %v1186, %v1282
  %v1284 = vpop.f32.mrb[0].mxu0
  %v1285 = vpop.f32.mrb[0].mxu0
  %v1286 = vadd.f32 %v1189, %v1285
  %v1287 = vpop.f32.mrb[0].mxu0
  %1288 = vmatprep.mubr.bf16.mxu0 %v494
  %1289 = vmatmul.mubr.bf16.gmra.mrb[0].mxu0 %v493
  %v1290 = vpop.f32.mrb[0].mxu0
  %v1291 = vadd.f32 %v1194, %v1290
  %v1292 = vpop.f32.mrb[0].mxu0
  %v1293 = vpop.f32.mrb[0].mxu0
  %v1294 = vadd.f32 %v1197, %v1293
  %v1295 = vpop.f32.mrb[0].mxu0
  %1296 = vmatprep.mubr.bf16.mxu0 %v503
  %1297 = vmatmul.mubr.bf16.gmra.mrb[0].mxu0 %v502
  %v1298 = vpop.f32.mrb[0].mxu0
  %v1299 = vadd.f32 %v1202, %v1298
  %v1300 = vpop.f32.mrb[0].mxu0
  %v1301 = vpop.f32.mrb[0].mxu0
  %v1302 = vadd.f32 %v1205, %v1301
  %v1303 = vpop.f32.mrb[0].mxu0
  %1304 = vmatprep.mubr.bf16.mxu0 %v512
  %1305 = vmatmul.mubr.bf16.gmra.mrb[0].mxu0 %v511
  %v1306 = vpop.f32.mrb[0].mxu0
  %v1307 = vadd.f32 %v1210, %v1306
  %v1308 = vpop.f32.mrb[0].mxu0
  %v1309 = vpop.f32.mrb[0].mxu0
  %v1310 = vadd.f32 %v1213, %v1309
  %v1311 = vpop.f32.mrb[0].mxu0
  %1312 = vmatprep.mubr.bf16.mxu0 %v521
  %1313 = vmatmul.mubr.bf16.gmra.mrb[0].mxu0 %v520
  %v1314 = vpop.f32.mrb[0].mxu0
  %v1315 = vadd.f32 %v1218, %v1314
  %v1316 = vpop.f32.mrb[0].mxu0
  %v1317 = vpop.f32.mrb[0].mxu0
  %v1318 = vadd.f32 %v1221, %v1317
  %v1319 = vpop.f32.mrb[0].mxu0
  %1320 = vmatprep.mubr.bf16.mxu0 %v530
  %1321 = vmatmul.mubr.bf16.gmra.mrb[0].mxu0 %v529
  %v1322 = vpop.f32.mrb[0].mxu0
  %v1323 = vadd.f32 %v1226, %v1322
  %v1324 = vpop.f32.mrb[0].mxu0
  %v1325 = vpop.f32.mrb[0].mxu0
  %v1326 = vadd.f32 %v1229, %v1325
  %v1327 = vpop.f32.mrb[0].mxu0
  %1328 = vdwg.mxu0
  %1329 = vmatprep.subr.bf16.mxu0 0
  %1330 = vmatpush1.bf16.msra.mxu0 %v942
  %1331 = vmatprep.subr.bf16.mxu0 0
  %1332 = vmatpush1.bf16.msra.mxu0 %v943
  %1333 = vmatprep.subr.bf16.mxu0 0
  %1334 = vmatpush1.bf16.msra.mxu0 %v944
  %1335 = vmatprep.subr.bf16.mxu0 0
  %1336 = vmatpush1.bf16.msra.mxu0 %v945
  %1337 = vmatprep.subr.bf16.mxu0 0
  %1338 = vmatpush1.bf16.msra.mxu0 %v946
  %1339 = vmatprep.subr.bf16.mxu0 0
  %1340 = vmatpush1.bf16.msra.mxu0 %v947
  %1341 = vmatprep.subr.bf16.mxu0 0
  %1342 = vmatpush1.bf16.msra.mxu0 %v948
  %1343 = vmatprep.subr.bf16.mxu0 0
  %1344 = vmatpush1.bf16.msra.mxu0 %v949
  %1345 = vmatprep.subr.bf16.mxu0 0
  %1346 = vmatpush1.bf16.msra.mxu0 %v950
  %1347 = vmatprep.subr.bf16.mxu0 0
  %1348 = vmatpush1.bf16.msra.mxu0 %v951
  %1349 = vmatprep.subr.bf16.mxu0 0
  %1350 = vmatpush1.bf16.msra.mxu0 %v952
  %1351 = vmatprep.subr.bf16.mxu0 0
  %1352 = vmatpush1.bf16.msra.mxu0 %v953
  %1353 = vmatprep.subr.bf16.mxu0 0
  %1354 = vmatpush1.bf16.msra.mxu0 %v954
  %1355 = vmatprep.subr.bf16.mxu0 0
  %1356 = vmatpush1.bf16.msra.mxu0 %v955
  %1357 = vmatprep.subr.bf16.mxu0 0
  %1358 = vmatpush1.bf16.msra.mxu0 %v956
  %1359 = vmatprep.subr.bf16.mxu0 0
  %1360 = vmatpush1.bf16.msra.mxu0 %v957
  %1361 = vmatprep.mubr.bf16.mxu0 %v469
  %1362 = vmatmul.mubr.bf16.gmra.mrb[0].mxu0 %v468
  %v1363 = vpop.f32.mrb[0].mxu0
  %v1364 = vadd.f32 %v1267, %v1363
  %v1365 = vpop.f32.mrb[0].mxu0
  %v1366 = vpop.f32.mrb[0].mxu0
  %v1367 = vadd.f32 %v1270, %v1366
  %v1368 = vpop.f32.mrb[0].mxu0
  %1369 = vmatprep.mubr.bf16.mxu0 %v478
  %1370 = vmatmul.mubr.bf16.gmra.mrb[0].mxu0 %v477
  %v1371 = vpop.f32.mrb[0].mxu0
  %v1372 = vadd.f32 %v1275, %v1371
  %v1373 = vpop.f32.mrb[0].mxu0
  %v1374 = vpop.f32.mrb[0].mxu0
  %v1375 = vadd.f32 %v1278, %v1374
  %v1376 = vpop.f32.mrb[0].mxu0
  %1377 = vmatprep.mubr.bf16.mxu0 %v487
  %1378 = vmatmul.mubr.bf16.gmra.mrb[0].mxu0 %v486
  %v1379 = vpop.f32.mrb[0].mxu0
  %v1380 = vadd.f32 %v1283, %v1379
  %v1381 = vpop.f32.mrb[0].mxu0
  %v1382 = vpop.f32.mrb[0].mxu0
  %v1383 = vadd.f32 %v1286, %v1382
  %v1384 = vpop.f32.mrb[0].mxu0
  %1385 = vmatprep.mubr.bf16.mxu0 %v496
  %1386 = vmatmul.mubr.bf16.gmra.mrb[0].mxu0 %v495
  %v1387 = vpop.f32.mrb[0].mxu0
  %v1388 = vadd.f32 %v1291, %v1387
  %v1389 = vpop.f32.mrb[0].mxu0
  %v1390 = vpop.f32.mrb[0].mxu0
  %v1391 = vadd.f32 %v1294, %v1390
  %v1392 = vpop.f32.mrb[0].mxu0
  %1393 = vmatprep.mubr.bf16.mxu0 %v505
  %1394 = vmatmul.mubr.bf16.gmra.mrb[0].mxu0 %v504
  %v1395 = vpop.f32.mrb[0].mxu0
  %v1396 = vadd.f32 %v1299, %v1395
  %v1397 = vpop.f32.mrb[0].mxu0
  %v1398 = vpop.f32.mrb[0].mxu0
  %v1399 = vadd.f32 %v1302, %v1398
  %v1400 = vpop.f32.mrb[0].mxu0
  %1401 = vmatprep.mubr.bf16.mxu0 %v514
  %1402 = vmatmul.mubr.bf16.gmra.mrb[0].mxu0 %v513
  %v1403 = vpop.f32.mrb[0].mxu0
  %v1404 = vadd.f32 %v1307, %v1403
  %v1405 = vpop.f32.mrb[0].mxu0
  %v1406 = vpop.f32.mrb[0].mxu0
  %v1407 = vadd.f32 %v1310, %v1406
  %v1408 = vpop.f32.mrb[0].mxu0
  %1409 = vmatprep.mubr.bf16.mxu0 %v523
  %1410 = vmatmul.mubr.bf16.gmra.mrb[0].mxu0 %v522
  %v1411 = vpop.f32.mrb[0].mxu0
  %v1412 = vadd.f32 %v1315, %v1411
  %v1413 = vpop.f32.mrb[0].mxu0
  %v1414 = vpop.f32.mrb[0].mxu0
  %v1415 = vadd.f32 %v1318, %v1414
  %v1416 = vpop.f32.mrb[0].mxu0
  %1417 = vmatprep.mubr.bf16.mxu0 %v532
  %1418 = vmatmul.mubr.bf16.gmra.mrb[0].mxu0 %v531
  %v1419 = vpop.f32.mrb[0].mxu0
  %v1420 = vadd.f32 %v1323, %v1419
  %v1421 = vpop.f32.mrb[0].mxu0
  %v1422 = vpop.f32.mrb[0].mxu0
  %v1423 = vadd.f32 %v1326, %v1422
  %v1424 = vpop.f32.mrb[0].mxu0
  %1425 = vdwg.mxu0
  %1426 = vmatprep.subr.bf16.mxu0 0
  %1427 = vmatpush1.bf16.msra.mxu0 %v958
  %1428 = vmatprep.subr.bf16.mxu0 0
  %1429 = vmatpush1.bf16.msra.mxu0 %v959
  %1430 = vmatprep.subr.bf16.mxu0 0
  %1431 = vmatpush1.bf16.msra.mxu0 %v960
  %1432 = vmatprep.subr.bf16.mxu0 0
  %1433 = vmatpush1.bf16.msra.mxu0 %v961
  %1434 = vmatprep.subr.bf16.mxu0 0
  %1435 = vmatpush1.bf16.msra.mxu0 %v962
  %1436 = vmatprep.subr.bf16.mxu0 0
  %1437 = vmatpush1.bf16.msra.mxu0 %v963
  %1438 = vmatprep.subr.bf16.mxu0 0
  %1439 = vmatpush1.bf16.msra.mxu0 %v964
  %1440 = vmatprep.subr.bf16.mxu0 0
  %1441 = vmatpush1.bf16.msra.mxu0 %v965
  %1442 = vmatprep.subr.bf16.mxu0 0
  %1443 = vmatpush1.bf16.msra.mxu0 0
  %1444 = vmatprep.subr.bf16.mxu0 0
  %1445 = vmatpush1.bf16.msra.mxu0 0
  %1446 = vmatprep.subr.bf16.mxu0 0
  %1447 = vmatpush1.bf16.msra.mxu0 0
  %1448 = vmatprep.subr.bf16.mxu0 0
  %1449 = vmatpush1.bf16.msra.mxu0 0
  %1450 = vmatprep.subr.bf16.mxu0 0
  %1451 = vmatpush1.bf16.msra.mxu0 0
  %1452 = vmatprep.subr.bf16.mxu0 0
  %1453 = vmatpush1.bf16.msra.mxu0 0
  %1454 = vmatprep.subr.bf16.mxu0 0
  %1455 = vmatpush1.bf16.msra.mxu0 0
  %1456 = vmatprep.subr.bf16.mxu0 0
  %1457 = vmatpush1.bf16.msra.mxu0 0
  %1458 = vmatprep.mubr.bf16.mxu0 0
  %1459 = vmatmul.mubr.bf16.gmra.mrb[0].mxu0 %v470
  %v1460 = vpop.f32.mrb[0].mxu0
  %v1461 = vadd.f32 %v1364, %v1460
  %v1462 = vpop.f32.mrb[0].mxu0
  %v1463 = vpop.f32.mrb[0].mxu0
  %v1464 = vadd.f32 %v1367, %v1463
  %v1465 = vpop.f32.mrb[0].mxu0
  %1466 = vmatprep.mubr.bf16.mxu0 0
  %1467 = vmatmul.mubr.bf16.gmra.mrb[0].mxu0 %v479
  %v1468 = vpop.f32.mrb[0].mxu0
  %v1469 = vadd.f32 %v1372, %v1468
  %v1470 = vpop.f32.mrb[0].mxu0
  %v1471 = vpop.f32.mrb[0].mxu0
  %v1472 = vadd.f32 %v1375, %v1471
  %v1473 = vpop.f32.mrb[0].mxu0
  %1474 = vmatprep.mubr.bf16.mxu0 0
  %1475 = vmatmul.mubr.bf16.gmra.mrb[0].mxu0 %v488
  %v1476 = vpop.f32.mrb[0].mxu0
  %v1477 = vadd.f32 %v1380, %v1476
  %v1478 = vpop.f32.mrb[0].mxu0
  %v1479 = vpop.f32.mrb[0].mxu0
  %v1480 = vadd.f32 %v1383, %v1479
  %v1481 = vpop.f32.mrb[0].mxu0
  %1482 = vmatprep.mubr.bf16.mxu0 0
  %1483 = vmatmul.mubr.bf16.gmra.mrb[0].mxu0 %v497
  %v1484 = vpop.f32.mrb[0].mxu0
  %v1485 = vadd.f32 %v1388, %v1484
  %v1486 = vpop.f32.mrb[0].mxu0
  %v1487 = vpop.f32.mrb[0].mxu0
  %v1488 = vadd.f32 %v1391, %v1487
  %v1489 = vpop.f32.mrb[0].mxu0
  %1490 = vmatprep.mubr.bf16.mxu0 0
  %1491 = vmatmul.mubr.bf16.gmra.mrb[0].mxu0 %v506
  %v1492 = vpop.f32.mrb[0].mxu0
  %v1493 = vadd.f32 %v1396, %v1492
  %v1494 = vpop.f32.mrb[0].mxu0
  %v1495 = vpop.f32.mrb[0].mxu0
  %v1496 = vadd.f32 %v1399, %v1495
  %v1497 = vpop.f32.mrb[0].mxu0
  %1498 = vmatprep.mubr.bf16.mxu0 0
  %1499 = vmatmul.mubr.bf16.gmra.mrb[0].mxu0 %v515
  %v1500 = vpop.f32.mrb[0].mxu0
  %v1501 = vadd.f32 %v1404, %v1500
  %v1502 = vpop.f32.mrb[0].mxu0
  %v1503 = vpop.f32.mrb[0].mxu0
  %v1504 = vadd.f32 %v1407, %v1503
  %v1505 = vpop.f32.mrb[0].mxu0
  %1506 = vmatprep.mubr.bf16.mxu0 0
  %1507 = vmatmul.mubr.bf16.gmra.mrb[0].mxu0 %v524
  %v1508 = vpop.f32.mrb[0].mxu0
  %v1509 = vadd.f32 %v1412, %v1508
  %v1510 = vpop.f32.mrb[0].mxu0
  %v1511 = vpop.f32.mrb[0].mxu0
  %v1512 = vadd.f32 %v1415, %v1511
  %v1513 = vpop.f32.mrb[0].mxu0
  %1514 = vmatprep.mubr.bf16.mxu0 0
  %1515 = vmatmul.mubr.bf16.gmra.mrb[0].mxu0 %v533
  %v1516 = vpop.f32.mrb[0].mxu0
  %v1517 = vadd.f32 %v1420, %v1516
  %v1518 = vpop.f32.mrb[0].mxu0
  %v1519 = vpop.f32.mrb[0].mxu0
  %v1520 = vadd.f32 %v1423, %v1519
  %v1521 = vpop.f32.mrb[0].mxu0
  %1522 = vdwg.mxu0
  %v1523 = vpack.c.bf16 %v1464, %v1461
  %v1524 = vpack.c.bf16 %v1472, %v1469
  %v1525 = vpack.c.bf16 %v1480, %v1477
  %v1526 = vpack.c.bf16 %v1488, %v1485
  %v1527 = vpack.c.bf16 %v1496, %v1493
  %v1528 = vpack.c.bf16 %v1504, %v1501
  %v1529 = vpack.c.bf16 %v1512, %v1509
  %v1530 = vpack.c.bf16 %v1520, %v1517
  %v1539 = vunpack.c.l.b16 %v1523
  %v1540 = vunpack.c.h.b16 %v1523
  %v1541 = vunpack.c.l.b16 %v1524
  %v1542 = vunpack.c.h.b16 %v1524
  %v1543 = vunpack.c.l.b16 %v1525
  %v1544 = vunpack.c.h.b16 %v1525
  %v1545 = vunpack.c.l.b16 %v1526
  %v1546 = vunpack.c.h.b16 %v1526
  %v1547 = vunpack.c.l.b16 %v1527
  %v1548 = vunpack.c.h.b16 %v1527
  %v1549 = vunpack.c.l.b16 %v1528
  %v1550 = vunpack.c.h.b16 %v1528
  %v1551 = vunpack.c.l.b16 %v1529
  %v1552 = vunpack.c.h.b16 %v1529
  %v1553 = vunpack.c.l.b16 %v1530
  %v1554 = vunpack.c.h.b16 %v1530
  %v1555 = vpack.c.b16 %v1539, %v1539
  %v1556 = vpack.c.b16 %v1540, %v1540
  %v1557 = vpack.c.b16 %v1541, %v1541
  %v1558 = vpack.c.b16 %v1542, %v1542
  %v1559 = vpack.c.b16 %v1543, %v1543
  %v1560 = vpack.c.b16 %v1544, %v1544
  %v1561 = vpack.c.b16 %v1545, %v1545
  %v1562 = vpack.c.b16 %v1546, %v1546
  %v1563 = vpack.c.b16 %v1547, %v1547
  %v1564 = vpack.c.b16 %v1548, %v1548
  %v1565 = vpack.c.b16 %v1549, %v1549
  %v1566 = vpack.c.b16 %v1550, %v1550
  %v1567 = vpack.c.b16 %v1551, %v1551
  %v1568 = vpack.c.b16 %v1552, %v1552
  %v1569 = vpack.c.b16 %v1553, %v1553
  %v1570 = vpack.c.b16 %v1554, %v1554
  %1587 = vst [vmem:[%s2] sm:$0xf] %v1555
  %1588 = vst [vmem:[%s2 + $0x4] sm:$0xf] %v1556
  %1589 = vst [vmem:[%s2 + $0x8] sm:$0xf] %v1557
  %1590 = vst [vmem:[%s2 + $0xc] sm:$0xf] %v1558
  %1591 = vst [vmem:[%s2 + $0x10] sm:$0xf] %v1559
  %1592 = vst [vmem:[%s2 + $0x14] sm:$0xf] %v1560
  %1593 = vst [vmem:[%s2 + $0x18] sm:$0xf] %v1561
  %1594 = vst [vmem:[%s2 + $0x1c] sm:$0xf] %v1562
  %1595 = vst [vmem:[%s2 + $0x20] sm:$0xf] %v1563
  %1596 = vst [vmem:[%s2 + $0x24] sm:$0xf] %v1564
  %1597 = vst [vmem:[%s2 + $0x28] sm:$0xf] %v1565
  %1598 = vst [vmem:[%s2 + $0x2c] sm:$0xf] %v1566
  %1599 = vst [vmem:[%s2 + $0x30] sm:$0xf] %v1567
  %1600 = vst [vmem:[%s2 + $0x34] sm:$0xf] %v1568
  %1601 = vst [vmem:[%s2 + $0x38] sm:$0xf] %v1569
  %1602 = vst [vmem:[%s2 + $0x3c] sm:$0xf] %v1570
  %p1603 = scmp.eq.s32.totalorder 0, 0
  // Predicated region
  $region10: #{dcgan_d_forward.9} parent=0 // pred_check
    %p1604 = pneg %p1603
  $region11: #{dcgan_d_forward.9} parent=0 // pred_check_branch
    %1606 = sbr.rel (%p1604) target = $region13
  $region12: #{dcgan_d_forward.9} parent=0 // pred_region
    %1607 = vst [vmem:[%s3] sm:$0xff] 0.0
  $region13: #{dcgan_d_forward.9} parent=0 // pred_fallthru
    _
  %v1608 = vld [vmem:[%s3] sm:$0x1]
  %v1609 = vadd.f32 %v1461, %v1464
  %v1610 = vadd.f32 %v1609, %v1469
  %v1611 = vadd.f32 %v1610, %v1472
  %v1612 = vadd.f32 %v1611, %v1477
  %v1613 = vadd.f32 %v1612, %v1480
  %v1614 = vadd.f32 %v1613, %v1485
  %v1615 = vadd.f32 %v1614, %v1488
  %v1616 = vadd.f32 %v1615, %v1493
  %v1617 = vadd.f32 %v1616, %v1496
  %v1618 = vadd.f32 %v1617, %v1501
  %v1619 = vadd.f32 %v1618, %v1504
  %v1620 = vadd.f32 %v1619, %v1509
  %v1621 = vadd.f32 %v1620, %v1512
  %v1622 = vadd.f32 %v1621, %v1517
  %v1623 = vadd.f32 %v1622, %v1520
  %v1624 = vrot.slane %v1623, 4
  %v1625 = vadd.f32 %v1623, %v1624
  %v1626 = vrot.slane %v1625, 2
  %v1627 = vadd.f32 %v1625, %v1626
  %v1628 = vrot.slane %v1627, 1
  %v1629 = vadd.f32 %v1627, %v1628
  %v1630 = vadd.f32 %v1608, %v1629
  %1631 = vst [vmem:[%s3] sm:$0x1] %v1630
  %v1632 = vld [vmem:[%s3 + $0x1] sm:$0x1]
  %v1633 = vmul.f32 %v1461, %v1461
  %v1634 = vmul.f32 %v1464, %v1464
  %v1635 = vmul.f32 %v1469, %v1469
  %v1636 = vmul.f32 %v1472, %v1472
  %v1637 = vmul.f32 %v1477, %v1477
  %v1638 = vmul.f32 %v1480, %v1480
  %v1639 = vmul.f32 %v1485, %v1485
  %v1640 = vmul.f32 %v1488, %v1488
  %v1641 = vmul.f32 %v1493, %v1493
  %v1642 = vmul.f32 %v1496, %v1496
  %v1643 = vmul.f32 %v1501, %v1501
  %v1644 = vmul.f32 %v1504, %v1504
  %v1645 = vmul.f32 %v1509, %v1509
  %v1646 = vmul.f32 %v1512, %v1512
  %v1647 = vmul.f32 %v1517, %v1517
  %v1648 = vmul.f32 %v1520, %v1520
  %v1649 = vadd.f32 %v1633, %v1634
  %v1650 = vadd.f32 %v1649, %v1635
  %v1651 = vadd.f32 %v1650, %v1636
  %v1652 = vadd.f32 %v1651, %v1637
  %v1653 = vadd.f32 %v1652, %v1638
  %v1654 = vadd.f32 %v1653, %v1639
  %v1655 = vadd.f32 %v1654, %v1640
  %v1656 = vadd.f32 %v1655, %v1641
  %v1657 = vadd.f32 %v1656, %v1642
  %v1658 = vadd.f32 %v1657, %v1643
  %v1659 = vadd.f32 %v1658, %v1644
  %v1660 = vadd.f32 %v1659, %v1645
  %v1661 = vadd.f32 %v1660, %v1646
  %v1662 = vadd.f32 %v1661, %v1647
  %v1663 = vadd.f32 %v1662, %v1648
  %v1664 = vrot.slane %v1663, 4
  %v1665 = vadd.f32 %v1663, %v1664
  %v1666 = vrot.slane %v1665, 2
  %v1667 = vadd.f32 %v1665, %v1666
  %v1668 = vrot.slane %v1667, 1
  %v1669 = vadd.f32 %v1667, %v1668
  %v1670 = vadd.f32 %v1632, %v1669
  %1671 = vst [vmem:[%s3 + $0x1] sm:$0x1] %v1670
  // Predicated region
  $region14: #{dcgan_d_forward.9} parent=0 // pred_check
    _
  $region15: #{dcgan_d_forward.9} parent=0 // pred_check_branch
    %1673 = sbr.rel (0) target = $region17
  $region16: #{dcgan_d_forward.9} parent=0 // pred_region
    _
  $region17: #{dcgan_d_forward.9} parent=0 // pred_fallthru
    _
  // Predicated region
  $region18: #{dcgan_d_forward.9} parent=0 // pred_check
    _
  $region19: #{dcgan_d_forward.9} parent=0 // pred_check_branch
    %1675 = sbr.rel (0) target = $region21
  $region20: #{dcgan_d_forward.9} parent=0 // pred_region
    _
  $region21: #{dcgan_d_forward.9} parent=0 // pred_fallthru
    _
  // Predicated region
  $region22: #{dcgan_d_forward.9} parent=0 // pred_check
    _
  $region23: #{dcgan_d_forward.9} parent=0 // pred_check_branch
    %1677 = sbr.rel (0) target = $region25
  $region24: #{dcgan_d_forward.9} parent=0 // pred_region
    _
  $region25: #{dcgan_d_forward.9} parent=0 // pred_fallthru
    _
  // Predicated region
  $region26: #{dcgan_d_forward.9} parent=0 // pred_check
    _
  $region27: #{dcgan_d_forward.9} parent=0 // pred_check_branch
    %1679 = sbr.rel (0) target = $region29
  $region28: #{dcgan_d_forward.9} parent=0 // pred_region
    _
  $region29: #{dcgan_d_forward.9} parent=0 // pred_fallthru
    _

// kernel: dcgan_d_forward.12
$region0: #{dcgan_d_forward.12}
  #allocation0 [shape = 'u32[]', space=smem, size = 0x4, offset = 0x4, fixed_abs, tag = 'smem constant byte address 0x4 - core index']
  #allocation1 [shape = 'u32[144,128]{1,0:T(1,128)}', space=vmem, size = 0x12000, scoped, tag = 'internal scratch']
  %s0 = inlined_call_operand.vmem [shape: bf16[32,128], index: 0, kind: input, shape index: {}]
  %s1 = inlined_call_operand.vmem [shape: f32[8,128], index: 1, kind: input, shape index: {}]
  %s2 = inlined_call_operand.vmem [shape: f32[1,128], index: 2, kind: input, shape index: {}]
  %s3 = inlined_call_operand.vmem [shape: f32[1,128], index: 3, kind: input, shape index: {}]
  %s4 = inlined_call_operand.vmem [shape: bf16[32,128], index: 4, kind: output, shape index: {}]
  %s5 = sld [smem:[#allocation0]]
  $region26: #{dcgan_d_forward.12} parent=0
    _
  %s7 = ssub.s32 1, %s5
  %s8 = scalar_select 0, %s7, %s5
  // Predicated region
  $region2: #{dcgan_d_forward.12} parent=0 // pred_check
    _
  $region3: #{dcgan_d_forward.12} parent=0 // pred_check_branch
    %10 = sbr.rel (0) target = $region5
  $region4: #{dcgan_d_forward.12} parent=0 // pred_region
    _
  $region5: #{dcgan_d_forward.12} parent=0 // pred_fallthru
    _
  // Predicated region
  $region6: #{dcgan_d_forward.12} parent=0 // pred_check
    _
  $region7: #{dcgan_d_forward.12} parent=0 // pred_check_branch
    %12 = sbr.rel (0) target = $region9
  $region8: #{dcgan_d_forward.12} parent=0 // pred_region
    _
  $region9: #{dcgan_d_forward.12} parent=0 // pred_fallthru
    _
  // Predicated region
  $region10: #{dcgan_d_forward.12} parent=0 // pred_check
    _
  $region11: #{dcgan_d_forward.12} parent=0 // pred_check_branch
    %14 = sbr.rel (0) target = $region13
  $region12: #{dcgan_d_forward.12} parent=0 // pred_region
    _
  $region13: #{dcgan_d_forward.12} parent=0 // pred_fallthru
    _
  // Predicated region
  $region14: #{dcgan_d_forward.12} parent=0 // pred_check
    _
  $region15: #{dcgan_d_forward.12} parent=0 // pred_check_branch
    %16 = sbr.rel (0) target = $region17
  $region16: #{dcgan_d_forward.12} parent=0 // pred_region
    _
  $region17: #{dcgan_d_forward.12} parent=0 // pred_fallthru
    _
  %v17 = vld [vmem:[%s0] sm:$0xf]
  %v18 = vld [vmem:[%s0 + $0x4] sm:$0xf]
  %v19 = vld [vmem:[%s0 + $0x8] sm:$0xf]
  %v20 = vld [vmem:[%s0 + $0xc] sm:$0xf]
  %v21 = vunpack.c.l.bf16 %v17
  %v22 = vunpack.c.l.bf16 %v18
  %v23 = vunpack.c.l.bf16 %v19
  %v24 = vunpack.c.l.bf16 %v20
  %v25 = vld [vmem:[%s1] sm:$0x1]
  %v26 = vmul.f32 %v25, 0.03125
  %v27 = vld [vmem:[%s1 + $0x1] sm:$0x1]
  %v28 = vmul.f32 %v27, 0.03125
  %v29 = vmul.f32 %v26, %v26
  %v30 = vsub.f32 %v28, %v29
  %v31 = vmax.f32 %v30, 0.0
  %v32 = vadd.f32 %v31, 1e-05
  %v33 = vrsqrt.pop %v32
  %v34 = vld [vmem:[%s2] sm:$0x1]
  %v35 = vmul.f32 %v33, %v34
  %v36 = vlaneseq
  %v37 = vshrl.u32 %v36, 7
  %v38 = vsub.s32 0, %v37
  %v39 = vrot.slane %v26, %v38
  %v40 = vsub.f32 %v21, %v39
  %v41 = vsub.f32 %v22, %v39
  %v42 = vsub.f32 %v23, %v39
  %v43 = vsub.f32 %v24, %v39
  %v44 = vlaneseq
  %v45 = vshrl.u32 %v44, 7
  %v46 = vsub.s32 0, %v45
  %v47 = vrot.slane %v35, %v46
  %v48 = vmul.f32 %v40, %v47
  %v49 = vmul.f32 %v41, %v47
  %v50 = vmul.f32 %v42, %v47
  %v51 = vmul.f32 %v43, %v47
  %v52 = vld [vmem:[%s3] sm:$0x1]
  %v54 = vlaneseq
  %v55 = vshrl.u32 %v54, 7
  %v56 = vsub.s32 0, %v55
  %v57 = vrot.slane %v52, %v56
  %v59 = vadd.f32 %v48, %v57
  %v60 = vadd.f32 %v49, %v57
  %v61 = vadd.f32 %v50, %v57
  %v62 = vadd.f32 %v51, %v57
  %vm63 = vcmp.ge.f32.partialorder %v59, 0.0
  %vm64 = vcmp.ge.f32.partialorder %v60, 0.0
  %vm65 = vcmp.ge.f32.partialorder %v61, 0.0
  %vm66 = vcmp.ge.f32.partialorder %v62, 0.0
  %v67 = vmul.f32 %v59, 0.2
  %v68 = vmul.f32 %v60, 0.2
  %v69 = vmul.f32 %v61, 0.2
  %v70 = vmul.f32 %v62, 0.2
  %v71 = vsel %vm63, %v59, %v67
  %v72 = vsel %vm64, %v60, %v68
  %v73 = vsel %vm65, %v61, %v69
  %v74 = vsel %vm66, %v62, %v70
  %v75 = vpack.c.bf16 %v72, %v71
  %v76 = vpack.c.bf16 %v74, %v73
  %v79 = vunpack.c.l.b16 %v75
  %v80 = vunpack.c.h.b16 %v75
  %v81 = vunpack.c.l.b16 %v76
  %v82 = vunpack.c.h.b16 %v76
  %v83 = vpack.c.b16 %v79, %v79
  %v84 = vpack.c.b16 %v80, %v80
  %v85 = vpack.c.b16 %v81, %v81
  %v86 = vpack.c.b16 %v82, %v82
  %91 = vst [vmem:[%s4] sm:$0xf] %v83
  %92 = vst [vmem:[%s4 + $0x4] sm:$0xf] %v84
  %93 = vst [vmem:[%s4 + $0x8] sm:$0xf] %v85
  %94 = vst [vmem:[%s4 + $0xc] sm:$0xf] %v86
  // Predicated region
  $region18: #{dcgan_d_forward.12} parent=0 // pred_check
    _
  $region19: #{dcgan_d_forward.12} parent=0 // pred_check_branch
    %96 = sbr.rel (0) target = $region21
  $region20: #{dcgan_d_forward.12} parent=0 // pred_region
    _
  $region21: #{dcgan_d_forward.12} parent=0 // pred_fallthru
    _
  // Predicated region
  $region22: #{dcgan_d_forward.12} parent=0 // pred_check
    _
  $region23: #{dcgan_d_forward.12} parent=0 // pred_check_branch
    %98 = sbr.rel (0) target = $region25
  $region24: #{dcgan_d_forward.12} parent=0 // pred_region
    _
  $region25: #{dcgan_d_forward.12} parent=0 // pred_fallthru
    _

// kernel: dcgan_d_forward.13
$region0: #{dcgan_d_forward.13}
  #allocation0 [shape = 'u32[]', space=smem, size = 0x4, offset = 0x4, fixed_abs, tag = 'smem constant byte address 0x4 - core index']
  #allocation1 [shape = 'u32[144,128]{1,0:T(1,128)}', space=vmem, size = 0x12000, scoped, tag = 'internal scratch']
  %s0 = inlined_call_operand.vmem [shape: bf16[8,2048], index: 0, kind: input, shape index: {}]
  %s1 = inlined_call_operand.vmem [shape: bf16[1,2048], index: 1, kind: input, shape index: {}]
  %s2 = inlined_call_operand.hbm [shape: f32[1,128], index: 2, kind: output, shape index: {}]
  %s3 = sld [smem:[#allocation0]]
  $region18: #{dcgan_d_forward.13} parent=0
    _
  %s5 = ssub.s32 1, %s3
  %s6 = scalar_select 0, %s5, %s3
  $region1: #{dcgan_d_forward.13} parent=0
    #allocation2 [shape = 'u8[512]{0}', space=vmem, size = 0x400, scoped, tag = 'output window, operand 0, single buffered']
    #allocation3 [shape = 's32[1]{0}', space=sflag, size = 0x4, scoped, tag = 'scoped memory for dcgan_d_forward.13']
    %7 = vsyncpa [#allocation3], 0
    // Predicated region
    $region2: #{dcgan_d_forward.13} parent=1 // pred_check
      _
    $region3: #{dcgan_d_forward.13} parent=1 // pred_check_branch
      %9 = sbr.rel (0) target = $region5
    $region4: #{dcgan_d_forward.13} parent=1 // pred_region
      _
    $region5: #{dcgan_d_forward.13} parent=1 // pred_fallthru
      _
    // Predicated region
    $region6: #{dcgan_d_forward.13} parent=1 // pred_check
      _
    $region7: #{dcgan_d_forward.13} parent=1 // pred_check_branch
      %11 = sbr.rel (0) target = $region9
    $region8: #{dcgan_d_forward.13} parent=1 // pred_region
      _
    $region9: #{dcgan_d_forward.13} parent=1 // pred_fallthru
      _
    %v12 = vld [vmem:[%s0] sm:$0xff]
    %v13 = vld [vmem:[%s0 + $0x8] sm:$0xff]
    %v14 = vld [vmem:[%s0 + $0x10] sm:$0xff]
    %v15 = vld [vmem:[%s0 + $0x18] sm:$0xff]
    %v16 = vld [vmem:[%s0 + $0x20] sm:$0xff]
    %v17 = vld [vmem:[%s0 + $0x28] sm:$0xff]
    %v18 = vld [vmem:[%s0 + $0x30] sm:$0xff]
    %v19 = vld [vmem:[%s0 + $0x38] sm:$0xff]
    %v20 = vunpack.c.l.bf16 %v12
    %v21 = vunpack.c.h.bf16 %v12
    %v22 = vunpack.c.l.bf16 %v13
    %v23 = vunpack.c.h.bf16 %v13
    %v24 = vunpack.c.l.bf16 %v14
    %v25 = vunpack.c.h.bf16 %v14
    %v26 = vunpack.c.l.bf16 %v15
    %v27 = vunpack.c.h.bf16 %v15
    %v28 = vunpack.c.l.bf16 %v16
    %v29 = vunpack.c.h.bf16 %v16
    %v30 = vunpack.c.l.bf16 %v17
    %v31 = vunpack.c.h.bf16 %v17
    %v32 = vunpack.c.l.bf16 %v18
    %v33 = vunpack.c.h.bf16 %v18
    %v34 = vunpack.c.l.bf16 %v19
    %v35 = vunpack.c.h.bf16 %v19
    %v36 = vld [vmem:[%s1] sm:$0xff]
    %v37 = vld [vmem:[%s1 + $0x8] sm:$0xff]
    %v38 = vunpack.c.l.bf16 %v36
    %v39 = vunpack.c.h.bf16 %v36
    %v40 = vunpack.c.l.bf16 %v37
    %v41 = vunpack.c.h.bf16 %v37
    %v46 = vlaneseq
    %v47 = vshrl.u32 %v46, 7
    %v48 = vsub.s32 0, %v47
    %v49 = vrot.slane %v38, %v48
    %v50 = vlaneseq
    %v51 = vshrl.u32 %v50, 7
    %v52 = vsub.s32 2, %v51
    %v53 = vrot.slane %v38, %v52
    %v54 = vlaneseq
    %v55 = vshrl.u32 %v54, 7
    %v56 = vsub.s32 4, %v55
    %v57 = vrot.slane %v38, %v56
    %v58 = vlaneseq
    %v59 = vshrl.u32 %v58, 7
    %v60 = vsub.s32 6, %v59
    %v61 = vrot.slane %v38, %v60
    %v62 = vlaneseq
    %v63 = vshrl.u32 %v62, 7
    %v64 = vsub.s32 0, %v63
    %v65 = vrot.slane %v39, %v64
    %v66 = vlaneseq
    %v67 = vshrl.u32 %v66, 7
    %v68 = vsub.s32 2, %v67
    %v69 = vrot.slane %v39, %v68
    %v70 = vlaneseq
    %v71 = vshrl.u32 %v70, 7
    %v72 = vsub.s32 4, %v71
    %v73 = vrot.slane %v39, %v72
    %v74 = vlaneseq
    %v75 = vshrl.u32 %v74, 7
    %v76 = vsub.s32 6, %v75
    %v77 = vrot.slane %v39, %v76
    %v78 = vlaneseq
    %v79 = vshrl.u32 %v78, 7
    %v80 = vsub.s32 0, %v79
    %v81 = vrot.slane %v40, %v80
    %v82 = vlaneseq
    %v83 = vshrl.u32 %v82, 7
    %v84 = vsub.s32 2, %v83
    %v85 = vrot.slane %v40, %v84
    %v86 = vlaneseq
    %v87 = vshrl.u32 %v86, 7
    %v88 = vsub.s32 4, %v87
    %v89 = vrot.slane %v40, %v88
    %v90 = vlaneseq
    %v91 = vshrl.u32 %v90, 7
    %v92 = vsub.s32 6, %v91
    %v93 = vrot.slane %v40, %v92
    %v94 = vlaneseq
    %v95 = vshrl.u32 %v94, 7
    %v96 = vsub.s32 0, %v95
    %v97 = vrot.slane %v41, %v96
    %v98 = vlaneseq
    %v99 = vshrl.u32 %v98, 7
    %v100 = vsub.s32 2, %v99
    %v101 = vrot.slane %v41, %v100
    %v102 = vlaneseq
    %v103 = vshrl.u32 %v102, 7
    %v104 = vsub.s32 4, %v103
    %v105 = vrot.slane %v41, %v104
    %v106 = vlaneseq
    %v107 = vshrl.u32 %v106, 7
    %v108 = vsub.s32 6, %v107
    %v109 = vrot.slane %v41, %v108
    %v126 = vlaneseq
    %v127 = vshrl.u32 %v126, 7
    %v128 = vsub.s32 0, %v127
    %v129 = vrot.slane %v49, %v128
    %v130 = vlaneseq
    %v131 = vshrl.u32 %v130, 7
    %v132 = vsub.s32 0, %v131
    %v133 = vrot.slane %v53, %v132
    %v134 = vlaneseq
    %v135 = vshrl.u32 %v134, 7
    %v136 = vsub.s32 0, %v135
    %v137 = vrot.slane %v57, %v136
    %v138 = vlaneseq
    %v139 = vshrl.u32 %v138, 7
    %v140 = vsub.s32 0, %v139
    %v141 = vrot.slane %v61, %v140
    %v142 = vlaneseq
    %v143 = vshrl.u32 %v142, 7
    %v144 = vsub.s32 0, %v143
    %v145 = vrot.slane %v65, %v144
    %v146 = vlaneseq
    %v147 = vshrl.u32 %v146, 7
    %v148 = vsub.s32 0, %v147
    %v149 = vrot.slane %v69, %v148
    %v150 = vlaneseq
    %v151 = vshrl.u32 %v150, 7
    %v152 = vsub.s32 0, %v151
    %v153 = vrot.slane %v73, %v152
    %v154 = vlaneseq
    %v155 = vshrl.u32 %v154, 7
    %v156 = vsub.s32 0, %v155
    %v157 = vrot.slane %v77, %v156
    %v158 = vlaneseq
    %v159 = vshrl.u32 %v158, 7
    %v160 = vsub.s32 0, %v159
    %v161 = vrot.slane %v81, %v160
    %v162 = vlaneseq
    %v163 = vshrl.u32 %v162, 7
    %v164 = vsub.s32 0, %v163
    %v165 = vrot.slane %v85, %v164
    %v166 = vlaneseq
    %v167 = vshrl.u32 %v166, 7
    %v168 = vsub.s32 0, %v167
    %v169 = vrot.slane %v89, %v168
    %v170 = vlaneseq
    %v171 = vshrl.u32 %v170, 7
    %v172 = vsub.s32 0, %v171
    %v173 = vrot.slane %v93, %v172
    %v174 = vlaneseq
    %v175 = vshrl.u32 %v174, 7
    %v176 = vsub.s32 0, %v175
    %v177 = vrot.slane %v97, %v176
    %v178 = vlaneseq
    %v179 = vshrl.u32 %v178, 7
    %v180 = vsub.s32 0, %v179
    %v181 = vrot.slane %v101, %v180
    %v182 = vlaneseq
    %v183 = vshrl.u32 %v182, 7
    %v184 = vsub.s32 0, %v183
    %v185 = vrot.slane %v105, %v184
    %v186 = vlaneseq
    %v187 = vshrl.u32 %v186, 7
    %v188 = vsub.s32 0, %v187
    %v189 = vrot.slane %v109, %v188
    %v190 = vmul.f32 %v20, %v129
    %v191 = vmul.f32 %v21, %v133
    %v192 = vmul.f32 %v22, %v137
    %v193 = vmul.f32 %v23, %v141
    %v194 = vmul.f32 %v24, %v145
    %v195 = vmul.f32 %v25, %v149
    %v196 = vmul.f32 %v26, %v153
    %v197 = vmul.f32 %v27, %v157
    %v198 = vmul.f32 %v28, %v161
    %v199 = vmul.f32 %v29, %v165
    %v200 = vmul.f32 %v30, %v169
    %v201 = vmul.f32 %v31, %v173
    %v202 = vmul.f32 %v32, %v177
    %v203 = vmul.f32 %v33, %v181
    %v204 = vmul.f32 %v34, %v185
    %v205 = vmul.f32 %v35, %v189
    %v206 = vrot.slane %v190, 4
    %v207 = vadd.f32 %v190, %v206
    %v208 = vrot.slane %v207, 2
    %v209 = vadd.f32 %v207, %v208
    %v210 = vrot.slane %v209, 1
    %v211 = vadd.f32 %v209, %v210
    %v212 = vrot.slane %v191, 4
    %v213 = vadd.f32 %v191, %v212
    %v214 = vrot.slane %v213, 2
    %v215 = vadd.f32 %v213, %v214
    %v216 = vrot.slane %v215, 1
    %v217 = vadd.f32 %v215, %v216
    %v218 = vrot.slane %v192, 4
    %v219 = vadd.f32 %v192, %v218
    %v220 = vrot.slane %v219, 2
    %v221 = vadd.f32 %v219, %v220
    %v222 = vrot.slane %v221, 1
    %v223 = vadd.f32 %v221, %v222
    %v224 = vrot.slane %v193, 4
    %v225 = vadd.f32 %v193, %v224
    %v226 = vrot.slane %v225, 2
    %v227 = vadd.f32 %v225, %v226
    %v228 = vrot.slane %v227, 1
    %v229 = vadd.f32 %v227, %v228
    %v230 = vrot.slane %v194, 4
    %v231 = vadd.f32 %v194, %v230
    %v232 = vrot.slane %v231, 2
    %v233 = vadd.f32 %v231, %v232
    %v234 = vrot.slane %v233, 1
    %v235 = vadd.f32 %v233, %v234
    %v236 = vrot.slane %v195, 4
    %v237 = vadd.f32 %v195, %v236
    %v238 = vrot.slane %v237, 2
    %v239 = vadd.f32 %v237, %v238
    %v240 = vrot.slane %v239, 1
    %v241 = vadd.f32 %v239, %v240
    %v242 = vrot.slane %v196, 4
    %v243 = vadd.f32 %v196, %v242
    %v244 = vrot.slane %v243, 2
    %v245 = vadd.f32 %v243, %v244
    %v246 = vrot.slane %v245, 1
    %v247 = vadd.f32 %v245, %v246
    %v248 = vrot.slane %v197, 4
    %v249 = vadd.f32 %v197, %v248
    %v250 = vrot.slane %v249, 2
    %v251 = vadd.f32 %v249, %v250
    %v252 = vrot.slane %v251, 1
    %v253 = vadd.f32 %v251, %v252
    %v254 = vrot.slane %v198, 4
    %v255 = vadd.f32 %v198, %v254
    %v256 = vrot.slane %v255, 2
    %v257 = vadd.f32 %v255, %v256
    %v258 = vrot.slane %v257, 1
    %v259 = vadd.f32 %v257, %v258
    %v260 = vrot.slane %v199, 4
    %v261 = vadd.f32 %v199, %v260
    %v262 = vrot.slane %v261, 2
    %v263 = vadd.f32 %v261, %v262
    %v264 = vrot.slane %v263, 1
    %v265 = vadd.f32 %v263, %v264
    %v266 = vrot.slane %v200, 4
    %v267 = vadd.f32 %v200, %v266
    %v268 = vrot.slane %v267, 2
    %v269 = vadd.f32 %v267, %v268
    %v270 = vrot.slane %v269, 1
    %v271 = vadd.f32 %v269, %v270
    %v272 = vrot.slane %v201, 4
    %v273 = vadd.f32 %v201, %v272
    %v274 = vrot.slane %v273, 2
    %v275 = vadd.f32 %v273, %v274
    %v276 = vrot.slane %v275, 1
    %v277 = vadd.f32 %v275, %v276
    %v278 = vrot.slane %v202, 4
    %v279 = vadd.f32 %v202, %v278
    %v280 = vrot.slane %v279, 2
    %v281 = vadd.f32 %v279, %v280
    %v282 = vrot.slane %v281, 1
    %v283 = vadd.f32 %v281, %v282
    %v284 = vrot.slane %v203, 4
    %v285 = vadd.f32 %v203, %v284
    %v286 = vrot.slane %v285, 2
    %v287 = vadd.f32 %v285, %v286
    %v288 = vrot.slane %v287, 1
    %v289 = vadd.f32 %v287, %v288
    %v290 = vrot.slane %v204, 4
    %v291 = vadd.f32 %v204, %v290
    %v292 = vrot.slane %v291, 2
    %v293 = vadd.f32 %v291, %v292
    %v294 = vrot.slane %v293, 1
    %v295 = vadd.f32 %v293, %v294
    %v296 = vrot.slane %v205, 4
    %v297 = vadd.f32 %v205, %v296
    %v298 = vrot.slane %v297, 2
    %v299 = vadd.f32 %v297, %v298
    %v300 = vrot.slane %v299, 1
    %v301 = vadd.f32 %v299, %v300
    %v302 = vadd.f32 %v211, %v217
    %v303 = vadd.f32 %v302, %v223
    %v304 = vadd.f32 %v303, %v229
    %v305 = vadd.f32 %v304, %v235
    %v306 = vadd.f32 %v305, %v241
    %v307 = vadd.f32 %v306, %v247
    %v308 = vadd.f32 %v307, %v253
    %v309 = vadd.f32 %v308, %v259
    %v310 = vadd.f32 %v309, %v265
    %v311 = vadd.f32 %v310, %v271
    %v312 = vadd.f32 %v311, %v277
    %v313 = vadd.f32 %v312, %v283
    %v314 = vadd.f32 %v313, %v289
    %v315 = vadd.f32 %v314, %v295
    %v316 = vadd.f32 %v315, %v301
    %317 = vadd.xlane.f32.xlu0 %v316
    %v318 = vpop.xlane.xlu0 %317
    %v319 = vmul.f32 %v318, 0.5
    %320 = vst [vmem:[#allocation2] sm:$0x1] %v319
    // Predicated region
    $region10: #{dcgan_d_forward.13} parent=1 // pred_check
      _
    $region11: #{dcgan_d_forward.13} parent=1 // pred_check_branch
      %322 = sbr.rel (0) target = $region13
    $region12: #{dcgan_d_forward.13} parent=1 // pred_region
      %s324 = ssub.s32 16, 16
      %325 = vsyncadd [#allocation3], %s324
      %s327 = sshll.u32 [#allocation2], 4
      %s328 = int_to_ptr.vmem [resolvable:$true] %s327
      %330 = dma.vmem_to_hbm [thread:$0]  %s328, 16, %s2, [#allocation3]
    $region13: #{dcgan_d_forward.13} parent=1 // pred_fallthru
      _
    // Predicated region
    $region14: #{dcgan_d_forward.13} parent=1 // pred_check
      _
    $region15: #{dcgan_d_forward.13} parent=1 // pred_check_branch
      %332 = sbr.rel (0) target = $region17
    $region16: #{dcgan_d_forward.13} parent=1 // pred_region
      %333 = dma.done [#allocation3], 16
    $region17: #{dcgan_d_forward.13} parent=1 // pred_fallthru
      _
    %334 = vsyncpa [#allocation3], 1

// kernel: dcgan_d_forward.11
$region0: #{dcgan_d_forward.11}
  #allocation0 [shape = 'u32[]', space=smem, size = 0x4, offset = 0x4, fixed_abs, tag = 'smem constant byte address 0x4 - core index']
  #allocation1 [shape = 'u32[144,128]{1,0:T(1,128)}', space=vmem, size = 0x12000, scoped, tag = 'internal scratch']
  %s0 = inlined_call_operand.vmem [shape: bf16[32,2048], index: 0, kind: input, shape index: {}]
  %s1 = inlined_call_operand.vmem [shape: bf16[2048,128], index: 1, kind: input, shape index: {}]
  %s2 = inlined_call_operand.vmem [shape: bf16[32,128], index: 2, kind: output, shape index: {0}]
  %s3 = inlined_call_operand.vmem [shape: f32[8,128], index: 3, kind: output, shape index: {1}]
  %4 = xla_tuple %s2, %s3
  %s5 = sld [smem:[#allocation0]]
  $region30: #{dcgan_d_forward.11} parent=0
    _
  %s7 = ssub.s32 1, %s5
  %s8 = scalar_select 0, %s7, %s5
  // Predicated region
  $region2: #{dcgan_d_forward.11} parent=0 // pred_check
    _
  $region3: #{dcgan_d_forward.11} parent=0 // pred_check_branch
    %10 = sbr.rel (0) target = $region5
  $region4: #{dcgan_d_forward.11} parent=0 // pred_region
    _
  $region5: #{dcgan_d_forward.11} parent=0 // pred_fallthru
    _
  // Predicated region
  $region6: #{dcgan_d_forward.11} parent=0 // pred_check
    _
  $region7: #{dcgan_d_forward.11} parent=0 // pred_check_branch
    %12 = sbr.rel (0) target = $region9
  $region8: #{dcgan_d_forward.11} parent=0 // pred_region
    _
  $region9: #{dcgan_d_forward.11} parent=0 // pred_fallthru
    _
  %v14 = vld [vmem:[%s0] sm:$0xff]
  %v15 = vld [vmem:[%s0 + $0x8] sm:$0xff]
  %v16 = vld [vmem:[%s0 + $0x10] sm:$0xff]
  %v17 = vld [vmem:[%s0 + $0x18] sm:$0xff]
  %v18 = vld [vmem:[%s0 + $0x20] sm:$0xff]
  %v19 = vld [vmem:[%s0 + $0x28] sm:$0xff]
  %v20 = vld [vmem:[%s0 + $0x30] sm:$0xff]
  %v21 = vld [vmem:[%s0 + $0x38] sm:$0xff]
  %v22 = vld [vmem:[%s0 + $0x40] sm:$0xff]
  %v23 = vld [vmem:[%s0 + $0x48] sm:$0xff]
  %v24 = vld [vmem:[%s0 + $0x50] sm:$0xff]
  %v25 = vld [vmem:[%s0 + $0x58] sm:$0xff]
  %v26 = vld [vmem:[%s0 + $0x60] sm:$0xff]
  %v27 = vld [vmem:[%s0 + $0x68] sm:$0xff]
  %v28 = vld [vmem:[%s0 + $0x70] sm:$0xff]
  %v29 = vld [vmem:[%s0 + $0x78] sm:$0xff]
  %v30 = vld [vmem:[%s0 + $0x80] sm:$0xff]
  %v31 = vld [vmem:[%s0 + $0x88] sm:$0xff]
  %v32 = vld [vmem:[%s0 + $0x90] sm:$0xff]
  %v33 = vld [vmem:[%s0 + $0x98] sm:$0xff]
  %v34 = vld [vmem:[%s0 + $0xa0] sm:$0xff]
  %v35 = vld [vmem:[%s0 + $0xa8] sm:$0xff]
  %v36 = vld [vmem:[%s0 + $0xb0] sm:$0xff]
  %v37 = vld [vmem:[%s0 + $0xb8] sm:$0xff]
  %v38 = vld [vmem:[%s0 + $0xc0] sm:$0xff]
  %v39 = vld [vmem:[%s0 + $0xc8] sm:$0xff]
  %v40 = vld [vmem:[%s0 + $0xd0] sm:$0xff]
  %v41 = vld [vmem:[%s0 + $0xd8] sm:$0xff]
  %v42 = vld [vmem:[%s0 + $0xe0] sm:$0xff]
  %v43 = vld [vmem:[%s0 + $0xe8] sm:$0xff]
  %v44 = vld [vmem:[%s0 + $0xf0] sm:$0xff]
  %v45 = vld [vmem:[%s0 + $0xf8] sm:$0xff]
  %v46 = vld [vmem:[%s1] sm:$0xf]
  %v47 = vld [vmem:[%s1 + $0x4] sm:$0xf]
  %v48 = vld [vmem:[%s1 + $0x8] sm:$0xf]
  %v49 = vld [vmem:[%s1 + $0xc] sm:$0xf]
  %v50 = vld [vmem:[%s1 + $0x10] sm:$0xf]
  %v51 = vld [vmem:[%s1 + $0x14] sm:$0xf]
  %v52 = vld [vmem:[%s1 + $0x18] sm:$0xf]
  %v53 = vld [vmem:[%s1 + $0x1c] sm:$0xf]
  %v54 = vld [vmem:[%s1 + $0x20] sm:$0xf]
  %v55 = vld [vmem:[%s1 + $0x24] sm:$0xf]
  %v56 = vld [vmem:[%s1 + $0x28] sm:$0xf]
  %v57 = vld [vmem:[%s1 + $0x2c] sm:$0xf]
  %v58 = vld [vmem:[%s1 + $0x30] sm:$0xf]
  %v59 = vld [vmem:[%s1 + $0x34] sm:$0xf]
  %v60 = vld [vmem:[%s1 + $0x38] sm:$0xf]
  %v61 = vld [vmem:[%s1 + $0x3c] sm:$0xf]
  %v62 = vld [vmem:[%s1 + $0x40] sm:$0xf]
  %v63 = vld [vmem:[%s1 + $0x44] sm:$0xf]
  %v64 = vld [vmem:[%s1 + $0x48] sm:$0xf]
  %v65 = vld [vmem:[%s1 + $0x4c] sm:$0xf]
  %v66 = vld [vmem:[%s1 + $0x50] sm:$0xf]
  %v67 = vld [vmem:[%s1 + $0x54] sm:$0xf]
  %v68 = vld [vmem:[%s1 + $0x58] sm:$0xf]
  %v69 = vld [vmem:[%s1 + $0x5c] sm:$0xf]
  %v70 = vld [vmem:[%s1 + $0x60] sm:$0xf]
  %v71 = vld [vmem:[%s1 + $0x64] sm:$0xf]
  %v72 = vld [vmem:[%s1 + $0x68] sm:$0xf]
  %v73 = vld [vmem:[%s1 + $0x6c] sm:$0xf]
  %v74 = vld [vmem:[%s1 + $0x70] sm:$0xf]
  %v75 = vld [vmem:[%s1 + $0x74] sm:$0xf]
  %v76 = vld [vmem:[%s1 + $0x78] sm:$0xf]
  %v77 = vld [vmem:[%s1 + $0x7c] sm:$0xf]
  %v78 = vld [vmem:[%s1 + $0x80] sm:$0xf]
  %v79 = vld [vmem:[%s1 + $0x84] sm:$0xf]
  %v80 = vld [vmem:[%s1 + $0x88] sm:$0xf]
  %v81 = vld [vmem:[%s1 + $0x8c] sm:$0xf]
  %v82 = vld [vmem:[%s1 + $0x90] sm:$0xf]
  %v83 = vld [vmem:[%s1 + $0x94] sm:$0xf]
  %v84 = vld [vmem:[%s1 + $0x98] sm:$0xf]
  %v85 = vld [vmem:[%s1 + $0x9c] sm:$0xf]
  %v86 = vld [vmem:[%s1 + $0xa0] sm:$0xf]
  %v87 = vld [vmem:[%s1 + $0xa4] sm:$0xf]
  %v88 = vld [vmem:[%s1 + $0xa8] sm:$0xf]
  %v89 = vld [vmem:[%s1 + $0xac] sm:$0xf]
  %v90 = vld [vmem:[%s1 + $0xb0] sm:$0xf]
  %v91 = vld [vmem:[%s1 + $0xb4] sm:$0xf]
  %v92 = vld [vmem:[%s1 + $0xb8] sm:$0xf]
  %v93 = vld [vmem:[%s1 + $0xbc] sm:$0xf]
  %v94 = vld [vmem:[%s1 + $0xc0] sm:$0xf]
  %v95 = vld [vmem:[%s1 + $0xc4] sm:$0xf]
  %v96 = vld [vmem:[%s1 + $0xc8] sm:$0xf]
  %v97 = vld [vmem:[%s1 + $0xcc] sm:$0xf]
  %v98 = vld [vmem:[%s1 + $0xd0] sm:$0xf]
  %v99 = vld [vmem:[%s1 + $0xd4] sm:$0xf]
  %v100 = vld [vmem:[%s1 + $0xd8] sm:$0xf]
  %v101 = vld [vmem:[%s1 + $0xdc] sm:$0xf]
  %v102 = vld [vmem:[%s1 + $0xe0] sm:$0xf]
  %v103 = vld [vmem:[%s1 + $0xe4] sm:$0xf]
  %v104 = vld [vmem:[%s1 + $0xe8] sm:$0xf]
  %v105 = vld [vmem:[%s1 + $0xec] sm:$0xf]
  %v106 = vld [vmem:[%s1 + $0xf0] sm:$0xf]
  %v107 = vld [vmem:[%s1 + $0xf4] sm:$0xf]
  %v108 = vld [vmem:[%s1 + $0xf8] sm:$0xf]
  %v109 = vld [vmem:[%s1 + $0xfc] sm:$0xf]
  %v110 = vld [vmem:[%s1 + $0x100] sm:$0xf]
  %v111 = vld [vmem:[%s1 + $0x104] sm:$0xf]
  %v112 = vld [vmem:[%s1 + $0x108] sm:$0xf]
  %v113 = vld [vmem:[%s1 + $0x10c] sm:$0xf]
  %v114 = vld [vmem:[%s1 + $0x110] sm:$0xf]
  %v115 = vld [vmem:[%s1 + $0x114] sm:$0xf]
  %v116 = vld [vmem:[%s1 + $0x118] sm:$0xf]
  %v117 = vld [vmem:[%s1 + $0x11c] sm:$0xf]
  %v118 = vld [vmem:[%s1 + $0x120] sm:$0xf]
  %v119 = vld [vmem:[%s1 + $0x124] sm:$0xf]
  %v120 = vld [vmem:[%s1 + $0x128] sm:$0xf]
  %v121 = vld [vmem:[%s1 + $0x12c] sm:$0xf]
  %v122 = vld [vmem:[%s1 + $0x130] sm:$0xf]
  %v123 = vld [vmem:[%s1 + $0x134] sm:$0xf]
  %v124 = vld [vmem:[%s1 + $0x138] sm:$0xf]
  %v125 = vld [vmem:[%s1 + $0x13c] sm:$0xf]
  %v126 = vld [vmem:[%s1 + $0x140] sm:$0xf]
  %v127 = vld [vmem:[%s1 + $0x144] sm:$0xf]
  %v128 = vld [vmem:[%s1 + $0x148] sm:$0xf]
  %v129 = vld [vmem:[%s1 + $0x14c] sm:$0xf]
  %v130 = vld [vmem:[%s1 + $0x150] sm:$0xf]
  %v131 = vld [vmem:[%s1 + $0x154] sm:$0xf]
  %v132 = vld [vmem:[%s1 + $0x158] sm:$0xf]
  %v133 = vld [vmem:[%s1 + $0x15c] sm:$0xf]
  %v134 = vld [vmem:[%s1 + $0x160] sm:$0xf]
  %v135 = vld [vmem:[%s1 + $0x164] sm:$0xf]
  %v136 = vld [vmem:[%s1 + $0x168] sm:$0xf]
  %v137 = vld [vmem:[%s1 + $0x16c] sm:$0xf]
  %v138 = vld [vmem:[%s1 + $0x170] sm:$0xf]
  %v139 = vld [vmem:[%s1 + $0x174] sm:$0xf]
  %v140 = vld [vmem:[%s1 + $0x178] sm:$0xf]
  %v141 = vld [vmem:[%s1 + $0x17c] sm:$0xf]
  %v142 = vld [vmem:[%s1 + $0x180] sm:$0xf]
  %v143 = vld [vmem:[%s1 + $0x184] sm:$0xf]
  %v144 = vld [vmem:[%s1 + $0x188] sm:$0xf]
  %v145 = vld [vmem:[%s1 + $0x18c] sm:$0xf]
  %v146 = vld [vmem:[%s1 + $0x190] sm:$0xf]
  %v147 = vld [vmem:[%s1 + $0x194] sm:$0xf]
  %v148 = vld [vmem:[%s1 + $0x198] sm:$0xf]
  %v149 = vld [vmem:[%s1 + $0x19c] sm:$0xf]
  %v150 = vld [vmem:[%s1 + $0x1a0] sm:$0xf]
  %v151 = vld [vmem:[%s1 + $0x1a4] sm:$0xf]
  %v152 = vld [vmem:[%s1 + $0x1a8] sm:$0xf]
  %v153 = vld [vmem:[%s1 + $0x1ac] sm:$0xf]
  %v154 = vld [vmem:[%s1 + $0x1b0] sm:$0xf]
  %v155 = vld [vmem:[%s1 + $0x1b4] sm:$0xf]
  %v156 = vld [vmem:[%s1 + $0x1b8] sm:$0xf]
  %v157 = vld [vmem:[%s1 + $0x1bc] sm:$0xf]
  %v158 = vld [vmem:[%s1 + $0x1c0] sm:$0xf]
  %v159 = vld [vmem:[%s1 + $0x1c4] sm:$0xf]
  %v160 = vld [vmem:[%s1 + $0x1c8] sm:$0xf]
  %v161 = vld [vmem:[%s1 + $0x1cc] sm:$0xf]
  %v162 = vld [vmem:[%s1 + $0x1d0] sm:$0xf]
  %v163 = vld [vmem:[%s1 + $0x1d4] sm:$0xf]
  %v164 = vld [vmem:[%s1 + $0x1d8] sm:$0xf]
  %v165 = vld [vmem:[%s1 + $0x1dc] sm:$0xf]
  %v166 = vld [vmem:[%s1 + $0x1e0] sm:$0xf]
  %v167 = vld [vmem:[%s1 + $0x1e4] sm:$0xf]
  %v168 = vld [vmem:[%s1 + $0x1e8] sm:$0xf]
  %v169 = vld [vmem:[%s1 + $0x1ec] sm:$0xf]
  %v170 = vld [vmem:[%s1 + $0x1f0] sm:$0xf]
  %v171 = vld [vmem:[%s1 + $0x1f4] sm:$0xf]
  %v172 = vld [vmem:[%s1 + $0x1f8] sm:$0xf]
  %v173 = vld [vmem:[%s1 + $0x1fc] sm:$0xf]
  %v174 = vld [vmem:[%s1 + $0x200] sm:$0xf]
  %v175 = vld [vmem:[%s1 + $0x204] sm:$0xf]
  %v176 = vld [vmem:[%s1 + $0x208] sm:$0xf]
  %v177 = vld [vmem:[%s1 + $0x20c] sm:$0xf]
  %v178 = vld [vmem:[%s1 + $0x210] sm:$0xf]
  %v179 = vld [vmem:[%s1 + $0x214] sm:$0xf]
  %v180 = vld [vmem:[%s1 + $0x218] sm:$0xf]
  %v181 = vld [vmem:[%s1 + $0x21c] sm:$0xf]
  %v182 = vld [vmem:[%s1 + $0x220] sm:$0xf]
  %v183 = vld [vmem:[%s1 + $0x224] sm:$0xf]
  %v184 = vld [vmem:[%s1 + $0x228] sm:$0xf]
  %v185 = vld [vmem:[%s1 + $0x22c] sm:$0xf]
  %v186 = vld [vmem:[%s1 + $0x230] sm:$0xf]
  %v187 = vld [vmem:[%s1 + $0x234] sm:$0xf]
  %v188 = vld [vmem:[%s1 + $0x238] sm:$0xf]
  %v189 = vld [vmem:[%s1 + $0x23c] sm:$0xf]
  %v190 = vld [vmem:[%s1 + $0x240] sm:$0xf]
  %v191 = vld [vmem:[%s1 + $0x244] sm:$0xf]
  %v192 = vld [vmem:[%s1 + $0x248] sm:$0xf]
  %v193 = vld [vmem:[%s1 + $0x24c] sm:$0xf]
  %v194 = vld [vmem:[%s1 + $0x250] sm:$0xf]
  %v195 = vld [vmem:[%s1 + $0x254] sm:$0xf]
  %v196 = vld [vmem:[%s1 + $0x258] sm:$0xf]
  %v197 = vld [vmem:[%s1 + $0x25c] sm:$0xf]
  %v198 = vld [vmem:[%s1 + $0x260] sm:$0xf]
  %v199 = vld [vmem:[%s1 + $0x264] sm:$0xf]
  %v200 = vld [vmem:[%s1 + $0x268] sm:$0xf]
  %v201 = vld [vmem:[%s1 + $0x26c] sm:$0xf]
  %v202 = vld [vmem:[%s1 + $0x270] sm:$0xf]
  %v203 = vld [vmem:[%s1 + $0x274] sm:$0xf]
  %v204 = vld [vmem:[%s1 + $0x278] sm:$0xf]
  %v205 = vld [vmem:[%s1 + $0x27c] sm:$0xf]
  %v206 = vld [vmem:[%s1 + $0x280] sm:$0xf]
  %v207 = vld [vmem:[%s1 + $0x284] sm:$0xf]
  %v208 = vld [vmem:[%s1 + $0x288] sm:$0xf]
  %v209 = vld [vmem:[%s1 + $0x28c] sm:$0xf]
  %v210 = vld [vmem:[%s1 + $0x290] sm:$0xf]
  %v211 = vld [vmem:[%s1 + $0x294] sm:$0xf]
  %v212 = vld [vmem:[%s1 + $0x298] sm:$0xf]
  %v213 = vld [vmem:[%s1 + $0x29c] sm:$0xf]
  %v214 = vld [vmem:[%s1 + $0x2a0] sm:$0xf]
  %v215 = vld [vmem:[%s1 + $0x2a4] sm:$0xf]
  %v216 = vld [vmem:[%s1 + $0x2a8] sm:$0xf]
  %v217 = vld [vmem:[%s1 + $0x2ac] sm:$0xf]
  %v218 = vld [vmem:[%s1 + $0x2b0] sm:$0xf]
  %v219 = vld [vmem:[%s1 + $0x2b4] sm:$0xf]
  %v220 = vld [vmem:[%s1 + $0x2b8] sm:$0xf]
  %v221 = vld [vmem:[%s1 + $0x2bc] sm:$0xf]
  %v222 = vld [vmem:[%s1 + $0x2c0] sm:$0xf]
  %v223 = vld [vmem:[%s1 + $0x2c4] sm:$0xf]
  %v224 = vld [vmem:[%s1 + $0x2c8] sm:$0xf]
  %v225 = vld [vmem:[%s1 + $0x2cc] sm:$0xf]
  %v226 = vld [vmem:[%s1 + $0x2d0] sm:$0xf]
  %v227 = vld [vmem:[%s1 + $0x2d4] sm:$0xf]
  %v228 = vld [vmem:[%s1 + $0x2d8] sm:$0xf]
  %v229 = vld [vmem:[%s1 + $0x2dc] sm:$0xf]
  %v230 = vld [vmem:[%s1 + $0x2e0] sm:$0xf]
  %v231 = vld [vmem:[%s1 + $0x2e4] sm:$0xf]
  %v232 = vld [vmem:[%s1 + $0x2e8] sm:$0xf]
  %v233 = vld [vmem:[%s1 + $0x2ec] sm:$0xf]
  %v234 = vld [vmem:[%s1 + $0x2f0] sm:$0xf]
  %v235 = vld [vmem:[%s1 + $0x2f4] sm:$0xf]
  %v236 = vld [vmem:[%s1 + $0x2f8] sm:$0xf]
  %v237 = vld [vmem:[%s1 + $0x2fc] sm:$0xf]
  %v238 = vld [vmem:[%s1 + $0x300] sm:$0xf]
  %v239 = vld [vmem:[%s1 + $0x304] sm:$0xf]
  %v240 = vld [vmem:[%s1 + $0x308] sm:$0xf]
  %v241 = vld [vmem:[%s1 + $0x30c] sm:$0xf]
  %v242 = vld [vmem:[%s1 + $0x310] sm:$0xf]
  %v243 = vld [vmem:[%s1 + $0x314] sm:$0xf]
  %v244 = vld [vmem:[%s1 + $0x318] sm:$0xf]
  %v245 = vld [vmem:[%s1 + $0x31c] sm:$0xf]
  %v246 = vld [vmem:[%s1 + $0x320] sm:$0xf]
  %v247 = vld [vmem:[%s1 + $0x324] sm:$0xf]
  %v248 = vld [vmem:[%s1 + $0x328] sm:$0xf]
  %v249 = vld [vmem:[%s1 + $0x32c] sm:$0xf]
  %v250 = vld [vmem:[%s1 + $0x330] sm:$0xf]
  %v251 = vld [vmem:[%s1 + $0x334] sm:$0xf]
  %v252 = vld [vmem:[%s1 + $0x338] sm:$0xf]
  %v253 = vld [vmem:[%s1 + $0x33c] sm:$0xf]
  %v254 = vld [vmem:[%s1 + $0x340] sm:$0xf]
  %v255 = vld [vmem:[%s1 + $0x344] sm:$0xf]
  %v256 = vld [vmem:[%s1 + $0x348] sm:$0xf]
  %v257 = vld [vmem:[%s1 + $0x34c] sm:$0xf]
  %v258 = vld [vmem:[%s1 + $0x350] sm:$0xf]
  %v259 = vld [vmem:[%s1 + $0x354] sm:$0xf]
  %v260 = vld [vmem:[%s1 + $0x358] sm:$0xf]
  %v261 = vld [vmem:[%s1 + $0x35c] sm:$0xf]
  %v262 = vld [vmem:[%s1 + $0x360] sm:$0xf]
  %v263 = vld [vmem:[%s1 + $0x364] sm:$0xf]
  %v264 = vld [vmem:[%s1 + $0x368] sm:$0xf]
  %v265 = vld [vmem:[%s1 + $0x36c] sm:$0xf]
  %v266 = vld [vmem:[%s1 + $0x370] sm:$0xf]
  %v267 = vld [vmem:[%s1 + $0x374] sm:$0xf]
  %v268 = vld [vmem:[%s1 + $0x378] sm:$0xf]
  %v269 = vld [vmem:[%s1 + $0x37c] sm:$0xf]
  %v270 = vld [vmem:[%s1 + $0x380] sm:$0xf]
  %v271 = vld [vmem:[%s1 + $0x384] sm:$0xf]
  %v272 = vld [vmem:[%s1 + $0x388] sm:$0xf]
  %v273 = vld [vmem:[%s1 + $0x38c] sm:$0xf]
  %v274 = vld [vmem:[%s1 + $0x390] sm:$0xf]
  %v275 = vld [vmem:[%s1 + $0x394] sm:$0xf]
  %v276 = vld [vmem:[%s1 + $0x398] sm:$0xf]
  %v277 = vld [vmem:[%s1 + $0x39c] sm:$0xf]
  %v278 = vld [vmem:[%s1 + $0x3a0] sm:$0xf]
  %v279 = vld [vmem:[%s1 + $0x3a4] sm:$0xf]
  %v280 = vld [vmem:[%s1 + $0x3a8] sm:$0xf]
  %v281 = vld [vmem:[%s1 + $0x3ac] sm:$0xf]
  %v282 = vld [vmem:[%s1 + $0x3b0] sm:$0xf]
  %v283 = vld [vmem:[%s1 + $0x3b4] sm:$0xf]
  %v284 = vld [vmem:[%s1 + $0x3b8] sm:$0xf]
  %v285 = vld [vmem:[%s1 + $0x3bc] sm:$0xf]
  %v286 = vld [vmem:[%s1 + $0x3c0] sm:$0xf]
  %v287 = vld [vmem:[%s1 + $0x3c4] sm:$0xf]
  %v288 = vld [vmem:[%s1 + $0x3c8] sm:$0xf]
  %v289 = vld [vmem:[%s1 + $0x3cc] sm:$0xf]
  %v290 = vld [vmem:[%s1 + $0x3d0] sm:$0xf]
  %v291 = vld [vmem:[%s1 + $0x3d4] sm:$0xf]
  %v292 = vld [vmem:[%s1 + $0x3d8] sm:$0xf]
  %v293 = vld [vmem:[%s1 + $0x3dc] sm:$0xf]
  %v294 = vld [vmem:[%s1 + $0x3e0] sm:$0xf]
  %v295 = vld [vmem:[%s1 + $0x3e4] sm:$0xf]
  %v296 = vld [vmem:[%s1 + $0x3e8] sm:$0xf]
  %v297 = vld [vmem:[%s1 + $0x3ec] sm:$0xf]
  %v298 = vld [vmem:[%s1 + $0x3f0] sm:$0xf]
  %v299 = vld [vmem:[%s1 + $0x3f4] sm:$0xf]
  %v300 = vld [vmem:[%s1 + $0x3f8] sm:$0xf]
  %v301 = vld [vmem:[%s1 + $0x3fc] sm:$0xf]
  %v334 = vunpack.c.l.b16 %v14
  %v335 = vunpack.c.h.b16 %v14
  %v336 = vunpack.c.l.b16 %v15
  %v337 = vunpack.c.h.b16 %v15
  %v338 = vunpack.c.l.b16 %v16
  %v339 = vunpack.c.h.b16 %v16
  %v340 = vunpack.c.l.b16 %v17
  %v341 = vunpack.c.h.b16 %v17
  %v342 = vunpack.c.l.b16 %v18
  %v343 = vunpack.c.h.b16 %v18
  %v344 = vunpack.c.l.b16 %v19
  %v345 = vunpack.c.h.b16 %v19
  %v346 = vunpack.c.l.b16 %v20
  %v347 = vunpack.c.h.b16 %v20
  %v348 = vunpack.c.l.b16 %v21
  %v349 = vunpack.c.h.b16 %v21
  %v350 = vunpack.c.l.b16 %v22
  %v351 = vunpack.c.h.b16 %v22
  %v352 = vunpack.c.l.b16 %v23
  %v353 = vunpack.c.h.b16 %v23
  %v354 = vunpack.c.l.b16 %v24
  %v355 = vunpack.c.h.b16 %v24
  %v356 = vunpack.c.l.b16 %v25
  %v357 = vunpack.c.h.b16 %v25
  %v358 = vunpack.c.l.b16 %v26
  %v359 = vunpack.c.h.b16 %v26
  %v360 = vunpack.c.l.b16 %v27
  %v361 = vunpack.c.h.b16 %v27
  %v362 = vunpack.c.l.b16 %v28
  %v363 = vunpack.c.h.b16 %v28
  %v364 = vunpack.c.l.b16 %v29
  %v365 = vunpack.c.h.b16 %v29
  %v366 = vunpack.c.l.b16 %v30
  %v367 = vunpack.c.h.b16 %v30
  %v368 = vunpack.c.l.b16 %v31
  %v369 = vunpack.c.h.b16 %v31
  %v370 = vunpack.c.l.b16 %v32
  %v371 = vunpack.c.h.b16 %v32
  %v372 = vunpack.c.l.b16 %v33
  %v373 = vunpack.c.h.b16 %v33
  %v374 = vunpack.c.l.b16 %v34
  %v375 = vunpack.c.h.b16 %v34
  %v376 = vunpack.c.l.b16 %v35
  %v377 = vunpack.c.h.b16 %v35
  %v378 = vunpack.c.l.b16 %v36
  %v379 = vunpack.c.h.b16 %v36
  %v380 = vunpack.c.l.b16 %v37
  %v381 = vunpack.c.h.b16 %v37
  %v382 = vunpack.c.l.b16 %v38
  %v383 = vunpack.c.h.b16 %v38
  %v384 = vunpack.c.l.b16 %v39
  %v385 = vunpack.c.h.b16 %v39
  %v386 = vunpack.c.l.b16 %v40
  %v387 = vunpack.c.h.b16 %v40
  %v388 = vunpack.c.l.b16 %v41
  %v389 = vunpack.c.h.b16 %v41
  %v390 = vunpack.c.l.b16 %v42
  %v391 = vunpack.c.h.b16 %v42
  %v392 = vunpack.c.l.b16 %v43
  %v393 = vunpack.c.h.b16 %v43
  %v394 = vunpack.c.l.b16 %v44
  %v395 = vunpack.c.h.b16 %v44
  %v396 = vunpack.c.l.b16 %v45
  %v397 = vunpack.c.h.b16 %v45
  %v398 = vpack.c.b16 %v350, %v334
  %v399 = vpack.c.b16 %v351, %v335
  %v400 = vpack.c.b16 %v352, %v336
  %v401 = vpack.c.b16 %v353, %v337
  %v402 = vpack.c.b16 %v354, %v338
  %v403 = vpack.c.b16 %v355, %v339
  %v404 = vpack.c.b16 %v356, %v340
  %v405 = vpack.c.b16 %v357, %v341
  %v406 = vpack.c.b16 %v358, %v342
  %v407 = vpack.c.b16 %v359, %v343
  %v408 = vpack.c.b16 %v360, %v344
  %v409 = vpack.c.b16 %v361, %v345
  %v410 = vpack.c.b16 %v362, %v346
  %v411 = vpack.c.b16 %v363, %v347
  %v412 = vpack.c.b16 %v364, %v348
  %v413 = vpack.c.b16 %v365, %v349
  %v414 = vpack.c.b16 %v382, %v366
  %v415 = vpack.c.b16 %v383, %v367
  %v416 = vpack.c.b16 %v384, %v368
  %v417 = vpack.c.b16 %v385, %v369
  %v418 = vpack.c.b16 %v386, %v370
  %v419 = vpack.c.b16 %v387, %v371
  %v420 = vpack.c.b16 %v388, %v372
  %v421 = vpack.c.b16 %v389, %v373
  %v422 = vpack.c.b16 %v390, %v374
  %v423 = vpack.c.b16 %v391, %v375
  %v424 = vpack.c.b16 %v392, %v376
  %v425 = vpack.c.b16 %v393, %v377
  %v426 = vpack.c.b16 %v394, %v378
  %v427 = vpack.c.b16 %v395, %v379
  %v428 = vpack.c.b16 %v396, %v380
  %v429 = vpack.c.b16 %v397, %v381
  %v718 = vunpack.c.l.b16 %v46
  %v719 = vunpack.c.l.b16 %v47
  %v720 = vunpack.c.l.b16 %v48
  %v721 = vunpack.c.l.b16 %v49
  %v722 = vunpack.c.l.b16 %v50
  %v723 = vunpack.c.l.b16 %v51
  %v724 = vunpack.c.l.b16 %v52
  %v725 = vunpack.c.l.b16 %v53
  %v726 = vunpack.c.l.b16 %v54
  %v727 = vunpack.c.l.b16 %v55
  %v728 = vunpack.c.l.b16 %v56
  %v729 = vunpack.c.l.b16 %v57
  %v730 = vunpack.c.l.b16 %v58
  %v731 = vunpack.c.l.b16 %v59
  %v732 = vunpack.c.l.b16 %v60
  %v733 = vunpack.c.l.b16 %v61
  %v734 = vunpack.c.l.b16 %v62
  %v735 = vunpack.c.l.b16 %v63
  %v736 = vunpack.c.l.b16 %v64
  %v737 = vunpack.c.l.b16 %v65
  %v738 = vunpack.c.l.b16 %v66
  %v739 = vunpack.c.l.b16 %v67
  %v740 = vunpack.c.l.b16 %v68
  %v741 = vunpack.c.l.b16 %v69
  %v742 = vunpack.c.l.b16 %v70
  %v743 = vunpack.c.l.b16 %v71
  %v744 = vunpack.c.l.b16 %v72
  %v745 = vunpack.c.l.b16 %v73
  %v746 = vunpack.c.l.b16 %v74
  %v747 = vunpack.c.l.b16 %v75
  %v748 = vunpack.c.l.b16 %v76
  %v749 = vunpack.c.l.b16 %v77
  %v750 = vunpack.c.l.b16 %v78
  %v751 = vunpack.c.l.b16 %v79
  %v752 = vunpack.c.l.b16 %v80
  %v753 = vunpack.c.l.b16 %v81
  %v754 = vunpack.c.l.b16 %v82
  %v755 = vunpack.c.l.b16 %v83
  %v756 = vunpack.c.l.b16 %v84
  %v757 = vunpack.c.l.b16 %v85
  %v758 = vunpack.c.l.b16 %v86
  %v759 = vunpack.c.l.b16 %v87
  %v760 = vunpack.c.l.b16 %v88
  %v761 = vunpack.c.l.b16 %v89
  %v762 = vunpack.c.l.b16 %v90
  %v763 = vunpack.c.l.b16 %v91
  %v764 = vunpack.c.l.b16 %v92
  %v765 = vunpack.c.l.b16 %v93
  %v766 = vunpack.c.l.b16 %v94
  %v767 = vunpack.c.l.b16 %v95
  %v768 = vunpack.c.l.b16 %v96
  %v769 = vunpack.c.l.b16 %v97
  %v770 = vunpack.c.l.b16 %v98
  %v771 = vunpack.c.l.b16 %v99
  %v772 = vunpack.c.l.b16 %v100
  %v773 = vunpack.c.l.b16 %v101
  %v774 = vunpack.c.l.b16 %v102
  %v775 = vunpack.c.l.b16 %v103
  %v776 = vunpack.c.l.b16 %v104
  %v777 = vunpack.c.l.b16 %v105
  %v778 = vunpack.c.l.b16 %v106
  %v779 = vunpack.c.l.b16 %v107
  %v780 = vunpack.c.l.b16 %v108
  %v781 = vunpack.c.l.b16 %v109
  %v782 = vunpack.c.l.b16 %v110
  %v783 = vunpack.c.l.b16 %v111
  %v784 = vunpack.c.l.b16 %v112
  %v785 = vunpack.c.l.b16 %v113
  %v786 = vunpack.c.l.b16 %v114
  %v787 = vunpack.c.l.b16 %v115
  %v788 = vunpack.c.l.b16 %v116
  %v789 = vunpack.c.l.b16 %v117
  %v790 = vunpack.c.l.b16 %v118
  %v791 = vunpack.c.l.b16 %v119
  %v792 = vunpack.c.l.b16 %v120
  %v793 = vunpack.c.l.b16 %v121
  %v794 = vunpack.c.l.b16 %v122
  %v795 = vunpack.c.l.b16 %v123
  %v796 = vunpack.c.l.b16 %v124
  %v797 = vunpack.c.l.b16 %v125
  %v798 = vunpack.c.l.b16 %v126
  %v799 = vunpack.c.l.b16 %v127
  %v800 = vunpack.c.l.b16 %v128
  %v801 = vunpack.c.l.b16 %v129
  %v802 = vunpack.c.l.b16 %v130
  %v803 = vunpack.c.l.b16 %v131
  %v804 = vunpack.c.l.b16 %v132
  %v805 = vunpack.c.l.b16 %v133
  %v806 = vunpack.c.l.b16 %v134
  %v807 = vunpack.c.l.b16 %v135
  %v808 = vunpack.c.l.b16 %v136
  %v809 = vunpack.c.l.b16 %v137
  %v810 = vunpack.c.l.b16 %v138
  %v811 = vunpack.c.l.b16 %v139
  %v812 = vunpack.c.l.b16 %v140
  %v813 = vunpack.c.l.b16 %v141
  %v814 = vunpack.c.l.b16 %v142
  %v815 = vunpack.c.l.b16 %v143
  %v816 = vunpack.c.l.b16 %v144
  %v817 = vunpack.c.l.b16 %v145
  %v818 = vunpack.c.l.b16 %v146
  %v819 = vunpack.c.l.b16 %v147
  %v820 = vunpack.c.l.b16 %v148
  %v821 = vunpack.c.l.b16 %v149
  %v822 = vunpack.c.l.b16 %v150
  %v823 = vunpack.c.l.b16 %v151
  %v824 = vunpack.c.l.b16 %v152
  %v825 = vunpack.c.l.b16 %v153
  %v826 = vunpack.c.l.b16 %v154
  %v827 = vunpack.c.l.b16 %v155
  %v828 = vunpack.c.l.b16 %v156
  %v829 = vunpack.c.l.b16 %v157
  %v830 = vunpack.c.l.b16 %v158
  %v831 = vunpack.c.l.b16 %v159
  %v832 = vunpack.c.l.b16 %v160
  %v833 = vunpack.c.l.b16 %v161
  %v834 = vunpack.c.l.b16 %v162
  %v835 = vunpack.c.l.b16 %v163
  %v836 = vunpack.c.l.b16 %v164
  %v837 = vunpack.c.l.b16 %v165
  %v838 = vunpack.c.l.b16 %v166
  %v839 = vunpack.c.l.b16 %v167
  %v840 = vunpack.c.l.b16 %v168
  %v841 = vunpack.c.l.b16 %v169
  %v842 = vunpack.c.l.b16 %v170
  %v843 = vunpack.c.l.b16 %v171
  %v844 = vunpack.c.l.b16 %v172
  %v845 = vunpack.c.l.b16 %v173
  %v846 = vunpack.c.l.b16 %v174
  %v847 = vunpack.c.l.b16 %v175
  %v848 = vunpack.c.l.b16 %v176
  %v849 = vunpack.c.l.b16 %v177
  %v850 = vunpack.c.l.b16 %v178
  %v851 = vunpack.c.l.b16 %v179
  %v852 = vunpack.c.l.b16 %v180
  %v853 = vunpack.c.l.b16 %v181
  %v854 = vunpack.c.l.b16 %v182
  %v855 = vunpack.c.l.b16 %v183
  %v856 = vunpack.c.l.b16 %v184
  %v857 = vunpack.c.l.b16 %v185
  %v858 = vunpack.c.l.b16 %v186
  %v859 = vunpack.c.l.b16 %v187
  %v860 = vunpack.c.l.b16 %v188
  %v861 = vunpack.c.l.b16 %v189
  %v862 = vunpack.c.l.b16 %v190
  %v863 = vunpack.c.l.b16 %v191
  %v864 = vunpack.c.l.b16 %v192
  %v865 = vunpack.c.l.b16 %v193
  %v866 = vunpack.c.l.b16 %v194
  %v867 = vunpack.c.l.b16 %v195
  %v868 = vunpack.c.l.b16 %v196
  %v869 = vunpack.c.l.b16 %v197
  %v870 = vunpack.c.l.b16 %v198
  %v871 = vunpack.c.l.b16 %v199
  %v872 = vunpack.c.l.b16 %v200
  %v873 = vunpack.c.l.b16 %v201
  %v874 = vunpack.c.l.b16 %v202
  %v875 = vunpack.c.l.b16 %v203
  %v876 = vunpack.c.l.b16 %v204
  %v877 = vunpack.c.l.b16 %v205
  %v878 = vunpack.c.l.b16 %v206
  %v879 = vunpack.c.l.b16 %v207
  %v880 = vunpack.c.l.b16 %v208
  %v881 = vunpack.c.l.b16 %v209
  %v882 = vunpack.c.l.b16 %v210
  %v883 = vunpack.c.l.b16 %v211
  %v884 = vunpack.c.l.b16 %v212
  %v885 = vunpack.c.l.b16 %v213
  %v886 = vunpack.c.l.b16 %v214
  %v887 = vunpack.c.l.b16 %v215
  %v888 = vunpack.c.l.b16 %v216
  %v889 = vunpack.c.l.b16 %v217
  %v890 = vunpack.c.l.b16 %v218
  %v891 = vunpack.c.l.b16 %v219
  %v892 = vunpack.c.l.b16 %v220
  %v893 = vunpack.c.l.b16 %v221
  %v894 = vunpack.c.l.b16 %v222
  %v895 = vunpack.c.l.b16 %v223
  %v896 = vunpack.c.l.b16 %v224
  %v897 = vunpack.c.l.b16 %v225
  %v898 = vunpack.c.l.b16 %v226
  %v899 = vunpack.c.l.b16 %v227
  %v900 = vunpack.c.l.b16 %v228
  %v901 = vunpack.c.l.b16 %v229
  %v902 = vunpack.c.l.b16 %v230
  %v903 = vunpack.c.l.b16 %v231
  %v904 = vunpack.c.l.b16 %v232
  %v905 = vunpack.c.l.b16 %v233
  %v906 = vunpack.c.l.b16 %v234
  %v907 = vunpack.c.l.b16 %v235
  %v908 = vunpack.c.l.b16 %v236
  %v909 = vunpack.c.l.b16 %v237
  %v910 = vunpack.c.l.b16 %v238
  %v911 = vunpack.c.l.b16 %v239
  %v912 = vunpack.c.l.b16 %v240
  %v913 = vunpack.c.l.b16 %v241
  %v914 = vunpack.c.l.b16 %v242
  %v915 = vunpack.c.l.b16 %v243
  %v916 = vunpack.c.l.b16 %v244
  %v917 = vunpack.c.l.b16 %v245
  %v918 = vunpack.c.l.b16 %v246
  %v919 = vunpack.c.l.b16 %v247
  %v920 = vunpack.c.l.b16 %v248
  %v921 = vunpack.c.l.b16 %v249
  %v922 = vunpack.c.l.b16 %v250
  %v923 = vunpack.c.l.b16 %v251
  %v924 = vunpack.c.l.b16 %v252
  %v925 = vunpack.c.l.b16 %v253
  %v926 = vunpack.c.l.b16 %v254
  %v927 = vunpack.c.l.b16 %v255
  %v928 = vunpack.c.l.b16 %v256
  %v929 = vunpack.c.l.b16 %v257
  %v930 = vunpack.c.l.b16 %v258
  %v931 = vunpack.c.l.b16 %v259
  %v932 = vunpack.c.l.b16 %v260
  %v933 = vunpack.c.l.b16 %v261
  %v934 = vunpack.c.l.b16 %v262
  %v935 = vunpack.c.l.b16 %v263
  %v936 = vunpack.c.l.b16 %v264
  %v937 = vunpack.c.l.b16 %v265
  %v938 = vunpack.c.l.b16 %v266
  %v939 = vunpack.c.l.b16 %v267
  %v940 = vunpack.c.l.b16 %v268
  %v941 = vunpack.c.l.b16 %v269
  %v942 = vunpack.c.l.b16 %v270
  %v943 = vunpack.c.l.b16 %v271
  %v944 = vunpack.c.l.b16 %v272
  %v945 = vunpack.c.l.b16 %v273
  %v946 = vunpack.c.l.b16 %v274
  %v947 = vunpack.c.l.b16 %v275
  %v948 = vunpack.c.l.b16 %v276
  %v949 = vunpack.c.l.b16 %v277
  %v950 = vunpack.c.l.b16 %v278
  %v951 = vunpack.c.l.b16 %v279
  %v952 = vunpack.c.l.b16 %v280
  %v953 = vunpack.c.l.b16 %v281
  %v954 = vunpack.c.l.b16 %v282
  %v955 = vunpack.c.l.b16 %v283
  %v956 = vunpack.c.l.b16 %v284
  %v957 = vunpack.c.l.b16 %v285
  %v958 = vunpack.c.l.b16 %v286
  %v959 = vunpack.c.l.b16 %v287
  %v960 = vunpack.c.l.b16 %v288
  %v961 = vunpack.c.l.b16 %v289
  %v962 = vunpack.c.l.b16 %v290
  %v963 = vunpack.c.l.b16 %v291
  %v964 = vunpack.c.l.b16 %v292
  %v965 = vunpack.c.l.b16 %v293
  %v966 = vunpack.c.l.b16 %v294
  %v967 = vunpack.c.l.b16 %v295
  %v968 = vunpack.c.l.b16 %v296
  %v969 = vunpack.c.l.b16 %v297
  %v970 = vunpack.c.l.b16 %v298
  %v971 = vunpack.c.l.b16 %v299
  %v972 = vunpack.c.l.b16 %v300
  %v973 = vunpack.c.l.b16 %v301
  %v974 = vpack.c.b16 %v719, %v718
  %v975 = vpack.c.b16 %v721, %v720
  %v976 = vpack.c.b16 %v723, %v722
  %v977 = vpack.c.b16 %v725, %v724
  %v978 = vpack.c.b16 %v727, %v726
  %v979 = vpack.c.b16 %v729, %v728
  %v980 = vpack.c.b16 %v731, %v730
  %v981 = vpack.c.b16 %v733, %v732
  %v982 = vpack.c.b16 %v735, %v734
  %v983 = vpack.c.b16 %v737, %v736
  %v984 = vpack.c.b16 %v739, %v738
  %v985 = vpack.c.b16 %v741, %v740
  %v986 = vpack.c.b16 %v743, %v742
  %v987 = vpack.c.b16 %v745, %v744
  %v988 = vpack.c.b16 %v747, %v746
  %v989 = vpack.c.b16 %v749, %v748
  %v990 = vpack.c.b16 %v751, %v750
  %v991 = vpack.c.b16 %v753, %v752
  %v992 = vpack.c.b16 %v755, %v754
  %v993 = vpack.c.b16 %v757, %v756
  %v994 = vpack.c.b16 %v759, %v758
  %v995 = vpack.c.b16 %v761, %v760
  %v996 = vpack.c.b16 %v763, %v762
  %v997 = vpack.c.b16 %v765, %v764
  %v998 = vpack.c.b16 %v767, %v766
  %v999 = vpack.c.b16 %v769, %v768
  %v1000 = vpack.c.b16 %v771, %v770
  %v1001 = vpack.c.b16 %v773, %v772
  %v1002 = vpack.c.b16 %v775, %v774
  %v1003 = vpack.c.b16 %v777, %v776
  %v1004 = vpack.c.b16 %v779, %v778
  %v1005 = vpack.c.b16 %v781, %v780
  %v1006 = vpack.c.b16 %v783, %v782
  %v1007 = vpack.c.b16 %v785, %v784
  %v1008 = vpack.c.b16 %v787, %v786
  %v1009 = vpack.c.b16 %v789, %v788
  %v1010 = vpack.c.b16 %v791, %v790
  %v1011 = vpack.c.b16 %v793, %v792
  %v1012 = vpack.c.b16 %v795, %v794
  %v1013 = vpack.c.b16 %v797, %v796
  %v1014 = vpack.c.b16 %v799, %v798
  %v1015 = vpack.c.b16 %v801, %v800
  %v1016 = vpack.c.b16 %v803, %v802
  %v1017 = vpack.c.b16 %v805, %v804
  %v1018 = vpack.c.b16 %v807, %v806
  %v1019 = vpack.c.b16 %v809, %v808
  %v1020 = vpack.c.b16 %v811, %v810
  %v1021 = vpack.c.b16 %v813, %v812
  %v1022 = vpack.c.b16 %v815, %v814
  %v1023 = vpack.c.b16 %v817, %v816
  %v1024 = vpack.c.b16 %v819, %v818
  %v1025 = vpack.c.b16 %v821, %v820
  %v1026 = vpack.c.b16 %v823, %v822
  %v1027 = vpack.c.b16 %v825, %v824
  %v1028 = vpack.c.b16 %v827, %v826
  %v1029 = vpack.c.b16 %v829, %v828
  %v1030 = vpack.c.b16 %v831, %v830
  %v1031 = vpack.c.b16 %v833, %v832
  %v1032 = vpack.c.b16 %v835, %v834
  %v1033 = vpack.c.b16 %v837, %v836
  %v1034 = vpack.c.b16 %v839, %v838
  %v1035 = vpack.c.b16 %v841, %v840
  %v1036 = vpack.c.b16 %v843, %v842
  %v1037 = vpack.c.b16 %v845, %v844
  %v1038 = vpack.c.b16 %v847, %v846
  %v1039 = vpack.c.b16 %v849, %v848
  %v1040 = vpack.c.b16 %v851, %v850
  %v1041 = vpack.c.b16 %v853, %v852
  %v1042 = vpack.c.b16 %v855, %v854
  %v1043 = vpack.c.b16 %v857, %v856
  %v1044 = vpack.c.b16 %v859, %v858
  %v1045 = vpack.c.b16 %v861, %v860
  %v1046 = vpack.c.b16 %v863, %v862
  %v1047 = vpack.c.b16 %v865, %v864
  %v1048 = vpack.c.b16 %v867, %v866
  %v1049 = vpack.c.b16 %v869, %v868
  %v1050 = vpack.c.b16 %v871, %v870
  %v1051 = vpack.c.b16 %v873, %v872
  %v1052 = vpack.c.b16 %v875, %v874
  %v1053 = vpack.c.b16 %v877, %v876
  %v1054 = vpack.c.b16 %v879, %v878
  %v1055 = vpack.c.b16 %v881, %v880
  %v1056 = vpack.c.b16 %v883, %v882
  %v1057 = vpack.c.b16 %v885, %v884
  %v1058 = vpack.c.b16 %v887, %v886
  %v1059 = vpack.c.b16 %v889, %v888
  %v1060 = vpack.c.b16 %v891, %v890
  %v1061 = vpack.c.b16 %v893, %v892
  %v1062 = vpack.c.b16 %v895, %v894
  %v1063 = vpack.c.b16 %v897, %v896
  %v1064 = vpack.c.b16 %v899, %v898
  %v1065 = vpack.c.b16 %v901, %v900
  %v1066 = vpack.c.b16 %v903, %v902
  %v1067 = vpack.c.b16 %v905, %v904
  %v1068 = vpack.c.b16 %v907, %v906
  %v1069 = vpack.c.b16 %v909, %v908
  %v1070 = vpack.c.b16 %v911, %v910
  %v1071 = vpack.c.b16 %v913, %v912
  %v1072 = vpack.c.b16 %v915, %v914
  %v1073 = vpack.c.b16 %v917, %v916
  %v1074 = vpack.c.b16 %v919, %v918
  %v1075 = vpack.c.b16 %v921, %v920
  %v1076 = vpack.c.b16 %v923, %v922
  %v1077 = vpack.c.b16 %v925, %v924
  %v1078 = vpack.c.b16 %v927, %v926
  %v1079 = vpack.c.b16 %v929, %v928
  %v1080 = vpack.c.b16 %v931, %v930
  %v1081 = vpack.c.b16 %v933, %v932
  %v1082 = vpack.c.b16 %v935, %v934
  %v1083 = vpack.c.b16 %v937, %v936
  %v1084 = vpack.c.b16 %v939, %v938
  %v1085 = vpack.c.b16 %v941, %v940
  %v1086 = vpack.c.b16 %v943, %v942
  %v1087 = vpack.c.b16 %v945, %v944
  %v1088 = vpack.c.b16 %v947, %v946
  %v1089 = vpack.c.b16 %v949, %v948
  %v1090 = vpack.c.b16 %v951, %v950
  %v1091 = vpack.c.b16 %v953, %v952
  %v1092 = vpack.c.b16 %v955, %v954
  %v1093 = vpack.c.b16 %v957, %v956
  %v1094 = vpack.c.b16 %v959, %v958
  %v1095 = vpack.c.b16 %v961, %v960
  %v1096 = vpack.c.b16 %v963, %v962
  %v1097 = vpack.c.b16 %v965, %v964
  %v1098 = vpack.c.b16 %v967, %v966
  %v1099 = vpack.c.b16 %v969, %v968
  %v1100 = vpack.c.b16 %v971, %v970
  %v1101 = vpack.c.b16 %v973, %v972
  %1230 = vmatprep.subr.bf16.mxu0 0
  %1231 = vmatpush1.bf16.msra.mxu0 %v974
  %1232 = vmatprep.subr.bf16.mxu0 0
  %1233 = vmatpush1.bf16.msra.mxu0 %v975
  %1234 = vmatprep.subr.bf16.mxu0 0
  %1235 = vmatpush1.bf16.msra.mxu0 %v976
  %1236 = vmatprep.subr.bf16.mxu0 0
  %1237 = vmatpush1.bf16.msra.mxu0 %v977
  %1238 = vmatprep.subr.bf16.mxu0 0
  %1239 = vmatpush1.bf16.msra.mxu0 %v978
  %1240 = vmatprep.subr.bf16.mxu0 0
  %1241 = vmatpush1.bf16.msra.mxu0 %v979
  %1242 = vmatprep.subr.bf16.mxu0 0
  %1243 = vmatpush1.bf16.msra.mxu0 %v980
  %1244 = vmatprep.subr.bf16.mxu0 0
  %1245 = vmatpush1.bf16.msra.mxu0 %v981
  %1246 = vmatprep.subr.bf16.mxu0 0
  %1247 = vmatpush1.bf16.msra.mxu0 %v982
  %1248 = vmatprep.subr.bf16.mxu0 0
  %1249 = vmatpush1.bf16.msra.mxu0 %v983
  %1250 = vmatprep.subr.bf16.mxu0 0
  %1251 = vmatpush1.bf16.msra.mxu0 %v984
  %1252 = vmatprep.subr.bf16.mxu0 0
  %1253 = vmatpush1.bf16.msra.mxu0 %v985
  %1254 = vmatprep.subr.bf16.mxu0 0
  %1255 = vmatpush1.bf16.msra.mxu0 %v986
  %1256 = vmatprep.subr.bf16.mxu0 0
  %1257 = vmatpush1.bf16.msra.mxu0 %v987
  %1258 = vmatprep.subr.bf16.mxu0 0
  %1259 = vmatpush1.bf16.msra.mxu0 %v988
  %1260 = vmatprep.subr.bf16.mxu0 0
  %1261 = vmatpush1.bf16.msra.mxu0 %v989
  %1262 = vmatprep.mubr.bf16.mxu0 %v399
  %1263 = vmatmul.mubr.bf16.gmra.mrb[0].mxu0 %v398
  %v1264 = vpop.f32.mrb[0].mxu0
  %v1265 = vadd.f32 0.0, %v1264
  %v1266 = vpop.f32.mrb[0].mxu0
  %v1267 = vpop.f32.mrb[0].mxu0
  %v1268 = vadd.f32 0.0, %v1267
  %v1269 = vpop.f32.mrb[0].mxu0
  %1270 = vmatprep.mubr.bf16.mxu0 %v415
  %1271 = vmatmul.mubr.bf16.gmra.mrb[0].mxu0 %v414
  %v1272 = vpop.f32.mrb[0].mxu0
  %v1273 = vadd.f32 0.0, %v1272
  %v1274 = vpop.f32.mrb[0].mxu0
  %v1275 = vpop.f32.mrb[0].mxu0
  %v1276 = vadd.f32 0.0, %v1275
  %v1277 = vpop.f32.mrb[0].mxu0
  %1278 = vdwg.mxu0
  %1279 = vmatprep.subr.bf16.mxu0 0
  %1280 = vmatpush1.bf16.msra.mxu0 %v990
  %1281 = vmatprep.subr.bf16.mxu0 0
  %1282 = vmatpush1.bf16.msra.mxu0 %v991
  %1283 = vmatprep.subr.bf16.mxu0 0
  %1284 = vmatpush1.bf16.msra.mxu0 %v992
  %1285 = vmatprep.subr.bf16.mxu0 0
  %1286 = vmatpush1.bf16.msra.mxu0 %v993
  %1287 = vmatprep.subr.bf16.mxu0 0
  %1288 = vmatpush1.bf16.msra.mxu0 %v994
  %1289 = vmatprep.subr.bf16.mxu0 0
  %1290 = vmatpush1.bf16.msra.mxu0 %v995
  %1291 = vmatprep.subr.bf16.mxu0 0
  %1292 = vmatpush1.bf16.msra.mxu0 %v996
  %1293 = vmatprep.subr.bf16.mxu0 0
  %1294 = vmatpush1.bf16.msra.mxu0 %v997
  %1295 = vmatprep.subr.bf16.mxu0 0
  %1296 = vmatpush1.bf16.msra.mxu0 %v998
  %1297 = vmatprep.subr.bf16.mxu0 0
  %1298 = vmatpush1.bf16.msra.mxu0 %v999
  %1299 = vmatprep.subr.bf16.mxu0 0
  %1300 = vmatpush1.bf16.msra.mxu0 %v1000
  %1301 = vmatprep.subr.bf16.mxu0 0
  %1302 = vmatpush1.bf16.msra.mxu0 %v1001
  %1303 = vmatprep.subr.bf16.mxu0 0
  %1304 = vmatpush1.bf16.msra.mxu0 %v1002
  %1305 = vmatprep.subr.bf16.mxu0 0
  %1306 = vmatpush1.bf16.msra.mxu0 %v1003
  %1307 = vmatprep.subr.bf16.mxu0 0
  %1308 = vmatpush1.bf16.msra.mxu0 %v1004
  %1309 = vmatprep.subr.bf16.mxu0 0
  %1310 = vmatpush1.bf16.msra.mxu0 %v1005
  %1311 = vmatprep.mubr.bf16.mxu0 %v401
  %1312 = vmatmul.mubr.bf16.gmra.mrb[0].mxu0 %v400
  %v1313 = vpop.f32.mrb[0].mxu0
  %v1314 = vadd.f32 %v1265, %v1313
  %v1315 = vpop.f32.mrb[0].mxu0
  %v1316 = vpop.f32.mrb[0].mxu0
  %v1317 = vadd.f32 %v1268, %v1316
  %v1318 = vpop.f32.mrb[0].mxu0
  %1319 = vmatprep.mubr.bf16.mxu0 %v417
  %1320 = vmatmul.mubr.bf16.gmra.mrb[0].mxu0 %v416
  %v1321 = vpop.f32.mrb[0].mxu0
  %v1322 = vadd.f32 %v1273, %v1321
  %v1323 = vpop.f32.mrb[0].mxu0
  %v1324 = vpop.f32.mrb[0].mxu0
  %v1325 = vadd.f32 %v1276, %v1324
  %v1326 = vpop.f32.mrb[0].mxu0
  %1327 = vdwg.mxu0
  %1328 = vmatprep.subr.bf16.mxu0 0
  %1329 = vmatpush1.bf16.msra.mxu0 %v1006
  %1330 = vmatprep.subr.bf16.mxu0 0
  %1331 = vmatpush1.bf16.msra.mxu0 %v1007
  %1332 = vmatprep.subr.bf16.mxu0 0
  %1333 = vmatpush1.bf16.msra.mxu0 %v1008
  %1334 = vmatprep.subr.bf16.mxu0 0
  %1335 = vmatpush1.bf16.msra.mxu0 %v1009
  %1336 = vmatprep.subr.bf16.mxu0 0
  %1337 = vmatpush1.bf16.msra.mxu0 %v1010
  %1338 = vmatprep.subr.bf16.mxu0 0
  %1339 = vmatpush1.bf16.msra.mxu0 %v1011
  %1340 = vmatprep.subr.bf16.mxu0 0
  %1341 = vmatpush1.bf16.msra.mxu0 %v1012
  %1342 = vmatprep.subr.bf16.mxu0 0
  %1343 = vmatpush1.bf16.msra.mxu0 %v1013
  %1344 = vmatprep.subr.bf16.mxu0 0
  %1345 = vmatpush1.bf16.msra.mxu0 %v1014
  %1346 = vmatprep.subr.bf16.mxu0 0
  %1347 = vmatpush1.bf16.msra.mxu0 %v1015
  %1348 = vmatprep.subr.bf16.mxu0 0
  %1349 = vmatpush1.bf16.msra.mxu0 %v1016
  %1350 = vmatprep.subr.bf16.mxu0 0
  %1351 = vmatpush1.bf16.msra.mxu0 %v1017
  %1352 = vmatprep.subr.bf16.mxu0 0
  %1353 = vmatpush1.bf16.msra.mxu0 %v1018
  %1354 = vmatprep.subr.bf16.mxu0 0
  %1355 = vmatpush1.bf16.msra.mxu0 %v1019
  %1356 = vmatprep.subr.bf16.mxu0 0
  %1357 = vmatpush1.bf16.msra.mxu0 %v1020
  %1358 = vmatprep.subr.bf16.mxu0 0
  %1359 = vmatpush1.bf16.msra.mxu0 %v1021
  %1360 = vmatprep.mubr.bf16.mxu0 %v403
  %1361 = vmatmul.mubr.bf16.gmra.mrb[0].mxu0 %v402
  %v1362 = vpop.f32.mrb[0].mxu0
  %v1363 = vadd.f32 %v1314, %v1362
  %v1364 = vpop.f32.mrb[0].mxu0
  %v1365 = vpop.f32.mrb[0].mxu0
  %v1366 = vadd.f32 %v1317, %v1365
  %v1367 = vpop.f32.mrb[0].mxu0
  %1368 = vmatprep.mubr.bf16.mxu0 %v419
  %1369 = vmatmul.mubr.bf16.gmra.mrb[0].mxu0 %v418
  %v1370 = vpop.f32.mrb[0].mxu0
  %v1371 = vadd.f32 %v1322, %v1370
  %v1372 = vpop.f32.mrb[0].mxu0
  %v1373 = vpop.f32.mrb[0].mxu0
  %v1374 = vadd.f32 %v1325, %v1373
  %v1375 = vpop.f32.mrb[0].mxu0
  %1376 = vdwg.mxu0
  %1377 = vmatprep.subr.bf16.mxu0 0
  %1378 = vmatpush1.bf16.msra.mxu0 %v1022
  %1379 = vmatprep.subr.bf16.mxu0 0
  %1380 = vmatpush1.bf16.msra.mxu0 %v1023
  %1381 = vmatprep.subr.bf16.mxu0 0
  %1382 = vmatpush1.bf16.msra.mxu0 %v1024
  %1383 = vmatprep.subr.bf16.mxu0 0
  %1384 = vmatpush1.bf16.msra.mxu0 %v1025
  %1385 = vmatprep.subr.bf16.mxu0 0
  %1386 = vmatpush1.bf16.msra.mxu0 %v1026
  %1387 = vmatprep.subr.bf16.mxu0 0
  %1388 = vmatpush1.bf16.msra.mxu0 %v1027
  %1389 = vmatprep.subr.bf16.mxu0 0
  %1390 = vmatpush1.bf16.msra.mxu0 %v1028
  %1391 = vmatprep.subr.bf16.mxu0 0
  %1392 = vmatpush1.bf16.msra.mxu0 %v1029
  %1393 = vmatprep.subr.bf16.mxu0 0
  %1394 = vmatpush1.bf16.msra.mxu0 %v1030
  %1395 = vmatprep.subr.bf16.mxu0 0
  %1396 = vmatpush1.bf16.msra.mxu0 %v1031
  %1397 = vmatprep.subr.bf16.mxu0 0
  %1398 = vmatpush1.bf16.msra.mxu0 %v1032
  %1399 = vmatprep.subr.bf16.mxu0 0
  %1400 = vmatpush1.bf16.msra.mxu0 %v1033
  %1401 = vmatprep.subr.bf16.mxu0 0
  %1402 = vmatpush1.bf16.msra.mxu0 %v1034
  %1403 = vmatprep.subr.bf16.mxu0 0
  %1404 = vmatpush1.bf16.msra.mxu0 %v1035
  %1405 = vmatprep.subr.bf16.mxu0 0
  %1406 = vmatpush1.bf16.msra.mxu0 %v1036
  %1407 = vmatprep.subr.bf16.mxu0 0
  %1408 = vmatpush1.bf16.msra.mxu0 %v1037
  %1409 = vmatprep.mubr.bf16.mxu0 %v405
  %1410 = vmatmul.mubr.bf16.gmra.mrb[0].mxu0 %v404
  %v1411 = vpop.f32.mrb[0].mxu0
  %v1412 = vadd.f32 %v1363, %v1411
  %v1413 = vpop.f32.mrb[0].mxu0
  %v1414 = vpop.f32.mrb[0].mxu0
  %v1415 = vadd.f32 %v1366, %v1414
  %v1416 = vpop.f32.mrb[0].mxu0
  %1417 = vmatprep.mubr.bf16.mxu0 %v421
  %1418 = vmatmul.mubr.bf16.gmra.mrb[0].mxu0 %v420
  %v1419 = vpop.f32.mrb[0].mxu0
  %v1420 = vadd.f32 %v1371, %v1419
  %v1421 = vpop.f32.mrb[0].mxu0
  %v1422 = vpop.f32.mrb[0].mxu0
  %v1423 = vadd.f32 %v1374, %v1422
  %v1424 = vpop.f32.mrb[0].mxu0
  %1425 = vdwg.mxu0
  %1426 = vmatprep.subr.bf16.mxu0 0
  %1427 = vmatpush1.bf16.msra.mxu0 %v1038
  %1428 = vmatprep.subr.bf16.mxu0 0
  %1429 = vmatpush1.bf16.msra.mxu0 %v1039
  %1430 = vmatprep.subr.bf16.mxu0 0
  %1431 = vmatpush1.bf16.msra.mxu0 %v1040
  %1432 = vmatprep.subr.bf16.mxu0 0
  %1433 = vmatpush1.bf16.msra.mxu0 %v1041
  %1434 = vmatprep.subr.bf16.mxu0 0
  %1435 = vmatpush1.bf16.msra.mxu0 %v1042
  %1436 = vmatprep.subr.bf16.mxu0 0
  %1437 = vmatpush1.bf16.msra.mxu0 %v1043
  %1438 = vmatprep.subr.bf16.mxu0 0
  %1439 = vmatpush1.bf16.msra.mxu0 %v1044
  %1440 = vmatprep.subr.bf16.mxu0 0
  %1441 = vmatpush1.bf16.msra.mxu0 %v1045
  %1442 = vmatprep.subr.bf16.mxu0 0
  %1443 = vmatpush1.bf16.msra.mxu0 %v1046
  %1444 = vmatprep.subr.bf16.mxu0 0
  %1445 = vmatpush1.bf16.msra.mxu0 %v1047
  %1446 = vmatprep.subr.bf16.mxu0 0
  %1447 = vmatpush1.bf16.msra.mxu0 %v1048
  %1448 = vmatprep.subr.bf16.mxu0 0
  %1449 = vmatpush1.bf16.msra.mxu0 %v1049
  %1450 = vmatprep.subr.bf16.mxu0 0
  %1451 = vmatpush1.bf16.msra.mxu0 %v1050
  %1452 = vmatprep.subr.bf16.mxu0 0
  %1453 = vmatpush1.bf16.msra.mxu0 %v1051
  %1454 = vmatprep.subr.bf16.mxu0 0
  %1455 = vmatpush1.bf16.msra.mxu0 %v1052
  %1456 = vmatprep.subr.bf16.mxu0 0
  %1457 = vmatpush1.bf16.msra.mxu0 %v1053
  %1458 = vmatprep.mubr.bf16.mxu0 %v407
  %1459 = vmatmul.mubr.bf16.gmra.mrb[0].mxu0 %v406
  %v1460 = vpop.f32.mrb[0].mxu0
  %v1461 = vadd.f32 %v1412, %v1460
  %v1462 = vpop.f32.mrb[0].mxu0
  %v1463 = vpop.f32.mrb[0].mxu0
  %v1464 = vadd.f32 %v1415, %v1463
  %v1465 = vpop.f32.mrb[0].mxu0
  %1466 = vmatprep.mubr.bf16.mxu0 %v423
  %1467 = vmatmul.mubr.bf16.gmra.mrb[0].mxu0 %v422
  %v1468 = vpop.f32.mrb[0].mxu0
  %v1469 = vadd.f32 %v1420, %v1468
  %v1470 = vpop.f32.mrb[0].mxu0
  %v1471 = vpop.f32.mrb[0].mxu0
  %v1472 = vadd.f32 %v1423, %v1471
  %v1473 = vpop.f32.mrb[0].mxu0
  %1474 = vdwg.mxu0
  %1475 = vmatprep.subr.bf16.mxu0 0
  %1476 = vmatpush1.bf16.msra.mxu0 %v1054
  %1477 = vmatprep.subr.bf16.mxu0 0
  %1478 = vmatpush1.bf16.msra.mxu0 %v1055
  %1479 = vmatprep.subr.bf16.mxu0 0
  %1480 = vmatpush1.bf16.msra.mxu0 %v1056
  %1481 = vmatprep.subr.bf16.mxu0 0
  %1482 = vmatpush1.bf16.msra.mxu0 %v1057
  %1483 = vmatprep.subr.bf16.mxu0 0
  %1484 = vmatpush1.bf16.msra.mxu0 %v1058
  %1485 = vmatprep.subr.bf16.mxu0 0
  %1486 = vmatpush1.bf16.msra.mxu0 %v1059
  %1487 = vmatprep.subr.bf16.mxu0 0
  %1488 = vmatpush1.bf16.msra.mxu0 %v1060
  %1489 = vmatprep.subr.bf16.mxu0 0
  %1490 = vmatpush1.bf16.msra.mxu0 %v1061
  %1491 = vmatprep.subr.bf16.mxu0 0
  %1492 = vmatpush1.bf16.msra.mxu0 %v1062
  %1493 = vmatprep.subr.bf16.mxu0 0
  %1494 = vmatpush1.bf16.msra.mxu0 %v1063
  %1495 = vmatprep.subr.bf16.mxu0 0
  %1496 = vmatpush1.bf16.msra.mxu0 %v1064
  %1497 = vmatprep.subr.bf16.mxu0 0
  %1498 = vmatpush1.bf16.msra.mxu0 %v1065
  %1499 = vmatprep.subr.bf16.mxu0 0
  %1500 = vmatpush1.bf16.msra.mxu0 %v1066
  %1501 = vmatprep.subr.bf16.mxu0 0
  %1502 = vmatpush1.bf16.msra.mxu0 %v1067
  %1503 = vmatprep.subr.bf16.mxu0 0
  %1504 = vmatpush1.bf16.msra.mxu0 %v1068
  %1505 = vmatprep.subr.bf16.mxu0 0
  %1506 = vmatpush1.bf16.msra.mxu0 %v1069
  %1507 = vmatprep.mubr.bf16.mxu0 %v409
  %1508 = vmatmul.mubr.bf16.gmra.mrb[0].mxu0 %v408
  %v1509 = vpop.f32.mrb[0].mxu0
  %v1510 = vadd.f32 %v1461, %v1509
  %v1511 = vpop.f32.mrb[0].mxu0
  %v1512 = vpop.f32.mrb[0].mxu0
  %v1513 = vadd.f32 %v1464, %v1512
  %v1514 = vpop.f32.mrb[0].mxu0
  %1515 = vmatprep.mubr.bf16.mxu0 %v425
  %1516 = vmatmul.mubr.bf16.gmra.mrb[0].mxu0 %v424
  %v1517 = vpop.f32.mrb[0].mxu0
  %v1518 = vadd.f32 %v1469, %v1517
  %v1519 = vpop.f32.mrb[0].mxu0
  %v1520 = vpop.f32.mrb[0].mxu0
  %v1521 = vadd.f32 %v1472, %v1520
  %v1522 = vpop.f32.mrb[0].mxu0
  %1523 = vdwg.mxu0
  %1524 = vmatprep.subr.bf16.mxu0 0
  %1525 = vmatpush1.bf16.msra.mxu0 %v1070
  %1526 = vmatprep.subr.bf16.mxu0 0
  %1527 = vmatpush1.bf16.msra.mxu0 %v1071
  %1528 = vmatprep.subr.bf16.mxu0 0
  %1529 = vmatpush1.bf16.msra.mxu0 %v1072
  %1530 = vmatprep.subr.bf16.mxu0 0
  %1531 = vmatpush1.bf16.msra.mxu0 %v1073
  %1532 = vmatprep.subr.bf16.mxu0 0
  %1533 = vmatpush1.bf16.msra.mxu0 %v1074
  %1534 = vmatprep.subr.bf16.mxu0 0
  %1535 = vmatpush1.bf16.msra.mxu0 %v1075
  %1536 = vmatprep.subr.bf16.mxu0 0
  %1537 = vmatpush1.bf16.msra.mxu0 %v1076
  %1538 = vmatprep.subr.bf16.mxu0 0
  %1539 = vmatpush1.bf16.msra.mxu0 %v1077
  %1540 = vmatprep.subr.bf16.mxu0 0
  %1541 = vmatpush1.bf16.msra.mxu0 %v1078
  %1542 = vmatprep.subr.bf16.mxu0 0
  %1543 = vmatpush1.bf16.msra.mxu0 %v1079
  %1544 = vmatprep.subr.bf16.mxu0 0
  %1545 = vmatpush1.bf16.msra.mxu0 %v1080
  %1546 = vmatprep.subr.bf16.mxu0 0
  %1547 = vmatpush1.bf16.msra.mxu0 %v1081
  %1548 = vmatprep.subr.bf16.mxu0 0
  %1549 = vmatpush1.bf16.msra.mxu0 %v1082
  %1550 = vmatprep.subr.bf16.mxu0 0
  %1551 = vmatpush1.bf16.msra.mxu0 %v1083
  %1552 = vmatprep.subr.bf16.mxu0 0
  %1553 = vmatpush1.bf16.msra.mxu0 %v1084
  %1554 = vmatprep.subr.bf16.mxu0 0
  %1555 = vmatpush1.bf16.msra.mxu0 %v1085
  %1556 = vmatprep.mubr.bf16.mxu0 %v411
  %1557 = vmatmul.mubr.bf16.gmra.mrb[0].mxu0 %v410
  %v1558 = vpop.f32.mrb[0].mxu0
  %v1559 = vadd.f32 %v1510, %v1558
  %v1560 = vpop.f32.mrb[0].mxu0
  %v1561 = vpop.f32.mrb[0].mxu0
  %v1562 = vadd.f32 %v1513, %v1561
  %v1563 = vpop.f32.mrb[0].mxu0
  %1564 = vmatprep.mubr.bf16.mxu0 %v427
  %1565 = vmatmul.mubr.bf16.gmra.mrb[0].mxu0 %v426
  %v1566 = vpop.f32.mrb[0].mxu0
  %v1567 = vadd.f32 %v1518, %v1566
  %v1568 = vpop.f32.mrb[0].mxu0
  %v1569 = vpop.f32.mrb[0].mxu0
  %v1570 = vadd.f32 %v1521, %v1569
  %v1571 = vpop.f32.mrb[0].mxu0
  %1572 = vdwg.mxu0
  %1573 = vmatprep.subr.bf16.mxu0 0
  %1574 = vmatpush1.bf16.msra.mxu0 %v1086
  %1575 = vmatprep.subr.bf16.mxu0 0
  %1576 = vmatpush1.bf16.msra.mxu0 %v1087
  %1577 = vmatprep.subr.bf16.mxu0 0
  %1578 = vmatpush1.bf16.msra.mxu0 %v1088
  %1579 = vmatprep.subr.bf16.mxu0 0
  %1580 = vmatpush1.bf16.msra.mxu0 %v1089
  %1581 = vmatprep.subr.bf16.mxu0 0
  %1582 = vmatpush1.bf16.msra.mxu0 %v1090
  %1583 = vmatprep.subr.bf16.mxu0 0
  %1584 = vmatpush1.bf16.msra.mxu0 %v1091
  %1585 = vmatprep.subr.bf16.mxu0 0
  %1586 = vmatpush1.bf16.msra.mxu0 %v1092
  %1587 = vmatprep.subr.bf16.mxu0 0
  %1588 = vmatpush1.bf16.msra.mxu0 %v1093
  %1589 = vmatprep.subr.bf16.mxu0 0
  %1590 = vmatpush1.bf16.msra.mxu0 %v1094
  %1591 = vmatprep.subr.bf16.mxu0 0
  %1592 = vmatpush1.bf16.msra.mxu0 %v1095
  %1593 = vmatprep.subr.bf16.mxu0 0
  %1594 = vmatpush1.bf16.msra.mxu0 %v1096
  %1595 = vmatprep.subr.bf16.mxu0 0
  %1596 = vmatpush1.bf16.msra.mxu0 %v1097
  %1597 = vmatprep.subr.bf16.mxu0 0
  %1598 = vmatpush1.bf16.msra.mxu0 %v1098
  %1599 = vmatprep.subr.bf16.mxu0 0
  %1600 = vmatpush1.bf16.msra.mxu0 %v1099
  %1601 = vmatprep.subr.bf16.mxu0 0
  %1602 = vmatpush1.bf16.msra.mxu0 %v1100
  %1603 = vmatprep.subr.bf16.mxu0 0
  %1604 = vmatpush1.bf16.msra.mxu0 %v1101
  %1605 = vmatprep.mubr.bf16.mxu0 %v413
  %1606 = vmatmul.mubr.bf16.gmra.mrb[0].mxu0 %v412
  %v1607 = vpop.f32.mrb[0].mxu0
  %v1608 = vadd.f32 %v1559, %v1607
  %v1609 = vpop.f32.mrb[0].mxu0
  %v1610 = vpop.f32.mrb[0].mxu0
  %v1611 = vadd.f32 %v1562, %v1610
  %v1612 = vpop.f32.mrb[0].mxu0
  %1613 = vmatprep.mubr.bf16.mxu0 %v429
  %1614 = vmatmul.mubr.bf16.gmra.mrb[0].mxu0 %v428
  %v1615 = vpop.f32.mrb[0].mxu0
  %v1616 = vadd.f32 %v1567, %v1615
  %v1617 = vpop.f32.mrb[0].mxu0
  %v1618 = vpop.f32.mrb[0].mxu0
  %v1619 = vadd.f32 %v1570, %v1618
  %v1620 = vpop.f32.mrb[0].mxu0
  %1621 = vdwg.mxu0
  %v1622 = vpack.c.bf16 %v1611, %v1608
  %v1623 = vpack.c.bf16 %v1619, %v1616
  %v1626 = vunpack.c.l.b16 %v1622
  %v1627 = vunpack.c.h.b16 %v1622
  %v1628 = vunpack.c.l.b16 %v1623
  %v1629 = vunpack.c.h.b16 %v1623
  %v1630 = vpack.c.b16 %v1626, %v1626
  %v1631 = vpack.c.b16 %v1627, %v1627
  %v1632 = vpack.c.b16 %v1628, %v1628
  %v1633 = vpack.c.b16 %v1629, %v1629
  %1638 = vst [vmem:[%s2] sm:$0xf] %v1630
  %1639 = vst [vmem:[%s2 + $0x4] sm:$0xf] %v1631
  %1640 = vst [vmem:[%s2 + $0x8] sm:$0xf] %v1632
  %1641 = vst [vmem:[%s2 + $0xc] sm:$0xf] %v1633
  %p1642 = scmp.eq.s32.totalorder 0, 0
  // Predicated region
  $region10: #{dcgan_d_forward.11} parent=0 // pred_check
    %p1643 = pneg %p1642
  $region11: #{dcgan_d_forward.11} parent=0 // pred_check_branch
    %1645 = sbr.rel (%p1643) target = $region13
  $region12: #{dcgan_d_forward.11} parent=0 // pred_region
    %1646 = vst [vmem:[%s3] sm:$0xff] 0.0
  $region13: #{dcgan_d_forward.11} parent=0 // pred_fallthru
    _
  %v1647 = vld [vmem:[%s3] sm:$0x1]
  %v1648 = vadd.f32 %v1608, %v1611
  %v1649 = vadd.f32 %v1648, %v1616
  %v1650 = vadd.f32 %v1649, %v1619
  %v1651 = vrot.slane %v1650, 4
  %v1652 = vadd.f32 %v1650, %v1651
  %v1653 = vrot.slane %v1652, 2
  %v1654 = vadd.f32 %v1652, %v1653
  %v1655 = vrot.slane %v1654, 1
  %v1656 = vadd.f32 %v1654, %v1655
  %v1657 = vadd.f32 %v1647, %v1656
  %1658 = vst [vmem:[%s3] sm:$0x1] %v1657
  %v1659 = vld [vmem:[%s3 + $0x1] sm:$0x1]
  %v1660 = vmul.f32 %v1608, %v1608
  %v1661 = vmul.f32 %v1611, %v1611
  %v1662 = vmul.f32 %v1616, %v1616
  %v1663 = vmul.f32 %v1619, %v1619
  %v1664 = vadd.f32 %v1660, %v1661
  %v1665 = vadd.f32 %v1664, %v1662
  %v1666 = vadd.f32 %v1665, %v1663
  %v1667 = vrot.slane %v1666, 4
  %v1668 = vadd.f32 %v1666, %v1667
  %v1669 = vrot.slane %v1668, 2
  %v1670 = vadd.f32 %v1668, %v1669
  %v1671 = vrot.slane %v1670, 1
  %v1672 = vadd.f32 %v1670, %v1671
  %v1673 = vadd.f32 %v1659, %v1672
  %1674 = vst [vmem:[%s3 + $0x1] sm:$0x1] %v1673
  // Predicated region
  $region14: #{dcgan_d_forward.11} parent=0 // pred_check
    _
  $region15: #{dcgan_d_forward.11} parent=0 // pred_check_branch
    %1676 = sbr.rel (0) target = $region17
  $region16: #{dcgan_d_forward.11} parent=0 // pred_region
    _
  $region17: #{dcgan_d_forward.11} parent=0 // pred_fallthru
    _
  // Predicated region
  $region18: #{dcgan_d_forward.11} parent=0 // pred_check
    _
  $region19: #{dcgan_d_forward.11} parent=0 // pred_check_branch
    %1678 = sbr.rel (0) target = $region21
  $region20: #{dcgan_d_forward.11} parent=0 // pred_region
    _
  $region21: #{dcgan_d_forward.11} parent=0 // pred_fallthru
    _
  // Predicated region
  $region22: #{dcgan_d_forward.11} parent=0 // pred_check
    _
  $region23: #{dcgan_d_forward.11} parent=0 // pred_check_branch
    %1680 = sbr.rel (0) target = $region25
  $region24: #{dcgan_d_forward.11} parent=0 // pred_region
    _
  $region25: #{dcgan_d_forward.11} parent=0 // pred_fallthru
    _
  // Predicated region
  $region26: #{dcgan_d_forward.11} parent=0 // pred_check
    _
  $region27: #{dcgan_d_forward.11} parent=0 // pred_check_branch
    %1682 = sbr.rel (0) target = $region29
  $region28: #{dcgan_d_forward.11} parent=0 // pred_region
    _
  $region29: #{dcgan_d_forward.11} parent=0 // pred_fallthru
    _

</llo_original>
